<compile_context>
chip_gen: v7x
topology: tpu7x:2x2x1
jax: 0.10.0
libtpu: 0.0.40
codegen_flags: <defaults>
</compile_context>

<pallas_src>
import functools

import jax
import jax.numpy as jnp
from jax.experimental import pallas as pl
from jax.experimental.pallas import tpu as pltpu

DROPOUT_P = 0.2
INV_SCALE_FACTOR = 0.5


def _attn_kernel(q_ref, k_ref, v_ref, m_ref, o_ref, *, scale):
    # q_ref: (Hb, Tq, D), k_ref: (Hb, Sk, D), v_ref: (Hb, Sk, Dv)
    # m_ref: (Hb, Tq, Sk) dropout mask with the 1/(1-p) rescale folded in.
    q = q_ref[...] * scale          # fold qk.div(inv_scale) into a q pre-scale
    k = k_ref[...]
    v = v_ref[...]

    # scores: contract over D directly (no k.T materialization / XLU transpose)
    s = jnp.einsum("hqd,hkd->hqk", q, k, preferred_element_type=jnp.float32)

    # numerically-stable softmax, f32 math; normalization as a per-row
    # reciprocal-multiply instead of a full (Tq, Sk) divide.
    row_max = jnp.max(s, axis=-1, keepdims=True)
    e = jnp.exp(s - row_max)
    inv = 1.0 / jnp.sum(e, axis=-1, keepdims=True)     # (Hb, Tq, 1) divides only
    p = e * inv * m_ref[...]                           # softmax * dropout mask

    out = jnp.einsum("hqk,hkd->hqd", p.astype(v.dtype), v,
                     preferred_element_type=jnp.float32)
    o_ref[...] = out.astype(o_ref.dtype)


def _pick_q_tile(sq):
    if sq <= 256:
        return sq
    for t in (256, 128, 64, 32, 16, 8):
        if sq % t == 0:
            return t
    return sq  # fall back to a single full-Sq tile


def attention_dropout(q, k, v, inv_scale_factor, dropout_p, *, key=None,
                      training=True):
    """q: (B, H, Sq, D), k: (B, H, Sk, D), v: (B, H, Sk, Dv) -> (B, H, Sq, Dv)."""
    B, H, Sq, D = q.shape
    _, _, Sk, Dk = k.shape
    Dv = v.shape[-1]
    assert Dk == D and v.shape[2] == Sk
    BH = B * H

    qf = q.reshape(BH, Sq, D)
    kf = k.reshape(BH, Sk, D)
    vf = v.reshape(BH, Sk, Dv)

    # Dropout mask (F.dropout training semantics): keep with prob 1-p, scale
    # survivors by 1/(1-p).  Generated with jax.random so the kernel contains
    # no TPU-only PRNG primitives (works in interpret mode too).
    if training and dropout_p > 0.0:
        if key is None:
            key = jax.random.PRNGKey(0)
        keep = jax.random.bernoulli(key, 1.0 - dropout_p, (BH, Sq, Sk))
        mask = keep.astype(jnp.float32) * jnp.float32(1.0 / (1.0 - dropout_p))
    else:
        mask = jnp.ones((BH, Sq, Sk), dtype=jnp.float32)

    Tq = _pick_q_tile(Sq)
    n_q = Sq // Tq

    # Batch heads per grid step so the (double-buffered) working set stays
    # around ~8 MiB of scoped VMEM (fits the 16 MiB v5e default with headroom).
    itm = qf.dtype.itemsize
    per_head = (2 * ((Tq * D + Sk * D + Sk * Dv + Tq * Dv) * itm + Tq * Sk * 4)
                + 3 * Tq * Sk * 4 + Tq * Dv * 4)
    Hb = max(1, min(BH, (8 * 1024 * 1024) // max(per_head, 1)))
    while BH % Hb:
        Hb -= 1

    kernel = functools.partial(_attn_kernel, scale=float(1.0 / inv_scale_factor))

    flops = 2 * BH * Sq * Sk * (D + Dv)
    bytes_accessed = ((qf.size + kf.size + vf.size) * itm
                      + mask.size * 4 + BH * Sq * Dv * itm)
    cost = pl.CostEstimate(flops=flops, transcendentals=BH * Sq * Sk,
                           bytes_accessed=bytes_accessed)

    out = pl.pallas_call(
        kernel,
        out_shape=jax.ShapeDtypeStruct((BH, Sq, Dv), q.dtype),
        grid=(BH // Hb, n_q),
        in_specs=[
            pl.BlockSpec((Hb, Tq, D), lambda h, i: (h, i, 0)),
            pl.BlockSpec((Hb, Sk, D), lambda h, i: (h, 0, 0)),
            pl.BlockSpec((Hb, Sk, Dv), lambda h, i: (h, 0, 0)),
            pl.BlockSpec((Hb, Tq, Sk), lambda h, i: (h, i, 0)),
        ],
        out_specs=pl.BlockSpec((Hb, Tq, Dv), lambda h, i: (h, i, 0)),
        compiler_params=pltpu.CompilerParams(
            dimension_semantics=("parallel", "parallel"),
            vmem_limit_bytes=32 * 1024 * 1024,
        ),
        cost_estimate=cost,
    )(qf, kf, vf, mask)

    return out.reshape(B, H, Sq, Dv)


if __name__ == "__main__":
    # Small attention-shaped inputs consistent with the module's semantics:
    # q: (B, H, Sq, D), k/v: (B, H, Sk, D).  D=128 keeps MXU/output lanes dense.
    B, H, Sq, Sk, D = 2, 4, 64, 64, 128

    root = jax.random.PRNGKey(0)
    kq, kk, kv, kd = jax.random.split(root, 4)
    q = jax.random.normal(kq, (B, H, Sq, D), dtype=jnp.float32)
    k = jax.random.normal(kk, (B, H, Sk, D), dtype=jnp.float32)
    v = jax.random.normal(kv, (B, H, Sk, D), dtype=jnp.float32)

    # training path (with dropout), as in the reference module
    out = attention_dropout(q, k, v, INV_SCALE_FACTOR, DROPOUT_P, key=kd)
    jax.block_until_ready(out)
    assert out.shape == (B, H, Sq, D)
    assert bool(jnp.all(jnp.isfinite(out)))

    # deterministic (no-dropout) path cross-checked against pure JAX
    out_eval = attention_dropout(q, k, v, INV_SCALE_FACTOR, 0.0, training=False)
    s_ref = jnp.einsum("bhqd,bhkd->bhqk", q, k) / INV_SCALE_FACTOR
    ref = jnp.einsum("bhqk,bhkd->bhqd", jax.nn.softmax(s_ref, axis=-1), v)
    assert jnp.allclose(out_eval, ref, atol=1e-4, rtol=1e-4)

    print("KERNEL_OK")
</pallas_src>

<mosaic_0001>
module attributes {stable_mosaic.version = 11 : i64} {
  func.func @_attn_kernel(%arg0: i32, %arg1: i32, %arg2: memref<8x64x128xf32, #tpu.memory_space<vmem>>, %arg3: memref<8x64x128xf32, #tpu.memory_space<vmem>>, %arg4: memref<8x64x128xf32, #tpu.memory_space<vmem>>, %arg5: memref<8x64x64xf32, #tpu.memory_space<vmem>>, %arg6: memref<8x64x128xf32, #tpu.memory_space<vmem>>) attributes {dimension_semantics = [#tpu.dimension_semantics<parallel>, #tpu.dimension_semantics<parallel>], iteration_bounds = array<i64: 1, 1>, scalar_prefetch = 0 : i64, scratch_operands = 0 : i64, tpu.core_type = #tpu.core_type<tc>, window_params = [{transform_indices = @transform_0, window_bounds = array<i64: 8, 64, 128>}, {transform_indices = @transform_1, window_bounds = array<i64: 8, 64, 128>}, {transform_indices = @transform_2, window_bounds = array<i64: 8, 64, 128>}, {transform_indices = @transform_3, window_bounds = array<i64: 8, 64, 64>}, {transform_indices = @transform_4, window_bounds = array<i64: 8, 64, 128>}]} {
    %c0 = arith.constant 0 : index
    %c0_0 = arith.constant 0 : index
    %c0_1 = arith.constant 0 : index
    %0 = vector.load %arg2[%c0, %c0_0, %c0_1] : memref<8x64x128xf32, #tpu.memory_space<vmem>>, vector<8x64x128xf32>
    %cst = arith.constant 2.000000e+00 : f32
    %1 = vector.broadcast %cst : f32 to vector<8x64x128xf32>
    %2 = arith.mulf %0, %1 : vector<8x64x128xf32>
    %c0_2 = arith.constant 0 : index
    %c0_3 = arith.constant 0 : index
    %c0_4 = arith.constant 0 : index
    %3 = vector.load %arg3[%c0_2, %c0_3, %c0_4] : memref<8x64x128xf32, #tpu.memory_space<vmem>>, vector<8x64x128xf32>
    %c0_5 = arith.constant 0 : index
    %c0_6 = arith.constant 0 : index
    %c0_7 = arith.constant 0 : index
    %4 = vector.load %arg4[%c0_5, %c0_6, %c0_7] : memref<8x64x128xf32, #tpu.memory_space<vmem>>, vector<8x64x128xf32>
    "tpu.trace_start"() <{level = 10 : i32, message = "hqd,hkd->hqk"}> : () -> ()
    %cst_8 = arith.constant dense<0.000000e+00> : vector<8x64x64xf32>
    %5 = tpu.matmul %2, %3, %cst_8 {dimension_numbers = #tpu.dot_dimension_numbers<[2], [2], [1], [1], [0, 0, 0, 1, 1, 1], [0], [0]>} : vector<8x64x128xf32>, vector<8x64x128xf32>, vector<8x64x64xf32> -> vector<8x64x64xf32>
    "tpu.trace_stop"() : () -> ()
    %cst_9 = arith.constant dense<0xFF800000> : vector<8x64xf32>
    %6 = vector.multi_reduction <maximumf>, %5, %cst_9 [2] : vector<8x64x64xf32> to vector<8x64xf32>
    %7 = vector.shape_cast %6 : vector<8x64xf32> to vector<8x64x1xf32>
    %8 = vector.broadcast %7 : vector<8x64x1xf32> to vector<8x64x64xf32>
    %9 = arith.subf %5, %8 : vector<8x64x64xf32>
    %10 = math.exp %9 : vector<8x64x64xf32>
    %cst_10 = arith.constant dense<0.000000e+00> : vector<8x64xf32>
    %11 = vector.multi_reduction <add>, %10, %cst_10 [2] : vector<8x64x64xf32> to vector<8x64xf32>
    %12 = vector.shape_cast %11 : vector<8x64xf32> to vector<8x64x1xf32>
    %cst_11 = arith.constant 1.000000e+00 : f32
    %13 = vector.broadcast %cst_11 : f32 to vector<8x64x1xf32>
    %14 = arith.divf %13, %12 : vector<8x64x1xf32>
    %15 = vector.broadcast %14 : vector<8x64x1xf32> to vector<8x64x64xf32>
    %16 = arith.mulf %10, %15 : vector<8x64x64xf32>
    %c0_12 = arith.constant 0 : index
    %c0_13 = arith.constant 0 : index
    %c0_14 = arith.constant 0 : index
    %17 = vector.load %arg5[%c0_12, %c0_13, %c0_14] : memref<8x64x64xf32, #tpu.memory_space<vmem>>, vector<8x64x64xf32>
    %18 = arith.mulf %16, %17 : vector<8x64x64xf32>
    "tpu.trace_start"() <{level = 10 : i32, message = "hqk,hkd->hqd"}> : () -> ()
    %cst_15 = arith.constant dense<0.000000e+00> : vector<8x64x128xf32>
    %19 = tpu.matmul %18, %4, %cst_15 {dimension_numbers = #tpu.dot_dimension_numbers<[2], [1], [1], [2], [0, 0, 0, 1, 1, 2], [0], [0]>} : vector<8x64x64xf32>, vector<8x64x128xf32>, vector<8x64x128xf32> -> vector<8x64x128xf32>
    "tpu.trace_stop"() : () -> ()
    %c0_16 = arith.constant 0 : index
    %c0_17 = arith.constant 0 : index
    %c0_18 = arith.constant 0 : index
    %20 = vector.load %arg6[%c0_16, %c0_17, %c0_18] : memref<8x64x128xf32, #tpu.memory_space<vmem>>, vector<8x64x128xf32>
    tpu.vector_store %arg6[%c0_16, %c0_17, %c0_18], %19 {strides = array<i32>} : memref<8x64x128xf32, #tpu.memory_space<vmem>>, vector<8x64x128xf32>,
    return
  }
  func.func @transform_0(%arg0: i32, %arg1: i32) -> (i32, i32, i32) {
    %c0_i32 = arith.constant 0 : i32
    %c0_i32_0 = arith.constant 0 : i32
    return %arg0, %arg1, %c0_i32 : i32, i32, i32
  }
  func.func @transform_1(%arg0: i32, %arg1: i32) -> (i32, i32, i32) {
    %c0_i32 = arith.constant 0 : i32
    %c0_i32_0 = arith.constant 0 : i32
    %c0_i32_1 = arith.constant 0 : i32
    return %arg0, %c0_i32, %c0_i32_0 : i32, i32, i32
  }
  func.func @transform_2(%arg0: i32, %arg1: i32) -> (i32, i32, i32) {
    %c0_i32 = arith.constant 0 : i32
    %c0_i32_0 = arith.constant 0 : i32
    %c0_i32_1 = arith.constant 0 : i32
    return %arg0, %c0_i32, %c0_i32_0 : i32, i32, i32
  }
  func.func @transform_3(%arg0: i32, %arg1: i32) -> (i32, i32, i32) {
    %c0_i32 = arith.constant 0 : i32
    %c0_i32_0 = arith.constant 0 : i32
    return %arg0, %arg1, %c0_i32 : i32, i32, i32
  }
  func.func @transform_4(%arg0: i32, %arg1: i32) -> (i32, i32, i32) {
    %c0_i32 = arith.constant 0 : i32
    %c0_i32_0 = arith.constant 0 : i32
    return %arg0, %arg1, %c0_i32 : i32, i32, i32
  }
}

</mosaic_0001>

<llo_original>
// kernel: tpu_custom_call.1
$region0: #{tpu_custom_call.1}
  #allocation0 [shape = 'u32[]', space=smem, size = 0x4, offset = 0x4, fixed_abs, tag = 'smem constant byte address 0x4 - core index']
  #allocation1 [shape = 'u32[144,128]{1,0:T(1,128)}', space=vmem, size = 0x12000, scoped, tag = 'internal scratch']
  %s0 = inlined_call_operand.hbm [shape: f32[8,64,128], index: 0, kind: input, shape index: {}]
  %s1 = inlined_call_operand.hbm [shape: f32[8,64,128], index: 1, kind: input, shape index: {}]
  %s2 = inlined_call_operand.hbm [shape: f32[8,64,128], index: 2, kind: input, shape index: {}]
  %s3 = inlined_call_operand.hbm [shape: f32[8,64,64], index: 3, kind: input, shape index: {}]
  %s4 = inlined_call_operand.hbm [shape: f32[8,64,128], index: 4, kind: output, shape index: {}]
  %s5 = sld [smem:[#allocation0]]
  $region42: #{tpu_custom_call.1} parent=0
    _
  %s7 = ssub.s32 1, %s5
  %s8 = scalar_select 0, %s7, %s5
  $region1: #{tpu_custom_call.1} parent=0
    #allocation2 [shape = 'u8[262144]{0}', space=vmem, size = 0x40000, scoped, tag = 'input window, operand 0, single buffered']
    #allocation3 [shape = 's32[1]{0}', space=sflag, size = 0x4, scoped, tag = 'scoped memory for tpu_custom_call.1']
    #allocation4 [shape = 's32[1]{0}', space=sflag, size = 0x4, scoped, tag = 'scoped memory for tpu_custom_call.1']
    #allocation5 [shape = 'u8[262144]{0}', space=vmem, size = 0x40000, scoped, tag = 'input window, operand 1, single buffered']
    #allocation6 [shape = 's32[1]{0}', space=sflag, size = 0x4, scoped, tag = 'scoped memory for tpu_custom_call.1']
    #allocation7 [shape = 'u8[262144]{0}', space=vmem, size = 0x40000, scoped, tag = 'input window, operand 2, single buffered']
    #allocation8 [shape = 'u8[262144]{0}', space=vmem, size = 0x40000, scoped, tag = 'input window, operand 3, single buffered']
    #allocation9 [shape = 's32[1]{0}', space=sflag, size = 0x4, scoped, tag = 'scoped memory for tpu_custom_call.1']
    #allocation10 [shape = 'u8[262144]{0}', space=vmem, size = 0x40000, scoped, tag = 'output window, operand 0, single buffered']
    %9 = vsyncpa [#allocation3], 0
    %10 = vsyncpa [#allocation6], 0
    %11 = vsyncpa [#allocation9], 0
    %12 = vsyncpa [#allocation4], 0
    // Predicated region
    $region2: #{tpu_custom_call.1} parent=1 // pred_check
      _
    $region3: #{tpu_custom_call.1} parent=1 // pred_check_branch
      %14 = sbr.rel (0) target = $region5
    $region4: #{tpu_custom_call.1} parent=1 // pred_region
      %s16 = ssub.s32 8192, 8192
      %17 = vsyncadd [#allocation3], %s16
      %s18 = sshll.u32 [#allocation2], 4
      %s19 = int_to_ptr.vmem [resolvable:$true] %s18
      %24 = dma.hbm_to_vmem [thread:$0]  %s0, 8192, %s19, [#allocation3], 128, 128, 8
    $region5: #{tpu_custom_call.1} parent=1 // pred_fallthru
      _
    // Predicated region
    $region6: #{tpu_custom_call.1} parent=1 // pred_check
      _
    $region7: #{tpu_custom_call.1} parent=1 // pred_check_branch
      %26 = sbr.rel (0) target = $region9
    $region8: #{tpu_custom_call.1} parent=1 // pred_region
      %s28 = ssub.s32 8192, 8192
      %29 = vsyncadd [#allocation6], %s28
      %s30 = sshll.u32 [#allocation5], 4
      %s31 = int_to_ptr.vmem [resolvable:$true] %s30
      %36 = dma.hbm_to_vmem [thread:$0]  %s1, 8192, %s31, [#allocation6], 128, 128, 8
    $region9: #{tpu_custom_call.1} parent=1 // pred_fallthru
      _
    // Predicated region
    $region10: #{tpu_custom_call.1} parent=1 // pred_check
      _
    $region11: #{tpu_custom_call.1} parent=1 // pred_check_branch
      %38 = sbr.rel (0) target = $region13
    $region12: #{tpu_custom_call.1} parent=1 // pred_region
      %s40 = ssub.s32 8192, 8192
      %41 = vsyncadd [#allocation6], %s40
      %s42 = sshll.u32 [#allocation7], 4
      %s43 = int_to_ptr.vmem [resolvable:$true] %s42
      %48 = dma.hbm_to_vmem [thread:$0]  %s2, 8192, %s43, [#allocation6], 128, 128, 8
    $region13: #{tpu_custom_call.1} parent=1 // pred_fallthru
      _
    // Predicated region
    $region14: #{tpu_custom_call.1} parent=1 // pred_check
      _
    $region15: #{tpu_custom_call.1} parent=1 // pred_check_branch
      %50 = sbr.rel (0) target = $region17
    $region16: #{tpu_custom_call.1} parent=1 // pred_region
      %s52 = ssub.s32 8192, 8192
      %53 = vsyncadd [#allocation9], %s52
      %s54 = sshll.u32 [#allocation8], 4
      %s55 = int_to_ptr.vmem [resolvable:$true] %s54
      %60 = dma.hbm_to_vmem [thread:$0]  %s3, 8192, %s55, [#allocation9], 128, 128, 8
    $region17: #{tpu_custom_call.1} parent=1 // pred_fallthru
      _
    // Predicated region
    $region18: #{tpu_custom_call.1} parent=1 // pred_check
      _
    $region19: #{tpu_custom_call.1} parent=1 // pred_check_branch
      %62 = sbr.rel (0) target = $region21
    $region20: #{tpu_custom_call.1} parent=1 // pred_region
      %63 = dma.done [#allocation3], 8192
    $region21: #{tpu_custom_call.1} parent=1 // pred_fallthru
      _
    // Predicated region
    $region22: #{tpu_custom_call.1} parent=1 // pred_check
      _
    $region23: #{tpu_custom_call.1} parent=1 // pred_check_branch
      %65 = sbr.rel (0) target = $region25
    $region24: #{tpu_custom_call.1} parent=1 // pred_region
      %66 = dma.done [#allocation6], 8192
    $region25: #{tpu_custom_call.1} parent=1 // pred_fallthru
      _
    // Predicated region
    $region26: #{tpu_custom_call.1} parent=1 // pred_check
      _
    $region27: #{tpu_custom_call.1} parent=1 // pred_check_branch
      %68 = sbr.rel (0) target = $region29
    $region28: #{tpu_custom_call.1} parent=1 // pred_region
      %69 = dma.done [#allocation6], 8192
    $region29: #{tpu_custom_call.1} parent=1 // pred_fallthru
      _
    // Predicated region
    $region30: #{tpu_custom_call.1} parent=1 // pred_check
      _
    $region31: #{tpu_custom_call.1} parent=1 // pred_check_branch
      %71 = sbr.rel (0) target = $region33
    $region32: #{tpu_custom_call.1} parent=1 // pred_region
      %72 = dma.done [#allocation9], 8192
    $region33: #{tpu_custom_call.1} parent=1 // pred_fallthru
      _
    %v73 = vld [vmem:[#allocation2] sm:$0xff]
    %v74 = vld [vmem:[#allocation2 + $0x8] sm:$0xff]
    %v75 = vld [vmem:[#allocation2 + $0x10] sm:$0xff]
    %v76 = vld [vmem:[#allocation2 + $0x18] sm:$0xff]
    %v77 = vld [vmem:[#allocation2 + $0x20] sm:$0xff]
    %v78 = vld [vmem:[#allocation2 + $0x28] sm:$0xff]
    %v79 = vld [vmem:[#allocation2 + $0x30] sm:$0xff]
    %v80 = vld [vmem:[#allocation2 + $0x38] sm:$0xff]
    %v81 = vld [vmem:[#allocation2 + $0x40] sm:$0xff]
    %v82 = vld [vmem:[#allocation2 + $0x48] sm:$0xff]
    %v83 = vld [vmem:[#allocation2 + $0x50] sm:$0xff]
    %v84 = vld [vmem:[#allocation2 + $0x58] sm:$0xff]
    %v85 = vld [vmem:[#allocation2 + $0x60] sm:$0xff]
    %v86 = vld [vmem:[#allocation2 + $0x68] sm:$0xff]
    %v87 = vld [vmem:[#allocation2 + $0x70] sm:$0xff]
    %v88 = vld [vmem:[#allocation2 + $0x78] sm:$0xff]
    %v89 = vld [vmem:[#allocation2 + $0x80] sm:$0xff]
    %v90 = vld [vmem:[#allocation2 + $0x88] sm:$0xff]
    %v91 = vld [vmem:[#allocation2 + $0x90] sm:$0xff]
    %v92 = vld [vmem:[#allocation2 + $0x98] sm:$0xff]
    %v93 = vld [vmem:[#allocation2 + $0xa0] sm:$0xff]
    %v94 = vld [vmem:[#allocation2 + $0xa8] sm:$0xff]
    %v95 = vld [vmem:[#allocation2 + $0xb0] sm:$0xff]
    %v96 = vld [vmem:[#allocation2 + $0xb8] sm:$0xff]
    %v97 = vld [vmem:[#allocation2 + $0xc0] sm:$0xff]
    %v98 = vld [vmem:[#allocation2 + $0xc8] sm:$0xff]
    %v99 = vld [vmem:[#allocation2 + $0xd0] sm:$0xff]
    %v100 = vld [vmem:[#allocation2 + $0xd8] sm:$0xff]
    %v101 = vld [vmem:[#allocation2 + $0xe0] sm:$0xff]
    %v102 = vld [vmem:[#allocation2 + $0xe8] sm:$0xff]
    %v103 = vld [vmem:[#allocation2 + $0xf0] sm:$0xff]
    %v104 = vld [vmem:[#allocation2 + $0xf8] sm:$0xff]
    %v105 = vld [vmem:[#allocation2 + $0x100] sm:$0xff]
    %v106 = vld [vmem:[#allocation2 + $0x108] sm:$0xff]
    %v107 = vld [vmem:[#allocation2 + $0x110] sm:$0xff]
    %v108 = vld [vmem:[#allocation2 + $0x118] sm:$0xff]
    %v109 = vld [vmem:[#allocation2 + $0x120] sm:$0xff]
    %v110 = vld [vmem:[#allocation2 + $0x128] sm:$0xff]
    %v111 = vld [vmem:[#allocation2 + $0x130] sm:$0xff]
    %v112 = vld [vmem:[#allocation2 + $0x138] sm:$0xff]
    %v113 = vld [vmem:[#allocation2 + $0x140] sm:$0xff]
    %v114 = vld [vmem:[#allocation2 + $0x148] sm:$0xff]
    %v115 = vld [vmem:[#allocation2 + $0x150] sm:$0xff]
    %v116 = vld [vmem:[#allocation2 + $0x158] sm:$0xff]
    %v117 = vld [vmem:[#allocation2 + $0x160] sm:$0xff]
    %v118 = vld [vmem:[#allocation2 + $0x168] sm:$0xff]
    %v119 = vld [vmem:[#allocation2 + $0x170] sm:$0xff]
    %v120 = vld [vmem:[#allocation2 + $0x178] sm:$0xff]
    %v121 = vld [vmem:[#allocation2 + $0x180] sm:$0xff]
    %v122 = vld [vmem:[#allocation2 + $0x188] sm:$0xff]
    %v123 = vld [vmem:[#allocation2 + $0x190] sm:$0xff]
    %v124 = vld [vmem:[#allocation2 + $0x198] sm:$0xff]
    %v125 = vld [vmem:[#allocation2 + $0x1a0] sm:$0xff]
    %v126 = vld [vmem:[#allocation2 + $0x1a8] sm:$0xff]
    %v127 = vld [vmem:[#allocation2 + $0x1b0] sm:$0xff]
    %v128 = vld [vmem:[#allocation2 + $0x1b8] sm:$0xff]
    %v129 = vld [vmem:[#allocation2 + $0x1c0] sm:$0xff]
    %v130 = vld [vmem:[#allocation2 + $0x1c8] sm:$0xff]
    %v131 = vld [vmem:[#allocation2 + $0x1d0] sm:$0xff]
    %v132 = vld [vmem:[#allocation2 + $0x1d8] sm:$0xff]
    %v133 = vld [vmem:[#allocation2 + $0x1e0] sm:$0xff]
    %v134 = vld [vmem:[#allocation2 + $0x1e8] sm:$0xff]
    %v135 = vld [vmem:[#allocation2 + $0x1f0] sm:$0xff]
    %v136 = vld [vmem:[#allocation2 + $0x1f8] sm:$0xff]
    %v137 = vmul.f32 %v73, 2.0
    %v138 = vmul.f32 %v74, 2.0
    %v139 = vmul.f32 %v75, 2.0
    %v140 = vmul.f32 %v76, 2.0
    %v141 = vmul.f32 %v77, 2.0
    %v142 = vmul.f32 %v78, 2.0
    %v143 = vmul.f32 %v79, 2.0
    %v144 = vmul.f32 %v80, 2.0
    %v145 = vmul.f32 %v81, 2.0
    %v146 = vmul.f32 %v82, 2.0
    %v147 = vmul.f32 %v83, 2.0
    %v148 = vmul.f32 %v84, 2.0
    %v149 = vmul.f32 %v85, 2.0
    %v150 = vmul.f32 %v86, 2.0
    %v151 = vmul.f32 %v87, 2.0
    %v152 = vmul.f32 %v88, 2.0
    %v153 = vmul.f32 %v89, 2.0
    %v154 = vmul.f32 %v90, 2.0
    %v155 = vmul.f32 %v91, 2.0
    %v156 = vmul.f32 %v92, 2.0
    %v157 = vmul.f32 %v93, 2.0
    %v158 = vmul.f32 %v94, 2.0
    %v159 = vmul.f32 %v95, 2.0
    %v160 = vmul.f32 %v96, 2.0
    %v161 = vmul.f32 %v97, 2.0
    %v162 = vmul.f32 %v98, 2.0
    %v163 = vmul.f32 %v99, 2.0
    %v164 = vmul.f32 %v100, 2.0
    %v165 = vmul.f32 %v101, 2.0
    %v166 = vmul.f32 %v102, 2.0
    %v167 = vmul.f32 %v103, 2.0
    %v168 = vmul.f32 %v104, 2.0
    %v169 = vmul.f32 %v105, 2.0
    %v170 = vmul.f32 %v106, 2.0
    %v171 = vmul.f32 %v107, 2.0
    %v172 = vmul.f32 %v108, 2.0
    %v173 = vmul.f32 %v109, 2.0
    %v174 = vmul.f32 %v110, 2.0
    %v175 = vmul.f32 %v111, 2.0
    %v176 = vmul.f32 %v112, 2.0
    %v177 = vmul.f32 %v113, 2.0
    %v178 = vmul.f32 %v114, 2.0
    %v179 = vmul.f32 %v115, 2.0
    %v180 = vmul.f32 %v116, 2.0
    %v181 = vmul.f32 %v117, 2.0
    %v182 = vmul.f32 %v118, 2.0
    %v183 = vmul.f32 %v119, 2.0
    %v184 = vmul.f32 %v120, 2.0
    %v185 = vmul.f32 %v121, 2.0
    %v186 = vmul.f32 %v122, 2.0
    %v187 = vmul.f32 %v123, 2.0
    %v188 = vmul.f32 %v124, 2.0
    %v189 = vmul.f32 %v125, 2.0
    %v190 = vmul.f32 %v126, 2.0
    %v191 = vmul.f32 %v127, 2.0
    %v192 = vmul.f32 %v128, 2.0
    %v193 = vmul.f32 %v129, 2.0
    %v194 = vmul.f32 %v130, 2.0
    %v195 = vmul.f32 %v131, 2.0
    %v196 = vmul.f32 %v132, 2.0
    %v197 = vmul.f32 %v133, 2.0
    %v198 = vmul.f32 %v134, 2.0
    %v199 = vmul.f32 %v135, 2.0
    %v200 = vmul.f32 %v136, 2.0
    %v201 = vld [vmem:[#allocation5] sm:$0xff]
    %v202 = vld [vmem:[#allocation5 + $0x8] sm:$0xff]
    %v203 = vld [vmem:[#allocation5 + $0x10] sm:$0xff]
    %v204 = vld [vmem:[#allocation5 + $0x18] sm:$0xff]
    %v205 = vld [vmem:[#allocation5 + $0x20] sm:$0xff]
    %v206 = vld [vmem:[#allocation5 + $0x28] sm:$0xff]
    %v207 = vld [vmem:[#allocation5 + $0x30] sm:$0xff]
    %v208 = vld [vmem:[#allocation5 + $0x38] sm:$0xff]
    %v209 = vld [vmem:[#allocation5 + $0x40] sm:$0xff]
    %v210 = vld [vmem:[#allocation5 + $0x48] sm:$0xff]
    %v211 = vld [vmem:[#allocation5 + $0x50] sm:$0xff]
    %v212 = vld [vmem:[#allocation5 + $0x58] sm:$0xff]
    %v213 = vld [vmem:[#allocation5 + $0x60] sm:$0xff]
    %v214 = vld [vmem:[#allocation5 + $0x68] sm:$0xff]
    %v215 = vld [vmem:[#allocation5 + $0x70] sm:$0xff]
    %v216 = vld [vmem:[#allocation5 + $0x78] sm:$0xff]
    %v217 = vld [vmem:[#allocation5 + $0x80] sm:$0xff]
    %v218 = vld [vmem:[#allocation5 + $0x88] sm:$0xff]
    %v219 = vld [vmem:[#allocation5 + $0x90] sm:$0xff]
    %v220 = vld [vmem:[#allocation5 + $0x98] sm:$0xff]
    %v221 = vld [vmem:[#allocation5 + $0xa0] sm:$0xff]
    %v222 = vld [vmem:[#allocation5 + $0xa8] sm:$0xff]
    %v223 = vld [vmem:[#allocation5 + $0xb0] sm:$0xff]
    %v224 = vld [vmem:[#allocation5 + $0xb8] sm:$0xff]
    %v225 = vld [vmem:[#allocation5 + $0xc0] sm:$0xff]
    %v226 = vld [vmem:[#allocation5 + $0xc8] sm:$0xff]
    %v227 = vld [vmem:[#allocation5 + $0xd0] sm:$0xff]
    %v228 = vld [vmem:[#allocation5 + $0xd8] sm:$0xff]
    %v229 = vld [vmem:[#allocation5 + $0xe0] sm:$0xff]
    %v230 = vld [vmem:[#allocation5 + $0xe8] sm:$0xff]
    %v231 = vld [vmem:[#allocation5 + $0xf0] sm:$0xff]
    %v232 = vld [vmem:[#allocation5 + $0xf8] sm:$0xff]
    %v233 = vld [vmem:[#allocation5 + $0x100] sm:$0xff]
    %v234 = vld [vmem:[#allocation5 + $0x108] sm:$0xff]
    %v235 = vld [vmem:[#allocation5 + $0x110] sm:$0xff]
    %v236 = vld [vmem:[#allocation5 + $0x118] sm:$0xff]
    %v237 = vld [vmem:[#allocation5 + $0x120] sm:$0xff]
    %v238 = vld [vmem:[#allocation5 + $0x128] sm:$0xff]
    %v239 = vld [vmem:[#allocation5 + $0x130] sm:$0xff]
    %v240 = vld [vmem:[#allocation5 + $0x138] sm:$0xff]
    %v241 = vld [vmem:[#allocation5 + $0x140] sm:$0xff]
    %v242 = vld [vmem:[#allocation5 + $0x148] sm:$0xff]
    %v243 = vld [vmem:[#allocation5 + $0x150] sm:$0xff]
    %v244 = vld [vmem:[#allocation5 + $0x158] sm:$0xff]
    %v245 = vld [vmem:[#allocation5 + $0x160] sm:$0xff]
    %v246 = vld [vmem:[#allocation5 + $0x168] sm:$0xff]
    %v247 = vld [vmem:[#allocation5 + $0x170] sm:$0xff]
    %v248 = vld [vmem:[#allocation5 + $0x178] sm:$0xff]
    %v249 = vld [vmem:[#allocation5 + $0x180] sm:$0xff]
    %v250 = vld [vmem:[#allocation5 + $0x188] sm:$0xff]
    %v251 = vld [vmem:[#allocation5 + $0x190] sm:$0xff]
    %v252 = vld [vmem:[#allocation5 + $0x198] sm:$0xff]
    %v253 = vld [vmem:[#allocation5 + $0x1a0] sm:$0xff]
    %v254 = vld [vmem:[#allocation5 + $0x1a8] sm:$0xff]
    %v255 = vld [vmem:[#allocation5 + $0x1b0] sm:$0xff]
    %v256 = vld [vmem:[#allocation5 + $0x1b8] sm:$0xff]
    %v257 = vld [vmem:[#allocation5 + $0x1c0] sm:$0xff]
    %v258 = vld [vmem:[#allocation5 + $0x1c8] sm:$0xff]
    %v259 = vld [vmem:[#allocation5 + $0x1d0] sm:$0xff]
    %v260 = vld [vmem:[#allocation5 + $0x1d8] sm:$0xff]
    %v261 = vld [vmem:[#allocation5 + $0x1e0] sm:$0xff]
    %v262 = vld [vmem:[#allocation5 + $0x1e8] sm:$0xff]
    %v263 = vld [vmem:[#allocation5 + $0x1f0] sm:$0xff]
    %v264 = vld [vmem:[#allocation5 + $0x1f8] sm:$0xff]
    %v265 = vld [vmem:[#allocation7] sm:$0xff]
    %v266 = vld [vmem:[#allocation7 + $0x8] sm:$0xff]
    %v267 = vld [vmem:[#allocation7 + $0x10] sm:$0xff]
    %v268 = vld [vmem:[#allocation7 + $0x18] sm:$0xff]
    %v269 = vld [vmem:[#allocation7 + $0x20] sm:$0xff]
    %v270 = vld [vmem:[#allocation7 + $0x28] sm:$0xff]
    %v271 = vld [vmem:[#allocation7 + $0x30] sm:$0xff]
    %v272 = vld [vmem:[#allocation7 + $0x38] sm:$0xff]
    %v273 = vld [vmem:[#allocation7 + $0x40] sm:$0xff]
    %v274 = vld [vmem:[#allocation7 + $0x48] sm:$0xff]
    %v275 = vld [vmem:[#allocation7 + $0x50] sm:$0xff]
    %v276 = vld [vmem:[#allocation7 + $0x58] sm:$0xff]
    %v277 = vld [vmem:[#allocation7 + $0x60] sm:$0xff]
    %v278 = vld [vmem:[#allocation7 + $0x68] sm:$0xff]
    %v279 = vld [vmem:[#allocation7 + $0x70] sm:$0xff]
    %v280 = vld [vmem:[#allocation7 + $0x78] sm:$0xff]
    %v281 = vld [vmem:[#allocation7 + $0x80] sm:$0xff]
    %v282 = vld [vmem:[#allocation7 + $0x88] sm:$0xff]
    %v283 = vld [vmem:[#allocation7 + $0x90] sm:$0xff]
    %v284 = vld [vmem:[#allocation7 + $0x98] sm:$0xff]
    %v285 = vld [vmem:[#allocation7 + $0xa0] sm:$0xff]
    %v286 = vld [vmem:[#allocation7 + $0xa8] sm:$0xff]
    %v287 = vld [vmem:[#allocation7 + $0xb0] sm:$0xff]
    %v288 = vld [vmem:[#allocation7 + $0xb8] sm:$0xff]
    %v289 = vld [vmem:[#allocation7 + $0xc0] sm:$0xff]
    %v290 = vld [vmem:[#allocation7 + $0xc8] sm:$0xff]
    %v291 = vld [vmem:[#allocation7 + $0xd0] sm:$0xff]
    %v292 = vld [vmem:[#allocation7 + $0xd8] sm:$0xff]
    %v293 = vld [vmem:[#allocation7 + $0xe0] sm:$0xff]
    %v294 = vld [vmem:[#allocation7 + $0xe8] sm:$0xff]
    %v295 = vld [vmem:[#allocation7 + $0xf0] sm:$0xff]
    %v296 = vld [vmem:[#allocation7 + $0xf8] sm:$0xff]
    %v297 = vld [vmem:[#allocation7 + $0x100] sm:$0xff]
    %v298 = vld [vmem:[#allocation7 + $0x108] sm:$0xff]
    %v299 = vld [vmem:[#allocation7 + $0x110] sm:$0xff]
    %v300 = vld [vmem:[#allocation7 + $0x118] sm:$0xff]
    %v301 = vld [vmem:[#allocation7 + $0x120] sm:$0xff]
    %v302 = vld [vmem:[#allocation7 + $0x128] sm:$0xff]
    %v303 = vld [vmem:[#allocation7 + $0x130] sm:$0xff]
    %v304 = vld [vmem:[#allocation7 + $0x138] sm:$0xff]
    %v305 = vld [vmem:[#allocation7 + $0x140] sm:$0xff]
    %v306 = vld [vmem:[#allocation7 + $0x148] sm:$0xff]
    %v307 = vld [vmem:[#allocation7 + $0x150] sm:$0xff]
    %v308 = vld [vmem:[#allocation7 + $0x158] sm:$0xff]
    %v309 = vld [vmem:[#allocation7 + $0x160] sm:$0xff]
    %v310 = vld [vmem:[#allocation7 + $0x168] sm:$0xff]
    %v311 = vld [vmem:[#allocation7 + $0x170] sm:$0xff]
    %v312 = vld [vmem:[#allocation7 + $0x178] sm:$0xff]
    %v313 = vld [vmem:[#allocation7 + $0x180] sm:$0xff]
    %v314 = vld [vmem:[#allocation7 + $0x188] sm:$0xff]
    %v315 = vld [vmem:[#allocation7 + $0x190] sm:$0xff]
    %v316 = vld [vmem:[#allocation7 + $0x198] sm:$0xff]
    %v317 = vld [vmem:[#allocation7 + $0x1a0] sm:$0xff]
    %v318 = vld [vmem:[#allocation7 + $0x1a8] sm:$0xff]
    %v319 = vld [vmem:[#allocation7 + $0x1b0] sm:$0xff]
    %v320 = vld [vmem:[#allocation7 + $0x1b8] sm:$0xff]
    %v321 = vld [vmem:[#allocation7 + $0x1c0] sm:$0xff]
    %v322 = vld [vmem:[#allocation7 + $0x1c8] sm:$0xff]
    %v323 = vld [vmem:[#allocation7 + $0x1d0] sm:$0xff]
    %v324 = vld [vmem:[#allocation7 + $0x1d8] sm:$0xff]
    %v325 = vld [vmem:[#allocation7 + $0x1e0] sm:$0xff]
    %v326 = vld [vmem:[#allocation7 + $0x1e8] sm:$0xff]
    %v327 = vld [vmem:[#allocation7 + $0x1f0] sm:$0xff]
    %v328 = vld [vmem:[#allocation7 + $0x1f8] sm:$0xff]
    %329 = vmatprep.subr.mxu0 0.0
    %330 = vmatpush1.xpose.msra.mxu0 %v201
    %331 = vmatprep.subr.mxu0 0.0
    %332 = vmatpush1.xpose.msra.mxu0 %v202
    %333 = vmatprep.subr.mxu0 0.0
    %334 = vmatpush1.xpose.msra.mxu0 %v203
    %335 = vmatprep.subr.mxu0 0.0
    %336 = vmatpush1.xpose.msra.mxu0 %v204
    %337 = vmatprep.subr.mxu0 0.0
    %338 = vmatpush1.xpose.msra.mxu0 %v205
    %339 = vmatprep.subr.mxu0 0.0
    %340 = vmatpush1.xpose.msra.mxu0 %v206
    %341 = vmatprep.subr.mxu0 0.0
    %342 = vmatpush1.xpose.msra.mxu0 %v207
    %343 = vmatprep.subr.mxu0 0.0
    %344 = vmatpush1.xpose.msra.mxu0 %v208
    %345 = vmatprep.subr.mxu0 0.0
    %346 = vmatpush1.xpose.msra.mxu0 0.0
    %347 = vmatprep.subr.mxu0 0.0
    %348 = vmatpush1.xpose.msra.mxu0 0.0
    %349 = vmatprep.subr.mxu0 0.0
    %350 = vmatpush1.xpose.msra.mxu0 0.0
    %351 = vmatprep.subr.mxu0 0.0
    %352 = vmatpush1.xpose.msra.mxu0 0.0
    %353 = vmatprep.subr.mxu0 0.0
    %354 = vmatpush1.xpose.msra.mxu0 0.0
    %355 = vmatprep.subr.mxu0 0.0
    %356 = vmatpush1.xpose.msra.mxu0 0.0
    %357 = vmatprep.subr.mxu0 0.0
    %358 = vmatpush1.xpose.msra.mxu0 0.0
    %359 = vmatprep.subr.mxu0 0.0
    %360 = vmatpush1.xpose.msra.mxu0 0.0
    %361 = vmatprep.subr.mxu0 0.0
    %362 = vmatpush1.xpose.msra.mxu0 0.0
    %363 = vmatprep.subr.mxu0 0.0
    %364 = vmatpush1.xpose.msra.mxu0 0.0
    %365 = vmatprep.subr.mxu0 0.0
    %366 = vmatpush1.xpose.msra.mxu0 0.0
    %367 = vmatprep.subr.mxu0 0.0
    %368 = vmatpush1.xpose.msra.mxu0 0.0
    %369 = vmatprep.subr.mxu0 0.0
    %370 = vmatpush1.xpose.msra.mxu0 0.0
    %371 = vmatprep.subr.mxu0 0.0
    %372 = vmatpush1.xpose.msra.mxu0 0.0
    %373 = vmatprep.subr.mxu0 0.0
    %374 = vmatpush1.xpose.msra.mxu0 0.0
    %375 = vmatprep.subr.mxu0 0.0
    %376 = vmatpush1.xpose.msra.mxu0 0.0
    %377 = vmatprep.subr.mxu0 0.0
    %378 = vmatpush1.xpose.msra.mxu0 0.0
    %379 = vmatprep.subr.mxu0 0.0
    %380 = vmatpush1.xpose.msra.mxu0 0.0
    %381 = vmatprep.subr.mxu0 0.0
    %382 = vmatpush1.xpose.msra.mxu0 0.0
    %383 = vmatprep.subr.mxu0 0.0
    %384 = vmatpush1.xpose.msra.mxu0 0.0
    %385 = vmatprep.subr.mxu0 0.0
    %386 = vmatpush1.xpose.msra.mxu0 0.0
    %387 = vmatprep.subr.mxu0 0.0
    %388 = vmatpush1.xpose.msra.mxu0 0.0
    %389 = vmatprep.subr.mxu0 0.0
    %390 = vmatpush1.xpose.msra.mxu0 0.0
    %391 = vmatprep.subr.mxu0 0.0
    %392 = vmatpush1.xpose.msra.mxu0 0.0
    %393 = vmatprep.mubr.f32.mxu0 0.0
    %394 = vmatmul.mubr.f32.gmra.mrb[0].mxu0 %v137
    %v395 = vpop.f32.mrb[0].mxu0
    %v396 = vadd.f32 0.0, %v395
    %v397 = vpop.f32.mrb[0].mxu0
    %398 = vmatprep.mubr.f32.mxu0 0.0
    %399 = vmatmul.mubr.f32.gmra.mrb[0].mxu0 %v138
    %v400 = vpop.f32.mrb[0].mxu0
    %v401 = vadd.f32 0.0, %v400
    %v402 = vpop.f32.mrb[0].mxu0
    %403 = vmatprep.mubr.f32.mxu0 0.0
    %404 = vmatmul.mubr.f32.gmra.mrb[0].mxu0 %v139
    %v405 = vpop.f32.mrb[0].mxu0
    %v406 = vadd.f32 0.0, %v405
    %v407 = vpop.f32.mrb[0].mxu0
    %408 = vmatprep.mubr.f32.mxu0 0.0
    %409 = vmatmul.mubr.f32.gmra.mrb[0].mxu0 %v140
    %v410 = vpop.f32.mrb[0].mxu0
    %v411 = vadd.f32 0.0, %v410
    %v412 = vpop.f32.mrb[0].mxu0
    %413 = vmatprep.mubr.f32.mxu0 0.0
    %414 = vmatmul.mubr.f32.gmra.mrb[0].mxu0 %v141
    %v415 = vpop.f32.mrb[0].mxu0
    %v416 = vadd.f32 0.0, %v415
    %v417 = vpop.f32.mrb[0].mxu0
    %418 = vmatprep.mubr.f32.mxu0 0.0
    %419 = vmatmul.mubr.f32.gmra.mrb[0].mxu0 %v142
    %v420 = vpop.f32.mrb[0].mxu0
    %v421 = vadd.f32 0.0, %v420
    %v422 = vpop.f32.mrb[0].mxu0
    %423 = vmatprep.mubr.f32.mxu0 0.0
    %424 = vmatmul.mubr.f32.gmra.mrb[0].mxu0 %v143
    %v425 = vpop.f32.mrb[0].mxu0
    %v426 = vadd.f32 0.0, %v425
    %v427 = vpop.f32.mrb[0].mxu0
    %428 = vmatprep.mubr.f32.mxu0 0.0
    %429 = vmatmul.mubr.f32.gmra.mrb[0].mxu0 %v144
    %v430 = vpop.f32.mrb[0].mxu0
    %v431 = vadd.f32 0.0, %v430
    %v432 = vpop.f32.mrb[0].mxu0
    %433 = vdwg.mxu0
    %434 = vmatprep.subr.mxu0 0.0
    %435 = vmatpush1.xpose.msra.mxu0 %v209
    %436 = vmatprep.subr.mxu0 0.0
    %437 = vmatpush1.xpose.msra.mxu0 %v210
    %438 = vmatprep.subr.mxu0 0.0
    %439 = vmatpush1.xpose.msra.mxu0 %v211
    %440 = vmatprep.subr.mxu0 0.0
    %441 = vmatpush1.xpose.msra.mxu0 %v212
    %442 = vmatprep.subr.mxu0 0.0
    %443 = vmatpush1.xpose.msra.mxu0 %v213
    %444 = vmatprep.subr.mxu0 0.0
    %445 = vmatpush1.xpose.msra.mxu0 %v214
    %446 = vmatprep.subr.mxu0 0.0
    %447 = vmatpush1.xpose.msra.mxu0 %v215
    %448 = vmatprep.subr.mxu0 0.0
    %449 = vmatpush1.xpose.msra.mxu0 %v216
    %450 = vmatprep.subr.mxu0 0.0
    %451 = vmatpush1.xpose.msra.mxu0 0.0
    %452 = vmatprep.subr.mxu0 0.0
    %453 = vmatpush1.xpose.msra.mxu0 0.0
    %454 = vmatprep.subr.mxu0 0.0
    %455 = vmatpush1.xpose.msra.mxu0 0.0
    %456 = vmatprep.subr.mxu0 0.0
    %457 = vmatpush1.xpose.msra.mxu0 0.0
    %458 = vmatprep.subr.mxu0 0.0
    %459 = vmatpush1.xpose.msra.mxu0 0.0
    %460 = vmatprep.subr.mxu0 0.0
    %461 = vmatpush1.xpose.msra.mxu0 0.0
    %462 = vmatprep.subr.mxu0 0.0
    %463 = vmatpush1.xpose.msra.mxu0 0.0
    %464 = vmatprep.subr.mxu0 0.0
    %465 = vmatpush1.xpose.msra.mxu0 0.0
    %466 = vmatprep.subr.mxu0 0.0
    %467 = vmatpush1.xpose.msra.mxu0 0.0
    %468 = vmatprep.subr.mxu0 0.0
    %469 = vmatpush1.xpose.msra.mxu0 0.0
    %470 = vmatprep.subr.mxu0 0.0
    %471 = vmatpush1.xpose.msra.mxu0 0.0
    %472 = vmatprep.subr.mxu0 0.0
    %473 = vmatpush1.xpose.msra.mxu0 0.0
    %474 = vmatprep.subr.mxu0 0.0
    %475 = vmatpush1.xpose.msra.mxu0 0.0
    %476 = vmatprep.subr.mxu0 0.0
    %477 = vmatpush1.xpose.msra.mxu0 0.0
    %478 = vmatprep.subr.mxu0 0.0
    %479 = vmatpush1.xpose.msra.mxu0 0.0
    %480 = vmatprep.subr.mxu0 0.0
    %481 = vmatpush1.xpose.msra.mxu0 0.0
    %482 = vmatprep.subr.mxu0 0.0
    %483 = vmatpush1.xpose.msra.mxu0 0.0
    %484 = vmatprep.subr.mxu0 0.0
    %485 = vmatpush1.xpose.msra.mxu0 0.0
    %486 = vmatprep.subr.mxu0 0.0
    %487 = vmatpush1.xpose.msra.mxu0 0.0
    %488 = vmatprep.subr.mxu0 0.0
    %489 = vmatpush1.xpose.msra.mxu0 0.0
    %490 = vmatprep.subr.mxu0 0.0
    %491 = vmatpush1.xpose.msra.mxu0 0.0
    %492 = vmatprep.subr.mxu0 0.0
    %493 = vmatpush1.xpose.msra.mxu0 0.0
    %494 = vmatprep.subr.mxu0 0.0
    %495 = vmatpush1.xpose.msra.mxu0 0.0
    %496 = vmatprep.subr.mxu0 0.0
    %497 = vmatpush1.xpose.msra.mxu0 0.0
    %498 = vmatprep.mubr.f32.mxu0 0.0
    %499 = vmatmul.mubr.f32.gmra.mrb[0].mxu0 %v145
    %v500 = vpop.f32.mrb[0].mxu0
    %v501 = vadd.f32 0.0, %v500
    %v502 = vpop.f32.mrb[0].mxu0
    %503 = vmatprep.mubr.f32.mxu0 0.0
    %504 = vmatmul.mubr.f32.gmra.mrb[0].mxu0 %v146
    %v505 = vpop.f32.mrb[0].mxu0
    %v506 = vadd.f32 0.0, %v505
    %v507 = vpop.f32.mrb[0].mxu0
    %508 = vmatprep.mubr.f32.mxu0 0.0
    %509 = vmatmul.mubr.f32.gmra.mrb[0].mxu0 %v147
    %v510 = vpop.f32.mrb[0].mxu0
    %v511 = vadd.f32 0.0, %v510
    %v512 = vpop.f32.mrb[0].mxu0
    %513 = vmatprep.mubr.f32.mxu0 0.0
    %514 = vmatmul.mubr.f32.gmra.mrb[0].mxu0 %v148
    %v515 = vpop.f32.mrb[0].mxu0
    %v516 = vadd.f32 0.0, %v515
    %v517 = vpop.f32.mrb[0].mxu0
    %518 = vmatprep.mubr.f32.mxu0 0.0
    %519 = vmatmul.mubr.f32.gmra.mrb[0].mxu0 %v149
    %v520 = vpop.f32.mrb[0].mxu0
    %v521 = vadd.f32 0.0, %v520
    %v522 = vpop.f32.mrb[0].mxu0
    %523 = vmatprep.mubr.f32.mxu0 0.0
    %524 = vmatmul.mubr.f32.gmra.mrb[0].mxu0 %v150
    %v525 = vpop.f32.mrb[0].mxu0
    %v526 = vadd.f32 0.0, %v525
    %v527 = vpop.f32.mrb[0].mxu0
    %528 = vmatprep.mubr.f32.mxu0 0.0
    %529 = vmatmul.mubr.f32.gmra.mrb[0].mxu0 %v151
    %v530 = vpop.f32.mrb[0].mxu0
    %v531 = vadd.f32 0.0, %v530
    %v532 = vpop.f32.mrb[0].mxu0
    %533 = vmatprep.mubr.f32.mxu0 0.0
    %534 = vmatmul.mubr.f32.gmra.mrb[0].mxu0 %v152
    %v535 = vpop.f32.mrb[0].mxu0
    %v536 = vadd.f32 0.0, %v535
    %v537 = vpop.f32.mrb[0].mxu0
    %538 = vdwg.mxu0
    %539 = vmatprep.subr.mxu0 0.0
    %540 = vmatpush1.xpose.msra.mxu0 %v217
    %541 = vmatprep.subr.mxu0 0.0
    %542 = vmatpush1.xpose.msra.mxu0 %v218
    %543 = vmatprep.subr.mxu0 0.0
    %544 = vmatpush1.xpose.msra.mxu0 %v219
    %545 = vmatprep.subr.mxu0 0.0
    %546 = vmatpush1.xpose.msra.mxu0 %v220
    %547 = vmatprep.subr.mxu0 0.0
    %548 = vmatpush1.xpose.msra.mxu0 %v221
    %549 = vmatprep.subr.mxu0 0.0
    %550 = vmatpush1.xpose.msra.mxu0 %v222
    %551 = vmatprep.subr.mxu0 0.0
    %552 = vmatpush1.xpose.msra.mxu0 %v223
    %553 = vmatprep.subr.mxu0 0.0
    %554 = vmatpush1.xpose.msra.mxu0 %v224
    %555 = vmatprep.subr.mxu0 0.0
    %556 = vmatpush1.xpose.msra.mxu0 0.0
    %557 = vmatprep.subr.mxu0 0.0
    %558 = vmatpush1.xpose.msra.mxu0 0.0
    %559 = vmatprep.subr.mxu0 0.0
    %560 = vmatpush1.xpose.msra.mxu0 0.0
    %561 = vmatprep.subr.mxu0 0.0
    %562 = vmatpush1.xpose.msra.mxu0 0.0
    %563 = vmatprep.subr.mxu0 0.0
    %564 = vmatpush1.xpose.msra.mxu0 0.0
    %565 = vmatprep.subr.mxu0 0.0
    %566 = vmatpush1.xpose.msra.mxu0 0.0
    %567 = vmatprep.subr.mxu0 0.0
    %568 = vmatpush1.xpose.msra.mxu0 0.0
    %569 = vmatprep.subr.mxu0 0.0
    %570 = vmatpush1.xpose.msra.mxu0 0.0
    %571 = vmatprep.subr.mxu0 0.0
    %572 = vmatpush1.xpose.msra.mxu0 0.0
    %573 = vmatprep.subr.mxu0 0.0
    %574 = vmatpush1.xpose.msra.mxu0 0.0
    %575 = vmatprep.subr.mxu0 0.0
    %576 = vmatpush1.xpose.msra.mxu0 0.0
    %577 = vmatprep.subr.mxu0 0.0
    %578 = vmatpush1.xpose.msra.mxu0 0.0
    %579 = vmatprep.subr.mxu0 0.0
    %580 = vmatpush1.xpose.msra.mxu0 0.0
    %581 = vmatprep.subr.mxu0 0.0
    %582 = vmatpush1.xpose.msra.mxu0 0.0
    %583 = vmatprep.subr.mxu0 0.0
    %584 = vmatpush1.xpose.msra.mxu0 0.0
    %585 = vmatprep.subr.mxu0 0.0
    %586 = vmatpush1.xpose.msra.mxu0 0.0
    %587 = vmatprep.subr.mxu0 0.0
    %588 = vmatpush1.xpose.msra.mxu0 0.0
    %589 = vmatprep.subr.mxu0 0.0
    %590 = vmatpush1.xpose.msra.mxu0 0.0
    %591 = vmatprep.subr.mxu0 0.0
    %592 = vmatpush1.xpose.msra.mxu0 0.0
    %593 = vmatprep.subr.mxu0 0.0
    %594 = vmatpush1.xpose.msra.mxu0 0.0
    %595 = vmatprep.subr.mxu0 0.0
    %596 = vmatpush1.xpose.msra.mxu0 0.0
    %597 = vmatprep.subr.mxu0 0.0
    %598 = vmatpush1.xpose.msra.mxu0 0.0
    %599 = vmatprep.subr.mxu0 0.0
    %600 = vmatpush1.xpose.msra.mxu0 0.0
    %601 = vmatprep.subr.mxu0 0.0
    %602 = vmatpush1.xpose.msra.mxu0 0.0
    %603 = vmatprep.mubr.f32.mxu0 0.0
    %604 = vmatmul.mubr.f32.gmra.mrb[0].mxu0 %v153
    %v605 = vpop.f32.mrb[0].mxu0
    %v606 = vadd.f32 0.0, %v605
    %v607 = vpop.f32.mrb[0].mxu0
    %608 = vmatprep.mubr.f32.mxu0 0.0
    %609 = vmatmul.mubr.f32.gmra.mrb[0].mxu0 %v154
    %v610 = vpop.f32.mrb[0].mxu0
    %v611 = vadd.f32 0.0, %v610
    %v612 = vpop.f32.mrb[0].mxu0
    %613 = vmatprep.mubr.f32.mxu0 0.0
    %614 = vmatmul.mubr.f32.gmra.mrb[0].mxu0 %v155
    %v615 = vpop.f32.mrb[0].mxu0
    %v616 = vadd.f32 0.0, %v615
    %v617 = vpop.f32.mrb[0].mxu0
    %618 = vmatprep.mubr.f32.mxu0 0.0
    %619 = vmatmul.mubr.f32.gmra.mrb[0].mxu0 %v156
    %v620 = vpop.f32.mrb[0].mxu0
    %v621 = vadd.f32 0.0, %v620
    %v622 = vpop.f32.mrb[0].mxu0
    %623 = vmatprep.mubr.f32.mxu0 0.0
    %624 = vmatmul.mubr.f32.gmra.mrb[0].mxu0 %v157
    %v625 = vpop.f32.mrb[0].mxu0
    %v626 = vadd.f32 0.0, %v625
    %v627 = vpop.f32.mrb[0].mxu0
    %628 = vmatprep.mubr.f32.mxu0 0.0
    %629 = vmatmul.mubr.f32.gmra.mrb[0].mxu0 %v158
    %v630 = vpop.f32.mrb[0].mxu0
    %v631 = vadd.f32 0.0, %v630
    %v632 = vpop.f32.mrb[0].mxu0
    %633 = vmatprep.mubr.f32.mxu0 0.0
    %634 = vmatmul.mubr.f32.gmra.mrb[0].mxu0 %v159
    %v635 = vpop.f32.mrb[0].mxu0
    %v636 = vadd.f32 0.0, %v635
    %v637 = vpop.f32.mrb[0].mxu0
    %638 = vmatprep.mubr.f32.mxu0 0.0
    %639 = vmatmul.mubr.f32.gmra.mrb[0].mxu0 %v160
    %v640 = vpop.f32.mrb[0].mxu0
    %v641 = vadd.f32 0.0, %v640
    %v642 = vpop.f32.mrb[0].mxu0
    %643 = vdwg.mxu0
    %644 = vmatprep.subr.mxu0 0.0
    %645 = vmatpush1.xpose.msra.mxu0 %v225
    %646 = vmatprep.subr.mxu0 0.0
    %647 = vmatpush1.xpose.msra.mxu0 %v226
    %648 = vmatprep.subr.mxu0 0.0
    %649 = vmatpush1.xpose.msra.mxu0 %v227
    %650 = vmatprep.subr.mxu0 0.0
    %651 = vmatpush1.xpose.msra.mxu0 %v228
    %652 = vmatprep.subr.mxu0 0.0
    %653 = vmatpush1.xpose.msra.mxu0 %v229
    %654 = vmatprep.subr.mxu0 0.0
    %655 = vmatpush1.xpose.msra.mxu0 %v230
    %656 = vmatprep.subr.mxu0 0.0
    %657 = vmatpush1.xpose.msra.mxu0 %v231
    %658 = vmatprep.subr.mxu0 0.0
    %659 = vmatpush1.xpose.msra.mxu0 %v232
    %660 = vmatprep.subr.mxu0 0.0
    %661 = vmatpush1.xpose.msra.mxu0 0.0
    %662 = vmatprep.subr.mxu0 0.0
    %663 = vmatpush1.xpose.msra.mxu0 0.0
    %664 = vmatprep.subr.mxu0 0.0
    %665 = vmatpush1.xpose.msra.mxu0 0.0
    %666 = vmatprep.subr.mxu0 0.0
    %667 = vmatpush1.xpose.msra.mxu0 0.0
    %668 = vmatprep.subr.mxu0 0.0
    %669 = vmatpush1.xpose.msra.mxu0 0.0
    %670 = vmatprep.subr.mxu0 0.0
    %671 = vmatpush1.xpose.msra.mxu0 0.0
    %672 = vmatprep.subr.mxu0 0.0
    %673 = vmatpush1.xpose.msra.mxu0 0.0
    %674 = vmatprep.subr.mxu0 0.0
    %675 = vmatpush1.xpose.msra.mxu0 0.0
    %676 = vmatprep.subr.mxu0 0.0
    %677 = vmatpush1.xpose.msra.mxu0 0.0
    %678 = vmatprep.subr.mxu0 0.0
    %679 = vmatpush1.xpose.msra.mxu0 0.0
    %680 = vmatprep.subr.mxu0 0.0
    %681 = vmatpush1.xpose.msra.mxu0 0.0
    %682 = vmatprep.subr.mxu0 0.0
    %683 = vmatpush1.xpose.msra.mxu0 0.0
    %684 = vmatprep.subr.mxu0 0.0
    %685 = vmatpush1.xpose.msra.mxu0 0.0
    %686 = vmatprep.subr.mxu0 0.0
    %687 = vmatpush1.xpose.msra.mxu0 0.0
    %688 = vmatprep.subr.mxu0 0.0
    %689 = vmatpush1.xpose.msra.mxu0 0.0
    %690 = vmatprep.subr.mxu0 0.0
    %691 = vmatpush1.xpose.msra.mxu0 0.0
    %692 = vmatprep.subr.mxu0 0.0
    %693 = vmatpush1.xpose.msra.mxu0 0.0
    %694 = vmatprep.subr.mxu0 0.0
    %695 = vmatpush1.xpose.msra.mxu0 0.0
    %696 = vmatprep.subr.mxu0 0.0
    %697 = vmatpush1.xpose.msra.mxu0 0.0
    %698 = vmatprep.subr.mxu0 0.0
    %699 = vmatpush1.xpose.msra.mxu0 0.0
    %700 = vmatprep.subr.mxu0 0.0
    %701 = vmatpush1.xpose.msra.mxu0 0.0
    %702 = vmatprep.subr.mxu0 0.0
    %703 = vmatpush1.xpose.msra.mxu0 0.0
    %704 = vmatprep.subr.mxu0 0.0
    %705 = vmatpush1.xpose.msra.mxu0 0.0
    %706 = vmatprep.subr.mxu0 0.0
    %707 = vmatpush1.xpose.msra.mxu0 0.0
    %708 = vmatprep.mubr.f32.mxu0 0.0
    %709 = vmatmul.mubr.f32.gmra.mrb[0].mxu0 %v161
    %v710 = vpop.f32.mrb[0].mxu0
    %v711 = vadd.f32 0.0, %v710
    %v712 = vpop.f32.mrb[0].mxu0
    %713 = vmatprep.mubr.f32.mxu0 0.0
    %714 = vmatmul.mubr.f32.gmra.mrb[0].mxu0 %v162
    %v715 = vpop.f32.mrb[0].mxu0
    %v716 = vadd.f32 0.0, %v715
    %v717 = vpop.f32.mrb[0].mxu0
    %718 = vmatprep.mubr.f32.mxu0 0.0
    %719 = vmatmul.mubr.f32.gmra.mrb[0].mxu0 %v163
    %v720 = vpop.f32.mrb[0].mxu0
    %v721 = vadd.f32 0.0, %v720
    %v722 = vpop.f32.mrb[0].mxu0
    %723 = vmatprep.mubr.f32.mxu0 0.0
    %724 = vmatmul.mubr.f32.gmra.mrb[0].mxu0 %v164
    %v725 = vpop.f32.mrb[0].mxu0
    %v726 = vadd.f32 0.0, %v725
    %v727 = vpop.f32.mrb[0].mxu0
    %728 = vmatprep.mubr.f32.mxu0 0.0
    %729 = vmatmul.mubr.f32.gmra.mrb[0].mxu0 %v165
    %v730 = vpop.f32.mrb[0].mxu0
    %v731 = vadd.f32 0.0, %v730
    %v732 = vpop.f32.mrb[0].mxu0
    %733 = vmatprep.mubr.f32.mxu0 0.0
    %734 = vmatmul.mubr.f32.gmra.mrb[0].mxu0 %v166
    %v735 = vpop.f32.mrb[0].mxu0
    %v736 = vadd.f32 0.0, %v735
    %v737 = vpop.f32.mrb[0].mxu0
    %738 = vmatprep.mubr.f32.mxu0 0.0
    %739 = vmatmul.mubr.f32.gmra.mrb[0].mxu0 %v167
    %v740 = vpop.f32.mrb[0].mxu0
    %v741 = vadd.f32 0.0, %v740
    %v742 = vpop.f32.mrb[0].mxu0
    %743 = vmatprep.mubr.f32.mxu0 0.0
    %744 = vmatmul.mubr.f32.gmra.mrb[0].mxu0 %v168
    %v745 = vpop.f32.mrb[0].mxu0
    %v746 = vadd.f32 0.0, %v745
    %v747 = vpop.f32.mrb[0].mxu0
    %748 = vdwg.mxu0
    %749 = vmatprep.subr.mxu0 0.0
    %750 = vmatpush1.xpose.msra.mxu0 %v233
    %751 = vmatprep.subr.mxu0 0.0
    %752 = vmatpush1.xpose.msra.mxu0 %v234
    %753 = vmatprep.subr.mxu0 0.0
    %754 = vmatpush1.xpose.msra.mxu0 %v235
    %755 = vmatprep.subr.mxu0 0.0
    %756 = vmatpush1.xpose.msra.mxu0 %v236
    %757 = vmatprep.subr.mxu0 0.0
    %758 = vmatpush1.xpose.msra.mxu0 %v237
    %759 = vmatprep.subr.mxu0 0.0
    %760 = vmatpush1.xpose.msra.mxu0 %v238
    %761 = vmatprep.subr.mxu0 0.0
    %762 = vmatpush1.xpose.msra.mxu0 %v239
    %763 = vmatprep.subr.mxu0 0.0
    %764 = vmatpush1.xpose.msra.mxu0 %v240
    %765 = vmatprep.subr.mxu0 0.0
    %766 = vmatpush1.xpose.msra.mxu0 0.0
    %767 = vmatprep.subr.mxu0 0.0
    %768 = vmatpush1.xpose.msra.mxu0 0.0
    %769 = vmatprep.subr.mxu0 0.0
    %770 = vmatpush1.xpose.msra.mxu0 0.0
    %771 = vmatprep.subr.mxu0 0.0
    %772 = vmatpush1.xpose.msra.mxu0 0.0
    %773 = vmatprep.subr.mxu0 0.0
    %774 = vmatpush1.xpose.msra.mxu0 0.0
    %775 = vmatprep.subr.mxu0 0.0
    %776 = vmatpush1.xpose.msra.mxu0 0.0
    %777 = vmatprep.subr.mxu0 0.0
    %778 = vmatpush1.xpose.msra.mxu0 0.0
    %779 = vmatprep.subr.mxu0 0.0
    %780 = vmatpush1.xpose.msra.mxu0 0.0
    %781 = vmatprep.subr.mxu0 0.0
    %782 = vmatpush1.xpose.msra.mxu0 0.0
    %783 = vmatprep.subr.mxu0 0.0
    %784 = vmatpush1.xpose.msra.mxu0 0.0
    %785 = vmatprep.subr.mxu0 0.0
    %786 = vmatpush1.xpose.msra.mxu0 0.0
    %787 = vmatprep.subr.mxu0 0.0
    %788 = vmatpush1.xpose.msra.mxu0 0.0
    %789 = vmatprep.subr.mxu0 0.0
    %790 = vmatpush1.xpose.msra.mxu0 0.0
    %791 = vmatprep.subr.mxu0 0.0
    %792 = vmatpush1.xpose.msra.mxu0 0.0
    %793 = vmatprep.subr.mxu0 0.0
    %794 = vmatpush1.xpose.msra.mxu0 0.0
    %795 = vmatprep.subr.mxu0 0.0
    %796 = vmatpush1.xpose.msra.mxu0 0.0
    %797 = vmatprep.subr.mxu0 0.0
    %798 = vmatpush1.xpose.msra.mxu0 0.0
    %799 = vmatprep.subr.mxu0 0.0
    %800 = vmatpush1.xpose.msra.mxu0 0.0
    %801 = vmatprep.subr.mxu0 0.0
    %802 = vmatpush1.xpose.msra.mxu0 0.0
    %803 = vmatprep.subr.mxu0 0.0
    %804 = vmatpush1.xpose.msra.mxu0 0.0
    %805 = vmatprep.subr.mxu0 0.0
    %806 = vmatpush1.xpose.msra.mxu0 0.0
    %807 = vmatprep.subr.mxu0 0.0
    %808 = vmatpush1.xpose.msra.mxu0 0.0
    %809 = vmatprep.subr.mxu0 0.0
    %810 = vmatpush1.xpose.msra.mxu0 0.0
    %811 = vmatprep.subr.mxu0 0.0
    %812 = vmatpush1.xpose.msra.mxu0 0.0
    %813 = vmatprep.mubr.f32.mxu0 0.0
    %814 = vmatmul.mubr.f32.gmra.mrb[0].mxu0 %v169
    %v815 = vpop.f32.mrb[0].mxu0
    %v816 = vadd.f32 0.0, %v815
    %v817 = vpop.f32.mrb[0].mxu0
    %818 = vmatprep.mubr.f32.mxu0 0.0
    %819 = vmatmul.mubr.f32.gmra.mrb[0].mxu0 %v170
    %v820 = vpop.f32.mrb[0].mxu0
    %v821 = vadd.f32 0.0, %v820
    %v822 = vpop.f32.mrb[0].mxu0
    %823 = vmatprep.mubr.f32.mxu0 0.0
    %824 = vmatmul.mubr.f32.gmra.mrb[0].mxu0 %v171
    %v825 = vpop.f32.mrb[0].mxu0
    %v826 = vadd.f32 0.0, %v825
    %v827 = vpop.f32.mrb[0].mxu0
    %828 = vmatprep.mubr.f32.mxu0 0.0
    %829 = vmatmul.mubr.f32.gmra.mrb[0].mxu0 %v172
    %v830 = vpop.f32.mrb[0].mxu0
    %v831 = vadd.f32 0.0, %v830
    %v832 = vpop.f32.mrb[0].mxu0
    %833 = vmatprep.mubr.f32.mxu0 0.0
    %834 = vmatmul.mubr.f32.gmra.mrb[0].mxu0 %v173
    %v835 = vpop.f32.mrb[0].mxu0
    %v836 = vadd.f32 0.0, %v835
    %v837 = vpop.f32.mrb[0].mxu0
    %838 = vmatprep.mubr.f32.mxu0 0.0
    %839 = vmatmul.mubr.f32.gmra.mrb[0].mxu0 %v174
    %v840 = vpop.f32.mrb[0].mxu0
    %v841 = vadd.f32 0.0, %v840
    %v842 = vpop.f32.mrb[0].mxu0
    %843 = vmatprep.mubr.f32.mxu0 0.0
    %844 = vmatmul.mubr.f32.gmra.mrb[0].mxu0 %v175
    %v845 = vpop.f32.mrb[0].mxu0
    %v846 = vadd.f32 0.0, %v845
    %v847 = vpop.f32.mrb[0].mxu0
    %848 = vmatprep.mubr.f32.mxu0 0.0
    %849 = vmatmul.mubr.f32.gmra.mrb[0].mxu0 %v176
    %v850 = vpop.f32.mrb[0].mxu0
    %v851 = vadd.f32 0.0, %v850
    %v852 = vpop.f32.mrb[0].mxu0
    %853 = vdwg.mxu0
    %854 = vmatprep.subr.mxu0 0.0
    %855 = vmatpush1.xpose.msra.mxu0 %v241
    %856 = vmatprep.subr.mxu0 0.0
    %857 = vmatpush1.xpose.msra.mxu0 %v242
    %858 = vmatprep.subr.mxu0 0.0
    %859 = vmatpush1.xpose.msra.mxu0 %v243
    %860 = vmatprep.subr.mxu0 0.0
    %861 = vmatpush1.xpose.msra.mxu0 %v244
    %862 = vmatprep.subr.mxu0 0.0
    %863 = vmatpush1.xpose.msra.mxu0 %v245
    %864 = vmatprep.subr.mxu0 0.0
    %865 = vmatpush1.xpose.msra.mxu0 %v246
    %866 = vmatprep.subr.mxu0 0.0
    %867 = vmatpush1.xpose.msra.mxu0 %v247
    %868 = vmatprep.subr.mxu0 0.0
    %869 = vmatpush1.xpose.msra.mxu0 %v248
    %870 = vmatprep.subr.mxu0 0.0
    %871 = vmatpush1.xpose.msra.mxu0 0.0
    %872 = vmatprep.subr.mxu0 0.0
    %873 = vmatpush1.xpose.msra.mxu0 0.0
    %874 = vmatprep.subr.mxu0 0.0
    %875 = vmatpush1.xpose.msra.mxu0 0.0
    %876 = vmatprep.subr.mxu0 0.0
    %877 = vmatpush1.xpose.msra.mxu0 0.0
    %878 = vmatprep.subr.mxu0 0.0
    %879 = vmatpush1.xpose.msra.mxu0 0.0
    %880 = vmatprep.subr.mxu0 0.0
    %881 = vmatpush1.xpose.msra.mxu0 0.0
    %882 = vmatprep.subr.mxu0 0.0
    %883 = vmatpush1.xpose.msra.mxu0 0.0
    %884 = vmatprep.subr.mxu0 0.0
    %885 = vmatpush1.xpose.msra.mxu0 0.0
    %886 = vmatprep.subr.mxu0 0.0
    %887 = vmatpush1.xpose.msra.mxu0 0.0
    %888 = vmatprep.subr.mxu0 0.0
    %889 = vmatpush1.xpose.msra.mxu0 0.0
    %890 = vmatprep.subr.mxu0 0.0
    %891 = vmatpush1.xpose.msra.mxu0 0.0
    %892 = vmatprep.subr.mxu0 0.0
    %893 = vmatpush1.xpose.msra.mxu0 0.0
    %894 = vmatprep.subr.mxu0 0.0
    %895 = vmatpush1.xpose.msra.mxu0 0.0
    %896 = vmatprep.subr.mxu0 0.0
    %897 = vmatpush1.xpose.msra.mxu0 0.0
    %898 = vmatprep.subr.mxu0 0.0
    %899 = vmatpush1.xpose.msra.mxu0 0.0
    %900 = vmatprep.subr.mxu0 0.0
    %901 = vmatpush1.xpose.msra.mxu0 0.0
    %902 = vmatprep.subr.mxu0 0.0
    %903 = vmatpush1.xpose.msra.mxu0 0.0
    %904 = vmatprep.subr.mxu0 0.0
    %905 = vmatpush1.xpose.msra.mxu0 0.0
    %906 = vmatprep.subr.mxu0 0.0
    %907 = vmatpush1.xpose.msra.mxu0 0.0
    %908 = vmatprep.subr.mxu0 0.0
    %909 = vmatpush1.xpose.msra.mxu0 0.0
    %910 = vmatprep.subr.mxu0 0.0
    %911 = vmatpush1.xpose.msra.mxu0 0.0
    %912 = vmatprep.subr.mxu0 0.0
    %913 = vmatpush1.xpose.msra.mxu0 0.0
    %914 = vmatprep.subr.mxu0 0.0
    %915 = vmatpush1.xpose.msra.mxu0 0.0
    %916 = vmatprep.subr.mxu0 0.0
    %917 = vmatpush1.xpose.msra.mxu0 0.0
    %918 = vmatprep.mubr.f32.mxu0 0.0
    %919 = vmatmul.mubr.f32.gmra.mrb[0].mxu0 %v177
    %v920 = vpop.f32.mrb[0].mxu0
    %v921 = vadd.f32 0.0, %v920
    %v922 = vpop.f32.mrb[0].mxu0
    %923 = vmatprep.mubr.f32.mxu0 0.0
    %924 = vmatmul.mubr.f32.gmra.mrb[0].mxu0 %v178
    %v925 = vpop.f32.mrb[0].mxu0
    %v926 = vadd.f32 0.0, %v925
    %v927 = vpop.f32.mrb[0].mxu0
    %928 = vmatprep.mubr.f32.mxu0 0.0
    %929 = vmatmul.mubr.f32.gmra.mrb[0].mxu0 %v179
    %v930 = vpop.f32.mrb[0].mxu0
    %v931 = vadd.f32 0.0, %v930
    %v932 = vpop.f32.mrb[0].mxu0
    %933 = vmatprep.mubr.f32.mxu0 0.0
    %934 = vmatmul.mubr.f32.gmra.mrb[0].mxu0 %v180
    %v935 = vpop.f32.mrb[0].mxu0
    %v936 = vadd.f32 0.0, %v935
    %v937 = vpop.f32.mrb[0].mxu0
    %938 = vmatprep.mubr.f32.mxu0 0.0
    %939 = vmatmul.mubr.f32.gmra.mrb[0].mxu0 %v181
    %v940 = vpop.f32.mrb[0].mxu0
    %v941 = vadd.f32 0.0, %v940
    %v942 = vpop.f32.mrb[0].mxu0
    %943 = vmatprep.mubr.f32.mxu0 0.0
    %944 = vmatmul.mubr.f32.gmra.mrb[0].mxu0 %v182
    %v945 = vpop.f32.mrb[0].mxu0
    %v946 = vadd.f32 0.0, %v945
    %v947 = vpop.f32.mrb[0].mxu0
    %948 = vmatprep.mubr.f32.mxu0 0.0
    %949 = vmatmul.mubr.f32.gmra.mrb[0].mxu0 %v183
    %v950 = vpop.f32.mrb[0].mxu0
    %v951 = vadd.f32 0.0, %v950
    %v952 = vpop.f32.mrb[0].mxu0
    %953 = vmatprep.mubr.f32.mxu0 0.0
    %954 = vmatmul.mubr.f32.gmra.mrb[0].mxu0 %v184
    %v955 = vpop.f32.mrb[0].mxu0
    %v956 = vadd.f32 0.0, %v955
    %v957 = vpop.f32.mrb[0].mxu0
    %958 = vdwg.mxu0
    %959 = vmatprep.subr.mxu0 0.0
    %960 = vmatpush1.xpose.msra.mxu0 %v249
    %961 = vmatprep.subr.mxu0 0.0
    %962 = vmatpush1.xpose.msra.mxu0 %v250
    %963 = vmatprep.subr.mxu0 0.0
    %964 = vmatpush1.xpose.msra.mxu0 %v251
    %965 = vmatprep.subr.mxu0 0.0
    %966 = vmatpush1.xpose.msra.mxu0 %v252
    %967 = vmatprep.subr.mxu0 0.0
    %968 = vmatpush1.xpose.msra.mxu0 %v253
    %969 = vmatprep.subr.mxu0 0.0
    %970 = vmatpush1.xpose.msra.mxu0 %v254
    %971 = vmatprep.subr.mxu0 0.0
    %972 = vmatpush1.xpose.msra.mxu0 %v255
    %973 = vmatprep.subr.mxu0 0.0
    %974 = vmatpush1.xpose.msra.mxu0 %v256
    %975 = vmatprep.subr.mxu0 0.0
    %976 = vmatpush1.xpose.msra.mxu0 0.0
    %977 = vmatprep.subr.mxu0 0.0
    %978 = vmatpush1.xpose.msra.mxu0 0.0
    %979 = vmatprep.subr.mxu0 0.0
    %980 = vmatpush1.xpose.msra.mxu0 0.0
    %981 = vmatprep.subr.mxu0 0.0
    %982 = vmatpush1.xpose.msra.mxu0 0.0
    %983 = vmatprep.subr.mxu0 0.0
    %984 = vmatpush1.xpose.msra.mxu0 0.0
    %985 = vmatprep.subr.mxu0 0.0
    %986 = vmatpush1.xpose.msra.mxu0 0.0
    %987 = vmatprep.subr.mxu0 0.0
    %988 = vmatpush1.xpose.msra.mxu0 0.0
    %989 = vmatprep.subr.mxu0 0.0
    %990 = vmatpush1.xpose.msra.mxu0 0.0
    %991 = vmatprep.subr.mxu0 0.0
    %992 = vmatpush1.xpose.msra.mxu0 0.0
    %993 = vmatprep.subr.mxu0 0.0
    %994 = vmatpush1.xpose.msra.mxu0 0.0
    %995 = vmatprep.subr.mxu0 0.0
    %996 = vmatpush1.xpose.msra.mxu0 0.0
    %997 = vmatprep.subr.mxu0 0.0
    %998 = vmatpush1.xpose.msra.mxu0 0.0
    %999 = vmatprep.subr.mxu0 0.0
    %1000 = vmatpush1.xpose.msra.mxu0 0.0
    %1001 = vmatprep.subr.mxu0 0.0
    %1002 = vmatpush1.xpose.msra.mxu0 0.0
    %1003 = vmatprep.subr.mxu0 0.0
    %1004 = vmatpush1.xpose.msra.mxu0 0.0
    %1005 = vmatprep.subr.mxu0 0.0
    %1006 = vmatpush1.xpose.msra.mxu0 0.0
    %1007 = vmatprep.subr.mxu0 0.0
    %1008 = vmatpush1.xpose.msra.mxu0 0.0
    %1009 = vmatprep.subr.mxu0 0.0
    %1010 = vmatpush1.xpose.msra.mxu0 0.0
    %1011 = vmatprep.subr.mxu0 0.0
    %1012 = vmatpush1.xpose.msra.mxu0 0.0
    %1013 = vmatprep.subr.mxu0 0.0
    %1014 = vmatpush1.xpose.msra.mxu0 0.0
    %1015 = vmatprep.subr.mxu0 0.0
    %1016 = vmatpush1.xpose.msra.mxu0 0.0
    %1017 = vmatprep.subr.mxu0 0.0
    %1018 = vmatpush1.xpose.msra.mxu0 0.0
    %1019 = vmatprep.subr.mxu0 0.0
    %1020 = vmatpush1.xpose.msra.mxu0 0.0
    %1021 = vmatprep.subr.mxu0 0.0
    %1022 = vmatpush1.xpose.msra.mxu0 0.0
    %1023 = vmatprep.mubr.f32.mxu0 0.0
    %1024 = vmatmul.mubr.f32.gmra.mrb[0].mxu0 %v185
    %v1025 = vpop.f32.mrb[0].mxu0
    %v1026 = vadd.f32 0.0, %v1025
    %v1027 = vpop.f32.mrb[0].mxu0
    %1028 = vmatprep.mubr.f32.mxu0 0.0
    %1029 = vmatmul.mubr.f32.gmra.mrb[0].mxu0 %v186
    %v1030 = vpop.f32.mrb[0].mxu0
    %v1031 = vadd.f32 0.0, %v1030
    %v1032 = vpop.f32.mrb[0].mxu0
    %1033 = vmatprep.mubr.f32.mxu0 0.0
    %1034 = vmatmul.mubr.f32.gmra.mrb[0].mxu0 %v187
    %v1035 = vpop.f32.mrb[0].mxu0
    %v1036 = vadd.f32 0.0, %v1035
    %v1037 = vpop.f32.mrb[0].mxu0
    %1038 = vmatprep.mubr.f32.mxu0 0.0
    %1039 = vmatmul.mubr.f32.gmra.mrb[0].mxu0 %v188
    %v1040 = vpop.f32.mrb[0].mxu0
    %v1041 = vadd.f32 0.0, %v1040
    %v1042 = vpop.f32.mrb[0].mxu0
    %1043 = vmatprep.mubr.f32.mxu0 0.0
    %1044 = vmatmul.mubr.f32.gmra.mrb[0].mxu0 %v189
    %v1045 = vpop.f32.mrb[0].mxu0
    %v1046 = vadd.f32 0.0, %v1045
    %v1047 = vpop.f32.mrb[0].mxu0
    %1048 = vmatprep.mubr.f32.mxu0 0.0
    %1049 = vmatmul.mubr.f32.gmra.mrb[0].mxu0 %v190
    %v1050 = vpop.f32.mrb[0].mxu0
    %v1051 = vadd.f32 0.0, %v1050
    %v1052 = vpop.f32.mrb[0].mxu0
    %1053 = vmatprep.mubr.f32.mxu0 0.0
    %1054 = vmatmul.mubr.f32.gmra.mrb[0].mxu0 %v191
    %v1055 = vpop.f32.mrb[0].mxu0
    %v1056 = vadd.f32 0.0, %v1055
    %v1057 = vpop.f32.mrb[0].mxu0
    %1058 = vmatprep.mubr.f32.mxu0 0.0
    %1059 = vmatmul.mubr.f32.gmra.mrb[0].mxu0 %v192
    %v1060 = vpop.f32.mrb[0].mxu0
    %v1061 = vadd.f32 0.0, %v1060
    %v1062 = vpop.f32.mrb[0].mxu0
    %1063 = vdwg.mxu0
    %1064 = vmatprep.subr.mxu0 0.0
    %1065 = vmatpush1.xpose.msra.mxu0 %v257
    %1066 = vmatprep.subr.mxu0 0.0
    %1067 = vmatpush1.xpose.msra.mxu0 %v258
    %1068 = vmatprep.subr.mxu0 0.0
    %1069 = vmatpush1.xpose.msra.mxu0 %v259
    %1070 = vmatprep.subr.mxu0 0.0
    %1071 = vmatpush1.xpose.msra.mxu0 %v260
    %1072 = vmatprep.subr.mxu0 0.0
    %1073 = vmatpush1.xpose.msra.mxu0 %v261
    %1074 = vmatprep.subr.mxu0 0.0
    %1075 = vmatpush1.xpose.msra.mxu0 %v262
    %1076 = vmatprep.subr.mxu0 0.0
    %1077 = vmatpush1.xpose.msra.mxu0 %v263
    %1078 = vmatprep.subr.mxu0 0.0
    %1079 = vmatpush1.xpose.msra.mxu0 %v264
    %1080 = vmatprep.subr.mxu0 0.0
    %1081 = vmatpush1.xpose.msra.mxu0 0.0
    %1082 = vmatprep.subr.mxu0 0.0
    %1083 = vmatpush1.xpose.msra.mxu0 0.0
    %1084 = vmatprep.subr.mxu0 0.0
    %1085 = vmatpush1.xpose.msra.mxu0 0.0
    %1086 = vmatprep.subr.mxu0 0.0
    %1087 = vmatpush1.xpose.msra.mxu0 0.0
    %1088 = vmatprep.subr.mxu0 0.0
    %1089 = vmatpush1.xpose.msra.mxu0 0.0
    %1090 = vmatprep.subr.mxu0 0.0
    %1091 = vmatpush1.xpose.msra.mxu0 0.0
    %1092 = vmatprep.subr.mxu0 0.0
    %1093 = vmatpush1.xpose.msra.mxu0 0.0
    %1094 = vmatprep.subr.mxu0 0.0
    %1095 = vmatpush1.xpose.msra.mxu0 0.0
    %1096 = vmatprep.subr.mxu0 0.0
    %1097 = vmatpush1.xpose.msra.mxu0 0.0
    %1098 = vmatprep.subr.mxu0 0.0
    %1099 = vmatpush1.xpose.msra.mxu0 0.0
    %1100 = vmatprep.subr.mxu0 0.0
    %1101 = vmatpush1.xpose.msra.mxu0 0.0
    %1102 = vmatprep.subr.mxu0 0.0
    %1103 = vmatpush1.xpose.msra.mxu0 0.0
    %1104 = vmatprep.subr.mxu0 0.0
    %1105 = vmatpush1.xpose.msra.mxu0 0.0
    %1106 = vmatprep.subr.mxu0 0.0
    %1107 = vmatpush1.xpose.msra.mxu0 0.0
    %1108 = vmatprep.subr.mxu0 0.0
    %1109 = vmatpush1.xpose.msra.mxu0 0.0
    %1110 = vmatprep.subr.mxu0 0.0
    %1111 = vmatpush1.xpose.msra.mxu0 0.0
    %1112 = vmatprep.subr.mxu0 0.0
    %1113 = vmatpush1.xpose.msra.mxu0 0.0
    %1114 = vmatprep.subr.mxu0 0.0
    %1115 = vmatpush1.xpose.msra.mxu0 0.0
    %1116 = vmatprep.subr.mxu0 0.0
    %1117 = vmatpush1.xpose.msra.mxu0 0.0
    %1118 = vmatprep.subr.mxu0 0.0
    %1119 = vmatpush1.xpose.msra.mxu0 0.0
    %1120 = vmatprep.subr.mxu0 0.0
    %1121 = vmatpush1.xpose.msra.mxu0 0.0
    %1122 = vmatprep.subr.mxu0 0.0
    %1123 = vmatpush1.xpose.msra.mxu0 0.0
    %1124 = vmatprep.subr.mxu0 0.0
    %1125 = vmatpush1.xpose.msra.mxu0 0.0
    %1126 = vmatprep.subr.mxu0 0.0
    %1127 = vmatpush1.xpose.msra.mxu0 0.0
    %1128 = vmatprep.mubr.f32.mxu0 0.0
    %1129 = vmatmul.mubr.f32.gmra.mrb[0].mxu0 %v193
    %v1130 = vpop.f32.mrb[0].mxu0
    %v1131 = vadd.f32 0.0, %v1130
    %v1132 = vpop.f32.mrb[0].mxu0
    %1133 = vmatprep.mubr.f32.mxu0 0.0
    %1134 = vmatmul.mubr.f32.gmra.mrb[0].mxu0 %v194
    %v1135 = vpop.f32.mrb[0].mxu0
    %v1136 = vadd.f32 0.0, %v1135
    %v1137 = vpop.f32.mrb[0].mxu0
    %1138 = vmatprep.mubr.f32.mxu0 0.0
    %1139 = vmatmul.mubr.f32.gmra.mrb[0].mxu0 %v195
    %v1140 = vpop.f32.mrb[0].mxu0
    %v1141 = vadd.f32 0.0, %v1140
    %v1142 = vpop.f32.mrb[0].mxu0
    %1143 = vmatprep.mubr.f32.mxu0 0.0
    %1144 = vmatmul.mubr.f32.gmra.mrb[0].mxu0 %v196
    %v1145 = vpop.f32.mrb[0].mxu0
    %v1146 = vadd.f32 0.0, %v1145
    %v1147 = vpop.f32.mrb[0].mxu0
    %1148 = vmatprep.mubr.f32.mxu0 0.0
    %1149 = vmatmul.mubr.f32.gmra.mrb[0].mxu0 %v197
    %v1150 = vpop.f32.mrb[0].mxu0
    %v1151 = vadd.f32 0.0, %v1150
    %v1152 = vpop.f32.mrb[0].mxu0
    %1153 = vmatprep.mubr.f32.mxu0 0.0
    %1154 = vmatmul.mubr.f32.gmra.mrb[0].mxu0 %v198
    %v1155 = vpop.f32.mrb[0].mxu0
    %v1156 = vadd.f32 0.0, %v1155
    %v1157 = vpop.f32.mrb[0].mxu0
    %1158 = vmatprep.mubr.f32.mxu0 0.0
    %1159 = vmatmul.mubr.f32.gmra.mrb[0].mxu0 %v199
    %v1160 = vpop.f32.mrb[0].mxu0
    %v1161 = vadd.f32 0.0, %v1160
    %v1162 = vpop.f32.mrb[0].mxu0
    %1163 = vmatprep.mubr.f32.mxu0 0.0
    %1164 = vmatmul.mubr.f32.gmra.mrb[0].mxu0 %v200
    %v1165 = vpop.f32.mrb[0].mxu0
    %v1166 = vadd.f32 0.0, %v1165
    %v1167 = vpop.f32.mrb[0].mxu0
    %1168 = vdwg.mxu0
    %vm1169 = vcmask 523264
    %v1170 = vsel %vm1169, %v396, -inf
    %1171 = vmax.xlane.f32.xlu0 %v1170
    %v1172 = vpop.xlane.xlu0 %1171
    %v1173 = vsel %vm1169, %v401, -inf
    %1174 = vmax.xlane.f32.xlu0 %v1173
    %v1175 = vpop.xlane.xlu0 %1174
    %v1176 = vsel %vm1169, %v406, -inf
    %1177 = vmax.xlane.f32.xlu0 %v1176
    %v1178 = vpop.xlane.xlu0 %1177
    %v1179 = vsel %vm1169, %v411, -inf
    %1180 = vmax.xlane.f32.xlu0 %v1179
    %v1181 = vpop.xlane.xlu0 %1180
    %v1182 = vsel %vm1169, %v416, -inf
    %1183 = vmax.xlane.f32.xlu0 %v1182
    %v1184 = vpop.xlane.xlu0 %1183
    %v1185 = vsel %vm1169, %v421, -inf
    %1186 = vmax.xlane.f32.xlu0 %v1185
    %v1187 = vpop.xlane.xlu0 %1186
    %v1188 = vsel %vm1169, %v426, -inf
    %1189 = vmax.xlane.f32.xlu0 %v1188
    %v1190 = vpop.xlane.xlu0 %1189
    %v1191 = vsel %vm1169, %v431, -inf
    %1192 = vmax.xlane.f32.xlu0 %v1191
    %v1193 = vpop.xlane.xlu0 %1192
    %v1194 = vsel %vm1169, %v501, -inf
    %1195 = vmax.xlane.f32.xlu0 %v1194
    %v1196 = vpop.xlane.xlu0 %1195
    %v1197 = vsel %vm1169, %v506, -inf
    %1198 = vmax.xlane.f32.xlu0 %v1197
    %v1199 = vpop.xlane.xlu0 %1198
    %v1200 = vsel %vm1169, %v511, -inf
    %1201 = vmax.xlane.f32.xlu0 %v1200
    %v1202 = vpop.xlane.xlu0 %1201
    %v1203 = vsel %vm1169, %v516, -inf
    %1204 = vmax.xlane.f32.xlu0 %v1203
    %v1205 = vpop.xlane.xlu0 %1204
    %v1206 = vsel %vm1169, %v521, -inf
    %1207 = vmax.xlane.f32.xlu0 %v1206
    %v1208 = vpop.xlane.xlu0 %1207
    %v1209 = vsel %vm1169, %v526, -inf
    %1210 = vmax.xlane.f32.xlu0 %v1209
    %v1211 = vpop.xlane.xlu0 %1210
    %v1212 = vsel %vm1169, %v531, -inf
    %1213 = vmax.xlane.f32.xlu0 %v1212
    %v1214 = vpop.xlane.xlu0 %1213
    %v1215 = vsel %vm1169, %v536, -inf
    %1216 = vmax.xlane.f32.xlu0 %v1215
    %v1217 = vpop.xlane.xlu0 %1216
    %v1218 = vsel %vm1169, %v606, -inf
    %1219 = vmax.xlane.f32.xlu0 %v1218
    %v1220 = vpop.xlane.xlu0 %1219
    %v1221 = vsel %vm1169, %v611, -inf
    %1222 = vmax.xlane.f32.xlu0 %v1221
    %v1223 = vpop.xlane.xlu0 %1222
    %v1224 = vsel %vm1169, %v616, -inf
    %1225 = vmax.xlane.f32.xlu0 %v1224
    %v1226 = vpop.xlane.xlu0 %1225
    %v1227 = vsel %vm1169, %v621, -inf
    %1228 = vmax.xlane.f32.xlu0 %v1227
    %v1229 = vpop.xlane.xlu0 %1228
    %v1230 = vsel %vm1169, %v626, -inf
    %1231 = vmax.xlane.f32.xlu0 %v1230
    %v1232 = vpop.xlane.xlu0 %1231
    %v1233 = vsel %vm1169, %v631, -inf
    %1234 = vmax.xlane.f32.xlu0 %v1233
    %v1235 = vpop.xlane.xlu0 %1234
    %v1236 = vsel %vm1169, %v636, -inf
    %1237 = vmax.xlane.f32.xlu0 %v1236
    %v1238 = vpop.xlane.xlu0 %1237
    %v1239 = vsel %vm1169, %v641, -inf
    %1240 = vmax.xlane.f32.xlu0 %v1239
    %v1241 = vpop.xlane.xlu0 %1240
    %v1242 = vsel %vm1169, %v711, -inf
    %1243 = vmax.xlane.f32.xlu0 %v1242
    %v1244 = vpop.xlane.xlu0 %1243
    %v1245 = vsel %vm1169, %v716, -inf
    %1246 = vmax.xlane.f32.xlu0 %v1245
    %v1247 = vpop.xlane.xlu0 %1246
    %v1248 = vsel %vm1169, %v721, -inf
    %1249 = vmax.xlane.f32.xlu0 %v1248
    %v1250 = vpop.xlane.xlu0 %1249
    %v1251 = vsel %vm1169, %v726, -inf
    %1252 = vmax.xlane.f32.xlu0 %v1251
    %v1253 = vpop.xlane.xlu0 %1252
    %v1254 = vsel %vm1169, %v731, -inf
    %1255 = vmax.xlane.f32.xlu0 %v1254
    %v1256 = vpop.xlane.xlu0 %1255
    %v1257 = vsel %vm1169, %v736, -inf
    %1258 = vmax.xlane.f32.xlu0 %v1257
    %v1259 = vpop.xlane.xlu0 %1258
    %v1260 = vsel %vm1169, %v741, -inf
    %1261 = vmax.xlane.f32.xlu0 %v1260
    %v1262 = vpop.xlane.xlu0 %1261
    %v1263 = vsel %vm1169, %v746, -inf
    %1264 = vmax.xlane.f32.xlu0 %v1263
    %v1265 = vpop.xlane.xlu0 %1264
    %v1266 = vsel %vm1169, %v816, -inf
    %1267 = vmax.xlane.f32.xlu0 %v1266
    %v1268 = vpop.xlane.xlu0 %1267
    %v1269 = vsel %vm1169, %v821, -inf
    %1270 = vmax.xlane.f32.xlu0 %v1269
    %v1271 = vpop.xlane.xlu0 %1270
    %v1272 = vsel %vm1169, %v826, -inf
    %1273 = vmax.xlane.f32.xlu0 %v1272
    %v1274 = vpop.xlane.xlu0 %1273
    %v1275 = vsel %vm1169, %v831, -inf
    %1276 = vmax.xlane.f32.xlu0 %v1275
    %v1277 = vpop.xlane.xlu0 %1276
    %v1278 = vsel %vm1169, %v836, -inf
    %1279 = vmax.xlane.f32.xlu0 %v1278
    %v1280 = vpop.xlane.xlu0 %1279
    %v1281 = vsel %vm1169, %v841, -inf
    %1282 = vmax.xlane.f32.xlu0 %v1281
    %v1283 = vpop.xlane.xlu0 %1282
    %v1284 = vsel %vm1169, %v846, -inf
    %1285 = vmax.xlane.f32.xlu0 %v1284
    %v1286 = vpop.xlane.xlu0 %1285
    %v1287 = vsel %vm1169, %v851, -inf
    %1288 = vmax.xlane.f32.xlu0 %v1287
    %v1289 = vpop.xlane.xlu0 %1288
    %v1290 = vsel %vm1169, %v921, -inf
    %1291 = vmax.xlane.f32.xlu0 %v1290
    %v1292 = vpop.xlane.xlu0 %1291
    %v1293 = vsel %vm1169, %v926, -inf
    %1294 = vmax.xlane.f32.xlu0 %v1293
    %v1295 = vpop.xlane.xlu0 %1294
    %v1296 = vsel %vm1169, %v931, -inf
    %1297 = vmax.xlane.f32.xlu0 %v1296
    %v1298 = vpop.xlane.xlu0 %1297
    %v1299 = vsel %vm1169, %v936, -inf
    %1300 = vmax.xlane.f32.xlu0 %v1299
    %v1301 = vpop.xlane.xlu0 %1300
    %v1302 = vsel %vm1169, %v941, -inf
    %1303 = vmax.xlane.f32.xlu0 %v1302
    %v1304 = vpop.xlane.xlu0 %1303
    %v1305 = vsel %vm1169, %v946, -inf
    %1306 = vmax.xlane.f32.xlu0 %v1305
    %v1307 = vpop.xlane.xlu0 %1306
    %v1308 = vsel %vm1169, %v951, -inf
    %1309 = vmax.xlane.f32.xlu0 %v1308
    %v1310 = vpop.xlane.xlu0 %1309
    %v1311 = vsel %vm1169, %v956, -inf
    %1312 = vmax.xlane.f32.xlu0 %v1311
    %v1313 = vpop.xlane.xlu0 %1312
    %v1314 = vsel %vm1169, %v1026, -inf
    %1315 = vmax.xlane.f32.xlu0 %v1314
    %v1316 = vpop.xlane.xlu0 %1315
    %v1317 = vsel %vm1169, %v1031, -inf
    %1318 = vmax.xlane.f32.xlu0 %v1317
    %v1319 = vpop.xlane.xlu0 %1318
    %v1320 = vsel %vm1169, %v1036, -inf
    %1321 = vmax.xlane.f32.xlu0 %v1320
    %v1322 = vpop.xlane.xlu0 %1321
    %v1323 = vsel %vm1169, %v1041, -inf
    %1324 = vmax.xlane.f32.xlu0 %v1323
    %v1325 = vpop.xlane.xlu0 %1324
    %v1326 = vsel %vm1169, %v1046, -inf
    %1327 = vmax.xlane.f32.xlu0 %v1326
    %v1328 = vpop.xlane.xlu0 %1327
    %v1329 = vsel %vm1169, %v1051, -inf
    %1330 = vmax.xlane.f32.xlu0 %v1329
    %v1331 = vpop.xlane.xlu0 %1330
    %v1332 = vsel %vm1169, %v1056, -inf
    %1333 = vmax.xlane.f32.xlu0 %v1332
    %v1334 = vpop.xlane.xlu0 %1333
    %v1335 = vsel %vm1169, %v1061, -inf
    %1336 = vmax.xlane.f32.xlu0 %v1335
    %v1337 = vpop.xlane.xlu0 %1336
    %v1338 = vsel %vm1169, %v1131, -inf
    %1339 = vmax.xlane.f32.xlu0 %v1338
    %v1340 = vpop.xlane.xlu0 %1339
    %v1341 = vsel %vm1169, %v1136, -inf
    %1342 = vmax.xlane.f32.xlu0 %v1341
    %v1343 = vpop.xlane.xlu0 %1342
    %v1344 = vsel %vm1169, %v1141, -inf
    %1345 = vmax.xlane.f32.xlu0 %v1344
    %v1346 = vpop.xlane.xlu0 %1345
    %v1347 = vsel %vm1169, %v1146, -inf
    %1348 = vmax.xlane.f32.xlu0 %v1347
    %v1349 = vpop.xlane.xlu0 %1348
    %v1350 = vsel %vm1169, %v1151, -inf
    %1351 = vmax.xlane.f32.xlu0 %v1350
    %v1352 = vpop.xlane.xlu0 %1351
    %v1353 = vsel %vm1169, %v1156, -inf
    %1354 = vmax.xlane.f32.xlu0 %v1353
    %v1355 = vpop.xlane.xlu0 %1354
    %v1356 = vsel %vm1169, %v1161, -inf
    %1357 = vmax.xlane.f32.xlu0 %v1356
    %v1358 = vpop.xlane.xlu0 %1357
    %v1359 = vsel %vm1169, %v1166, -inf
    %1360 = vmax.xlane.f32.xlu0 %v1359
    %v1361 = vpop.xlane.xlu0 %1360
    %v1362 = vsub.f32 %v396, %v1172
    %v1363 = vsub.f32 %v401, %v1175
    %v1364 = vsub.f32 %v406, %v1178
    %v1365 = vsub.f32 %v411, %v1181
    %v1366 = vsub.f32 %v416, %v1184
    %v1367 = vsub.f32 %v421, %v1187
    %v1368 = vsub.f32 %v426, %v1190
    %v1369 = vsub.f32 %v431, %v1193
    %v1370 = vsub.f32 %v501, %v1196
    %v1371 = vsub.f32 %v506, %v1199
    %v1372 = vsub.f32 %v511, %v1202
    %v1373 = vsub.f32 %v516, %v1205
    %v1374 = vsub.f32 %v521, %v1208
    %v1375 = vsub.f32 %v526, %v1211
    %v1376 = vsub.f32 %v531, %v1214
    %v1377 = vsub.f32 %v536, %v1217
    %v1378 = vsub.f32 %v606, %v1220
    %v1379 = vsub.f32 %v611, %v1223
    %v1380 = vsub.f32 %v616, %v1226
    %v1381 = vsub.f32 %v621, %v1229
    %v1382 = vsub.f32 %v626, %v1232
    %v1383 = vsub.f32 %v631, %v1235
    %v1384 = vsub.f32 %v636, %v1238
    %v1385 = vsub.f32 %v641, %v1241
    %v1386 = vsub.f32 %v711, %v1244
    %v1387 = vsub.f32 %v716, %v1247
    %v1388 = vsub.f32 %v721, %v1250
    %v1389 = vsub.f32 %v726, %v1253
    %v1390 = vsub.f32 %v731, %v1256
    %v1391 = vsub.f32 %v736, %v1259
    %v1392 = vsub.f32 %v741, %v1262
    %v1393 = vsub.f32 %v746, %v1265
    %v1394 = vsub.f32 %v816, %v1268
    %v1395 = vsub.f32 %v821, %v1271
    %v1396 = vsub.f32 %v826, %v1274
    %v1397 = vsub.f32 %v831, %v1277
    %v1398 = vsub.f32 %v836, %v1280
    %v1399 = vsub.f32 %v841, %v1283
    %v1400 = vsub.f32 %v846, %v1286
    %v1401 = vsub.f32 %v851, %v1289
    %v1402 = vsub.f32 %v921, %v1292
    %v1403 = vsub.f32 %v926, %v1295
    %v1404 = vsub.f32 %v931, %v1298
    %v1405 = vsub.f32 %v936, %v1301
    %v1406 = vsub.f32 %v941, %v1304
    %v1407 = vsub.f32 %v946, %v1307
    %v1408 = vsub.f32 %v951, %v1310
    %v1409 = vsub.f32 %v956, %v1313
    %v1410 = vsub.f32 %v1026, %v1316
    %v1411 = vsub.f32 %v1031, %v1319
    %v1412 = vsub.f32 %v1036, %v1322
    %v1413 = vsub.f32 %v1041, %v1325
    %v1414 = vsub.f32 %v1046, %v1328
    %v1415 = vsub.f32 %v1051, %v1331
    %v1416 = vsub.f32 %v1056, %v1334
    %v1417 = vsub.f32 %v1061, %v1337
    %v1418 = vsub.f32 %v1131, %v1340
    %v1419 = vsub.f32 %v1136, %v1343
    %v1420 = vsub.f32 %v1141, %v1346
    %v1421 = vsub.f32 %v1146, %v1349
    %v1422 = vsub.f32 %v1151, %v1352
    %v1423 = vsub.f32 %v1156, %v1355
    %v1424 = vsub.f32 %v1161, %v1358
    %v1425 = vsub.f32 %v1166, %v1361
    %v1426 = vmul.f32 %v1362, 1.442695
    %v1427 = vpow.pop %v1426
    %v1428 = vmul.f32 %v1363, 1.442695
    %v1429 = vpow.pop %v1428
    %v1430 = vmul.f32 %v1364, 1.442695
    %v1431 = vpow.pop %v1430
    %v1432 = vmul.f32 %v1365, 1.442695
    %v1433 = vpow.pop %v1432
    %v1434 = vmul.f32 %v1366, 1.442695
    %v1435 = vpow.pop %v1434
    %v1436 = vmul.f32 %v1367, 1.442695
    %v1437 = vpow.pop %v1436
    %v1438 = vmul.f32 %v1368, 1.442695
    %v1439 = vpow.pop %v1438
    %v1440 = vmul.f32 %v1369, 1.442695
    %v1441 = vpow.pop %v1440
    %v1442 = vmul.f32 %v1370, 1.442695
    %v1443 = vpow.pop %v1442
    %v1444 = vmul.f32 %v1371, 1.442695
    %v1445 = vpow.pop %v1444
    %v1446 = vmul.f32 %v1372, 1.442695
    %v1447 = vpow.pop %v1446
    %v1448 = vmul.f32 %v1373, 1.442695
    %v1449 = vpow.pop %v1448
    %v1450 = vmul.f32 %v1374, 1.442695
    %v1451 = vpow.pop %v1450
    %v1452 = vmul.f32 %v1375, 1.442695
    %v1453 = vpow.pop %v1452
    %v1454 = vmul.f32 %v1376, 1.442695
    %v1455 = vpow.pop %v1454
    %v1456 = vmul.f32 %v1377, 1.442695
    %v1457 = vpow.pop %v1456
    %v1458 = vmul.f32 %v1378, 1.442695
    %v1459 = vpow.pop %v1458
    %v1460 = vmul.f32 %v1379, 1.442695
    %v1461 = vpow.pop %v1460
    %v1462 = vmul.f32 %v1380, 1.442695
    %v1463 = vpow.pop %v1462
    %v1464 = vmul.f32 %v1381, 1.442695
    %v1465 = vpow.pop %v1464
    %v1466 = vmul.f32 %v1382, 1.442695
    %v1467 = vpow.pop %v1466
    %v1468 = vmul.f32 %v1383, 1.442695
    %v1469 = vpow.pop %v1468
    %v1470 = vmul.f32 %v1384, 1.442695
    %v1471 = vpow.pop %v1470
    %v1472 = vmul.f32 %v1385, 1.442695
    %v1473 = vpow.pop %v1472
    %v1474 = vmul.f32 %v1386, 1.442695
    %v1475 = vpow.pop %v1474
    %v1476 = vmul.f32 %v1387, 1.442695
    %v1477 = vpow.pop %v1476
    %v1478 = vmul.f32 %v1388, 1.442695
    %v1479 = vpow.pop %v1478
    %v1480 = vmul.f32 %v1389, 1.442695
    %v1481 = vpow.pop %v1480
    %v1482 = vmul.f32 %v1390, 1.442695
    %v1483 = vpow.pop %v1482
    %v1484 = vmul.f32 %v1391, 1.442695
    %v1485 = vpow.pop %v1484
    %v1486 = vmul.f32 %v1392, 1.442695
    %v1487 = vpow.pop %v1486
    %v1488 = vmul.f32 %v1393, 1.442695
    %v1489 = vpow.pop %v1488
    %v1490 = vmul.f32 %v1394, 1.442695
    %v1491 = vpow.pop %v1490
    %v1492 = vmul.f32 %v1395, 1.442695
    %v1493 = vpow.pop %v1492
    %v1494 = vmul.f32 %v1396, 1.442695
    %v1495 = vpow.pop %v1494
    %v1496 = vmul.f32 %v1397, 1.442695
    %v1497 = vpow.pop %v1496
    %v1498 = vmul.f32 %v1398, 1.442695
    %v1499 = vpow.pop %v1498
    %v1500 = vmul.f32 %v1399, 1.442695
    %v1501 = vpow.pop %v1500
    %v1502 = vmul.f32 %v1400, 1.442695
    %v1503 = vpow.pop %v1502
    %v1504 = vmul.f32 %v1401, 1.442695
    %v1505 = vpow.pop %v1504
    %v1506 = vmul.f32 %v1402, 1.442695
    %v1507 = vpow.pop %v1506
    %v1508 = vmul.f32 %v1403, 1.442695
    %v1509 = vpow.pop %v1508
    %v1510 = vmul.f32 %v1404, 1.442695
    %v1511 = vpow.pop %v1510
    %v1512 = vmul.f32 %v1405, 1.442695
    %v1513 = vpow.pop %v1512
    %v1514 = vmul.f32 %v1406, 1.442695
    %v1515 = vpow.pop %v1514
    %v1516 = vmul.f32 %v1407, 1.442695
    %v1517 = vpow.pop %v1516
    %v1518 = vmul.f32 %v1408, 1.442695
    %v1519 = vpow.pop %v1518
    %v1520 = vmul.f32 %v1409, 1.442695
    %v1521 = vpow.pop %v1520
    %v1522 = vmul.f32 %v1410, 1.442695
    %v1523 = vpow.pop %v1522
    %v1524 = vmul.f32 %v1411, 1.442695
    %v1525 = vpow.pop %v1524
    %v1526 = vmul.f32 %v1412, 1.442695
    %v1527 = vpow.pop %v1526
    %v1528 = vmul.f32 %v1413, 1.442695
    %v1529 = vpow.pop %v1528
    %v1530 = vmul.f32 %v1414, 1.442695
    %v1531 = vpow.pop %v1530
    %v1532 = vmul.f32 %v1415, 1.442695
    %v1533 = vpow.pop %v1532
    %v1534 = vmul.f32 %v1416, 1.442695
    %v1535 = vpow.pop %v1534
    %v1536 = vmul.f32 %v1417, 1.442695
    %v1537 = vpow.pop %v1536
    %v1538 = vmul.f32 %v1418, 1.442695
    %v1539 = vpow.pop %v1538
    %v1540 = vmul.f32 %v1419, 1.442695
    %v1541 = vpow.pop %v1540
    %v1542 = vmul.f32 %v1420, 1.442695
    %v1543 = vpow.pop %v1542
    %v1544 = vmul.f32 %v1421, 1.442695
    %v1545 = vpow.pop %v1544
    %v1546 = vmul.f32 %v1422, 1.442695
    %v1547 = vpow.pop %v1546
    %v1548 = vmul.f32 %v1423, 1.442695
    %v1549 = vpow.pop %v1548
    %v1550 = vmul.f32 %v1424, 1.442695
    %v1551 = vpow.pop %v1550
    %v1552 = vmul.f32 %v1425, 1.442695
    %v1553 = vpow.pop %v1552
    %v1554 = vsel %vm1169, %v1427, 0.0
    %1555 = vadd.xlane.f32.xlu0 %v1554
    %v1556 = vpop.xlane.xlu0 %1555
    %v1557 = vsel %vm1169, %v1429, 0.0
    %1558 = vadd.xlane.f32.xlu0 %v1557
    %v1559 = vpop.xlane.xlu0 %1558
    %v1560 = vsel %vm1169, %v1431, 0.0
    %1561 = vadd.xlane.f32.xlu0 %v1560
    %v1562 = vpop.xlane.xlu0 %1561
    %v1563 = vsel %vm1169, %v1433, 0.0
    %1564 = vadd.xlane.f32.xlu0 %v1563
    %v1565 = vpop.xlane.xlu0 %1564
    %v1566 = vsel %vm1169, %v1435, 0.0
    %1567 = vadd.xlane.f32.xlu0 %v1566
    %v1568 = vpop.xlane.xlu0 %1567
    %v1569 = vsel %vm1169, %v1437, 0.0
    %1570 = vadd.xlane.f32.xlu0 %v1569
    %v1571 = vpop.xlane.xlu0 %1570
    %v1572 = vsel %vm1169, %v1439, 0.0
    %1573 = vadd.xlane.f32.xlu0 %v1572
    %v1574 = vpop.xlane.xlu0 %1573
    %v1575 = vsel %vm1169, %v1441, 0.0
    %1576 = vadd.xlane.f32.xlu0 %v1575
    %v1577 = vpop.xlane.xlu0 %1576
    %v1578 = vsel %vm1169, %v1443, 0.0
    %1579 = vadd.xlane.f32.xlu0 %v1578
    %v1580 = vpop.xlane.xlu0 %1579
    %v1581 = vsel %vm1169, %v1445, 0.0
    %1582 = vadd.xlane.f32.xlu0 %v1581
    %v1583 = vpop.xlane.xlu0 %1582
    %v1584 = vsel %vm1169, %v1447, 0.0
    %1585 = vadd.xlane.f32.xlu0 %v1584
    %v1586 = vpop.xlane.xlu0 %1585
    %v1587 = vsel %vm1169, %v1449, 0.0
    %1588 = vadd.xlane.f32.xlu0 %v1587
    %v1589 = vpop.xlane.xlu0 %1588
    %v1590 = vsel %vm1169, %v1451, 0.0
    %1591 = vadd.xlane.f32.xlu0 %v1590
    %v1592 = vpop.xlane.xlu0 %1591
    %v1593 = vsel %vm1169, %v1453, 0.0
    %1594 = vadd.xlane.f32.xlu0 %v1593
    %v1595 = vpop.xlane.xlu0 %1594
    %v1596 = vsel %vm1169, %v1455, 0.0
    %1597 = vadd.xlane.f32.xlu0 %v1596
    %v1598 = vpop.xlane.xlu0 %1597
    %v1599 = vsel %vm1169, %v1457, 0.0
    %1600 = vadd.xlane.f32.xlu0 %v1599
    %v1601 = vpop.xlane.xlu0 %1600
    %v1602 = vsel %vm1169, %v1459, 0.0
    %1603 = vadd.xlane.f32.xlu0 %v1602
    %v1604 = vpop.xlane.xlu0 %1603
    %v1605 = vsel %vm1169, %v1461, 0.0
    %1606 = vadd.xlane.f32.xlu0 %v1605
    %v1607 = vpop.xlane.xlu0 %1606
    %v1608 = vsel %vm1169, %v1463, 0.0
    %1609 = vadd.xlane.f32.xlu0 %v1608
    %v1610 = vpop.xlane.xlu0 %1609
    %v1611 = vsel %vm1169, %v1465, 0.0
    %1612 = vadd.xlane.f32.xlu0 %v1611
    %v1613 = vpop.xlane.xlu0 %1612
    %v1614 = vsel %vm1169, %v1467, 0.0
    %1615 = vadd.xlane.f32.xlu0 %v1614
    %v1616 = vpop.xlane.xlu0 %1615
    %v1617 = vsel %vm1169, %v1469, 0.0
    %1618 = vadd.xlane.f32.xlu0 %v1617
    %v1619 = vpop.xlane.xlu0 %1618
    %v1620 = vsel %vm1169, %v1471, 0.0
    %1621 = vadd.xlane.f32.xlu0 %v1620
    %v1622 = vpop.xlane.xlu0 %1621
    %v1623 = vsel %vm1169, %v1473, 0.0
    %1624 = vadd.xlane.f32.xlu0 %v1623
    %v1625 = vpop.xlane.xlu0 %1624
    %v1626 = vsel %vm1169, %v1475, 0.0
    %1627 = vadd.xlane.f32.xlu0 %v1626
    %v1628 = vpop.xlane.xlu0 %1627
    %v1629 = vsel %vm1169, %v1477, 0.0
    %1630 = vadd.xlane.f32.xlu0 %v1629
    %v1631 = vpop.xlane.xlu0 %1630
    %v1632 = vsel %vm1169, %v1479, 0.0
    %1633 = vadd.xlane.f32.xlu0 %v1632
    %v1634 = vpop.xlane.xlu0 %1633
    %v1635 = vsel %vm1169, %v1481, 0.0
    %1636 = vadd.xlane.f32.xlu0 %v1635
    %v1637 = vpop.xlane.xlu0 %1636
    %v1638 = vsel %vm1169, %v1483, 0.0
    %1639 = vadd.xlane.f32.xlu0 %v1638
    %v1640 = vpop.xlane.xlu0 %1639
    %v1641 = vsel %vm1169, %v1485, 0.0
    %1642 = vadd.xlane.f32.xlu0 %v1641
    %v1643 = vpop.xlane.xlu0 %1642
    %v1644 = vsel %vm1169, %v1487, 0.0
    %1645 = vadd.xlane.f32.xlu0 %v1644
    %v1646 = vpop.xlane.xlu0 %1645
    %v1647 = vsel %vm1169, %v1489, 0.0
    %1648 = vadd.xlane.f32.xlu0 %v1647
    %v1649 = vpop.xlane.xlu0 %1648
    %v1650 = vsel %vm1169, %v1491, 0.0
    %1651 = vadd.xlane.f32.xlu0 %v1650
    %v1652 = vpop.xlane.xlu0 %1651
    %v1653 = vsel %vm1169, %v1493, 0.0
    %1654 = vadd.xlane.f32.xlu0 %v1653
    %v1655 = vpop.xlane.xlu0 %1654
    %v1656 = vsel %vm1169, %v1495, 0.0
    %1657 = vadd.xlane.f32.xlu0 %v1656
    %v1658 = vpop.xlane.xlu0 %1657
    %v1659 = vsel %vm1169, %v1497, 0.0
    %1660 = vadd.xlane.f32.xlu0 %v1659
    %v1661 = vpop.xlane.xlu0 %1660
    %v1662 = vsel %vm1169, %v1499, 0.0
    %1663 = vadd.xlane.f32.xlu0 %v1662
    %v1664 = vpop.xlane.xlu0 %1663
    %v1665 = vsel %vm1169, %v1501, 0.0
    %1666 = vadd.xlane.f32.xlu0 %v1665
    %v1667 = vpop.xlane.xlu0 %1666
    %v1668 = vsel %vm1169, %v1503, 0.0
    %1669 = vadd.xlane.f32.xlu0 %v1668
    %v1670 = vpop.xlane.xlu0 %1669
    %v1671 = vsel %vm1169, %v1505, 0.0
    %1672 = vadd.xlane.f32.xlu0 %v1671
    %v1673 = vpop.xlane.xlu0 %1672
    %v1674 = vsel %vm1169, %v1507, 0.0
    %1675 = vadd.xlane.f32.xlu0 %v1674
    %v1676 = vpop.xlane.xlu0 %1675
    %v1677 = vsel %vm1169, %v1509, 0.0
    %1678 = vadd.xlane.f32.xlu0 %v1677
    %v1679 = vpop.xlane.xlu0 %1678
    %v1680 = vsel %vm1169, %v1511, 0.0
    %1681 = vadd.xlane.f32.xlu0 %v1680
    %v1682 = vpop.xlane.xlu0 %1681
    %v1683 = vsel %vm1169, %v1513, 0.0
    %1684 = vadd.xlane.f32.xlu0 %v1683
    %v1685 = vpop.xlane.xlu0 %1684
    %v1686 = vsel %vm1169, %v1515, 0.0
    %1687 = vadd.xlane.f32.xlu0 %v1686
    %v1688 = vpop.xlane.xlu0 %1687
    %v1689 = vsel %vm1169, %v1517, 0.0
    %1690 = vadd.xlane.f32.xlu0 %v1689
    %v1691 = vpop.xlane.xlu0 %1690
    %v1692 = vsel %vm1169, %v1519, 0.0
    %1693 = vadd.xlane.f32.xlu0 %v1692
    %v1694 = vpop.xlane.xlu0 %1693
    %v1695 = vsel %vm1169, %v1521, 0.0
    %1696 = vadd.xlane.f32.xlu0 %v1695
    %v1697 = vpop.xlane.xlu0 %1696
    %v1698 = vsel %vm1169, %v1523, 0.0
    %1699 = vadd.xlane.f32.xlu0 %v1698
    %v1700 = vpop.xlane.xlu0 %1699
    %v1701 = vsel %vm1169, %v1525, 0.0
    %1702 = vadd.xlane.f32.xlu0 %v1701
    %v1703 = vpop.xlane.xlu0 %1702
    %v1704 = vsel %vm1169, %v1527, 0.0
    %1705 = vadd.xlane.f32.xlu0 %v1704
    %v1706 = vpop.xlane.xlu0 %1705
    %v1707 = vsel %vm1169, %v1529, 0.0
    %1708 = vadd.xlane.f32.xlu0 %v1707
    %v1709 = vpop.xlane.xlu0 %1708
    %v1710 = vsel %vm1169, %v1531, 0.0
    %1711 = vadd.xlane.f32.xlu0 %v1710
    %v1712 = vpop.xlane.xlu0 %1711
    %v1713 = vsel %vm1169, %v1533, 0.0
    %1714 = vadd.xlane.f32.xlu0 %v1713
    %v1715 = vpop.xlane.xlu0 %1714
    %v1716 = vsel %vm1169, %v1535, 0.0
    %1717 = vadd.xlane.f32.xlu0 %v1716
    %v1718 = vpop.xlane.xlu0 %1717
    %v1719 = vsel %vm1169, %v1537, 0.0
    %1720 = vadd.xlane.f32.xlu0 %v1719
    %v1721 = vpop.xlane.xlu0 %1720
    %v1722 = vsel %vm1169, %v1539, 0.0
    %1723 = vadd.xlane.f32.xlu0 %v1722
    %v1724 = vpop.xlane.xlu0 %1723
    %v1725 = vsel %vm1169, %v1541, 0.0
    %1726 = vadd.xlane.f32.xlu0 %v1725
    %v1727 = vpop.xlane.xlu0 %1726
    %v1728 = vsel %vm1169, %v1543, 0.0
    %1729 = vadd.xlane.f32.xlu0 %v1728
    %v1730 = vpop.xlane.xlu0 %1729
    %v1731 = vsel %vm1169, %v1545, 0.0
    %1732 = vadd.xlane.f32.xlu0 %v1731
    %v1733 = vpop.xlane.xlu0 %1732
    %v1734 = vsel %vm1169, %v1547, 0.0
    %1735 = vadd.xlane.f32.xlu0 %v1734
    %v1736 = vpop.xlane.xlu0 %1735
    %v1737 = vsel %vm1169, %v1549, 0.0
    %1738 = vadd.xlane.f32.xlu0 %v1737
    %v1739 = vpop.xlane.xlu0 %1738
    %v1740 = vsel %vm1169, %v1551, 0.0
    %1741 = vadd.xlane.f32.xlu0 %v1740
    %v1742 = vpop.xlane.xlu0 %1741
    %v1743 = vsel %vm1169, %v1553, 0.0
    %1744 = vadd.xlane.f32.xlu0 %v1743
    %v1745 = vpop.xlane.xlu0 %1744
    %v1746 = vrcp.pop %v1556
    %v1747 = vmul.f32 1.0, %v1746
    %v1748 = vrcp.pop %v1559
    %v1749 = vmul.f32 1.0, %v1748
    %v1750 = vrcp.pop %v1562
    %v1751 = vmul.f32 1.0, %v1750
    %v1752 = vrcp.pop %v1565
    %v1753 = vmul.f32 1.0, %v1752
    %v1754 = vrcp.pop %v1568
    %v1755 = vmul.f32 1.0, %v1754
    %v1756 = vrcp.pop %v1571
    %v1757 = vmul.f32 1.0, %v1756
    %v1758 = vrcp.pop %v1574
    %v1759 = vmul.f32 1.0, %v1758
    %v1760 = vrcp.pop %v1577
    %v1761 = vmul.f32 1.0, %v1760
    %v1762 = vrcp.pop %v1580
    %v1763 = vmul.f32 1.0, %v1762
    %v1764 = vrcp.pop %v1583
    %v1765 = vmul.f32 1.0, %v1764
    %v1766 = vrcp.pop %v1586
    %v1767 = vmul.f32 1.0, %v1766
    %v1768 = vrcp.pop %v1589
    %v1769 = vmul.f32 1.0, %v1768
    %v1770 = vrcp.pop %v1592
    %v1771 = vmul.f32 1.0, %v1770
    %v1772 = vrcp.pop %v1595
    %v1773 = vmul.f32 1.0, %v1772
    %v1774 = vrcp.pop %v1598
    %v1775 = vmul.f32 1.0, %v1774
    %v1776 = vrcp.pop %v1601
    %v1777 = vmul.f32 1.0, %v1776
    %v1778 = vrcp.pop %v1604
    %v1779 = vmul.f32 1.0, %v1778
    %v1780 = vrcp.pop %v1607
    %v1781 = vmul.f32 1.0, %v1780
    %v1782 = vrcp.pop %v1610
    %v1783 = vmul.f32 1.0, %v1782
    %v1784 = vrcp.pop %v1613
    %v1785 = vmul.f32 1.0, %v1784
    %v1786 = vrcp.pop %v1616
    %v1787 = vmul.f32 1.0, %v1786
    %v1788 = vrcp.pop %v1619
    %v1789 = vmul.f32 1.0, %v1788
    %v1790 = vrcp.pop %v1622
    %v1791 = vmul.f32 1.0, %v1790
    %v1792 = vrcp.pop %v1625
    %v1793 = vmul.f32 1.0, %v1792
    %v1794 = vrcp.pop %v1628
    %v1795 = vmul.f32 1.0, %v1794
    %v1796 = vrcp.pop %v1631
    %v1797 = vmul.f32 1.0, %v1796
    %v1798 = vrcp.pop %v1634
    %v1799 = vmul.f32 1.0, %v1798
    %v1800 = vrcp.pop %v1637
    %v1801 = vmul.f32 1.0, %v1800
    %v1802 = vrcp.pop %v1640
    %v1803 = vmul.f32 1.0, %v1802
    %v1804 = vrcp.pop %v1643
    %v1805 = vmul.f32 1.0, %v1804
    %v1806 = vrcp.pop %v1646
    %v1807 = vmul.f32 1.0, %v1806
    %v1808 = vrcp.pop %v1649
    %v1809 = vmul.f32 1.0, %v1808
    %v1810 = vrcp.pop %v1652
    %v1811 = vmul.f32 1.0, %v1810
    %v1812 = vrcp.pop %v1655
    %v1813 = vmul.f32 1.0, %v1812
    %v1814 = vrcp.pop %v1658
    %v1815 = vmul.f32 1.0, %v1814
    %v1816 = vrcp.pop %v1661
    %v1817 = vmul.f32 1.0, %v1816
    %v1818 = vrcp.pop %v1664
    %v1819 = vmul.f32 1.0, %v1818
    %v1820 = vrcp.pop %v1667
    %v1821 = vmul.f32 1.0, %v1820
    %v1822 = vrcp.pop %v1670
    %v1823 = vmul.f32 1.0, %v1822
    %v1824 = vrcp.pop %v1673
    %v1825 = vmul.f32 1.0, %v1824
    %v1826 = vrcp.pop %v1676
    %v1827 = vmul.f32 1.0, %v1826
    %v1828 = vrcp.pop %v1679
    %v1829 = vmul.f32 1.0, %v1828
    %v1830 = vrcp.pop %v1682
    %v1831 = vmul.f32 1.0, %v1830
    %v1832 = vrcp.pop %v1685
    %v1833 = vmul.f32 1.0, %v1832
    %v1834 = vrcp.pop %v1688
    %v1835 = vmul.f32 1.0, %v1834
    %v1836 = vrcp.pop %v1691
    %v1837 = vmul.f32 1.0, %v1836
    %v1838 = vrcp.pop %v1694
    %v1839 = vmul.f32 1.0, %v1838
    %v1840 = vrcp.pop %v1697
    %v1841 = vmul.f32 1.0, %v1840
    %v1842 = vrcp.pop %v1700
    %v1843 = vmul.f32 1.0, %v1842
    %v1844 = vrcp.pop %v1703
    %v1845 = vmul.f32 1.0, %v1844
    %v1846 = vrcp.pop %v1706
    %v1847 = vmul.f32 1.0, %v1846
    %v1848 = vrcp.pop %v1709
    %v1849 = vmul.f32 1.0, %v1848
    %v1850 = vrcp.pop %v1712
    %v1851 = vmul.f32 1.0, %v1850
    %v1852 = vrcp.pop %v1715
    %v1853 = vmul.f32 1.0, %v1852
    %v1854 = vrcp.pop %v1718
    %v1855 = vmul.f32 1.0, %v1854
    %v1856 = vrcp.pop %v1721
    %v1857 = vmul.f32 1.0, %v1856
    %v1858 = vrcp.pop %v1724
    %v1859 = vmul.f32 1.0, %v1858
    %v1860 = vrcp.pop %v1727
    %v1861 = vmul.f32 1.0, %v1860
    %v1862 = vrcp.pop %v1730
    %v1863 = vmul.f32 1.0, %v1862
    %v1864 = vrcp.pop %v1733
    %v1865 = vmul.f32 1.0, %v1864
    %v1866 = vrcp.pop %v1736
    %v1867 = vmul.f32 1.0, %v1866
    %v1868 = vrcp.pop %v1739
    %v1869 = vmul.f32 1.0, %v1868
    %v1870 = vrcp.pop %v1742
    %v1871 = vmul.f32 1.0, %v1870
    %v1872 = vrcp.pop %v1745
    %v1873 = vmul.f32 1.0, %v1872
    %v1874 = vmul.f32 %v1427, %v1747
    %v1875 = vmul.f32 %v1429, %v1749
    %v1876 = vmul.f32 %v1431, %v1751
    %v1877 = vmul.f32 %v1433, %v1753
    %v1878 = vmul.f32 %v1435, %v1755
    %v1879 = vmul.f32 %v1437, %v1757
    %v1880 = vmul.f32 %v1439, %v1759
    %v1881 = vmul.f32 %v1441, %v1761
    %v1882 = vmul.f32 %v1443, %v1763
    %v1883 = vmul.f32 %v1445, %v1765
    %v1884 = vmul.f32 %v1447, %v1767
    %v1885 = vmul.f32 %v1449, %v1769
    %v1886 = vmul.f32 %v1451, %v1771
    %v1887 = vmul.f32 %v1453, %v1773
    %v1888 = vmul.f32 %v1455, %v1775
    %v1889 = vmul.f32 %v1457, %v1777
    %v1890 = vmul.f32 %v1459, %v1779
    %v1891 = vmul.f32 %v1461, %v1781
    %v1892 = vmul.f32 %v1463, %v1783
    %v1893 = vmul.f32 %v1465, %v1785
    %v1894 = vmul.f32 %v1467, %v1787
    %v1895 = vmul.f32 %v1469, %v1789
    %v1896 = vmul.f32 %v1471, %v1791
    %v1897 = vmul.f32 %v1473, %v1793
    %v1898 = vmul.f32 %v1475, %v1795
    %v1899 = vmul.f32 %v1477, %v1797
    %v1900 = vmul.f32 %v1479, %v1799
    %v1901 = vmul.f32 %v1481, %v1801
    %v1902 = vmul.f32 %v1483, %v1803
    %v1903 = vmul.f32 %v1485, %v1805
    %v1904 = vmul.f32 %v1487, %v1807
    %v1905 = vmul.f32 %v1489, %v1809
    %v1906 = vmul.f32 %v1491, %v1811
    %v1907 = vmul.f32 %v1493, %v1813
    %v1908 = vmul.f32 %v1495, %v1815
    %v1909 = vmul.f32 %v1497, %v1817
    %v1910 = vmul.f32 %v1499, %v1819
    %v1911 = vmul.f32 %v1501, %v1821
    %v1912 = vmul.f32 %v1503, %v1823
    %v1913 = vmul.f32 %v1505, %v1825
    %v1914 = vmul.f32 %v1507, %v1827
    %v1915 = vmul.f32 %v1509, %v1829
    %v1916 = vmul.f32 %v1511, %v1831
    %v1917 = vmul.f32 %v1513, %v1833
    %v1918 = vmul.f32 %v1515, %v1835
    %v1919 = vmul.f32 %v1517, %v1837
    %v1920 = vmul.f32 %v1519, %v1839
    %v1921 = vmul.f32 %v1521, %v1841
    %v1922 = vmul.f32 %v1523, %v1843
    %v1923 = vmul.f32 %v1525, %v1845
    %v1924 = vmul.f32 %v1527, %v1847
    %v1925 = vmul.f32 %v1529, %v1849
    %v1926 = vmul.f32 %v1531, %v1851
    %v1927 = vmul.f32 %v1533, %v1853
    %v1928 = vmul.f32 %v1535, %v1855
    %v1929 = vmul.f32 %v1537, %v1857
    %v1930 = vmul.f32 %v1539, %v1859
    %v1931 = vmul.f32 %v1541, %v1861
    %v1932 = vmul.f32 %v1543, %v1863
    %v1933 = vmul.f32 %v1545, %v1865
    %v1934 = vmul.f32 %v1547, %v1867
    %v1935 = vmul.f32 %v1549, %v1869
    %v1936 = vmul.f32 %v1551, %v1871
    %v1937 = vmul.f32 %v1553, %v1873
    %v1938 = vld [vmem:[#allocation8] sm:$0xff]
    %v1939 = vld [vmem:[#allocation8 + $0x8] sm:$0xff]
    %v1940 = vld [vmem:[#allocation8 + $0x10] sm:$0xff]
    %v1941 = vld [vmem:[#allocation8 + $0x18] sm:$0xff]
    %v1942 = vld [vmem:[#allocation8 + $0x20] sm:$0xff]
    %v1943 = vld [vmem:[#allocation8 + $0x28] sm:$0xff]
    %v1944 = vld [vmem:[#allocation8 + $0x30] sm:$0xff]
    %v1945 = vld [vmem:[#allocation8 + $0x38] sm:$0xff]
    %v1946 = vld [vmem:[#allocation8 + $0x40] sm:$0xff]
    %v1947 = vld [vmem:[#allocation8 + $0x48] sm:$0xff]
    %v1948 = vld [vmem:[#allocation8 + $0x50] sm:$0xff]
    %v1949 = vld [vmem:[#allocation8 + $0x58] sm:$0xff]
    %v1950 = vld [vmem:[#allocation8 + $0x60] sm:$0xff]
    %v1951 = vld [vmem:[#allocation8 + $0x68] sm:$0xff]
    %v1952 = vld [vmem:[#allocation8 + $0x70] sm:$0xff]
    %v1953 = vld [vmem:[#allocation8 + $0x78] sm:$0xff]
    %v1954 = vld [vmem:[#allocation8 + $0x80] sm:$0xff]
    %v1955 = vld [vmem:[#allocation8 + $0x88] sm:$0xff]
    %v1956 = vld [vmem:[#allocation8 + $0x90] sm:$0xff]
    %v1957 = vld [vmem:[#allocation8 + $0x98] sm:$0xff]
    %v1958 = vld [vmem:[#allocation8 + $0xa0] sm:$0xff]
    %v1959 = vld [vmem:[#allocation8 + $0xa8] sm:$0xff]
    %v1960 = vld [vmem:[#allocation8 + $0xb0] sm:$0xff]
    %v1961 = vld [vmem:[#allocation8 + $0xb8] sm:$0xff]
    %v1962 = vld [vmem:[#allocation8 + $0xc0] sm:$0xff]
    %v1963 = vld [vmem:[#allocation8 + $0xc8] sm:$0xff]
    %v1964 = vld [vmem:[#allocation8 + $0xd0] sm:$0xff]
    %v1965 = vld [vmem:[#allocation8 + $0xd8] sm:$0xff]
    %v1966 = vld [vmem:[#allocation8 + $0xe0] sm:$0xff]
    %v1967 = vld [vmem:[#allocation8 + $0xe8] sm:$0xff]
    %v1968 = vld [vmem:[#allocation8 + $0xf0] sm:$0xff]
    %v1969 = vld [vmem:[#allocation8 + $0xf8] sm:$0xff]
    %v1970 = vld [vmem:[#allocation8 + $0x100] sm:$0xff]
    %v1971 = vld [vmem:[#allocation8 + $0x108] sm:$0xff]
    %v1972 = vld [vmem:[#allocation8 + $0x110] sm:$0xff]
    %v1973 = vld [vmem:[#allocation8 + $0x118] sm:$0xff]
    %v1974 = vld [vmem:[#allocation8 + $0x120] sm:$0xff]
    %v1975 = vld [vmem:[#allocation8 + $0x128] sm:$0xff]
    %v1976 = vld [vmem:[#allocation8 + $0x130] sm:$0xff]
    %v1977 = vld [vmem:[#allocation8 + $0x138] sm:$0xff]
    %v1978 = vld [vmem:[#allocation8 + $0x140] sm:$0xff]
    %v1979 = vld [vmem:[#allocation8 + $0x148] sm:$0xff]
    %v1980 = vld [vmem:[#allocation8 + $0x150] sm:$0xff]
    %v1981 = vld [vmem:[#allocation8 + $0x158] sm:$0xff]
    %v1982 = vld [vmem:[#allocation8 + $0x160] sm:$0xff]
    %v1983 = vld [vmem:[#allocation8 + $0x168] sm:$0xff]
    %v1984 = vld [vmem:[#allocation8 + $0x170] sm:$0xff]
    %v1985 = vld [vmem:[#allocation8 + $0x178] sm:$0xff]
    %v1986 = vld [vmem:[#allocation8 + $0x180] sm:$0xff]
    %v1987 = vld [vmem:[#allocation8 + $0x188] sm:$0xff]
    %v1988 = vld [vmem:[#allocation8 + $0x190] sm:$0xff]
    %v1989 = vld [vmem:[#allocation8 + $0x198] sm:$0xff]
    %v1990 = vld [vmem:[#allocation8 + $0x1a0] sm:$0xff]
    %v1991 = vld [vmem:[#allocation8 + $0x1a8] sm:$0xff]
    %v1992 = vld [vmem:[#allocation8 + $0x1b0] sm:$0xff]
    %v1993 = vld [vmem:[#allocation8 + $0x1b8] sm:$0xff]
    %v1994 = vld [vmem:[#allocation8 + $0x1c0] sm:$0xff]
    %v1995 = vld [vmem:[#allocation8 + $0x1c8] sm:$0xff]
    %v1996 = vld [vmem:[#allocation8 + $0x1d0] sm:$0xff]
    %v1997 = vld [vmem:[#allocation8 + $0x1d8] sm:$0xff]
    %v1998 = vld [vmem:[#allocation8 + $0x1e0] sm:$0xff]
    %v1999 = vld [vmem:[#allocation8 + $0x1e8] sm:$0xff]
    %v2000 = vld [vmem:[#allocation8 + $0x1f0] sm:$0xff]
    %v2001 = vld [vmem:[#allocation8 + $0x1f8] sm:$0xff]
    %v2002 = vmul.f32 %v1874, %v1938
    %v2003 = vmul.f32 %v1875, %v1939
    %v2004 = vmul.f32 %v1876, %v1940
    %v2005 = vmul.f32 %v1877, %v1941
    %v2006 = vmul.f32 %v1878, %v1942
    %v2007 = vmul.f32 %v1879, %v1943
    %v2008 = vmul.f32 %v1880, %v1944
    %v2009 = vmul.f32 %v1881, %v1945
    %v2010 = vmul.f32 %v1882, %v1946
    %v2011 = vmul.f32 %v1883, %v1947
    %v2012 = vmul.f32 %v1884, %v1948
    %v2013 = vmul.f32 %v1885, %v1949
    %v2014 = vmul.f32 %v1886, %v1950
    %v2015 = vmul.f32 %v1887, %v1951
    %v2016 = vmul.f32 %v1888, %v1952
    %v2017 = vmul.f32 %v1889, %v1953
    %v2018 = vmul.f32 %v1890, %v1954
    %v2019 = vmul.f32 %v1891, %v1955
    %v2020 = vmul.f32 %v1892, %v1956
    %v2021 = vmul.f32 %v1893, %v1957
    %v2022 = vmul.f32 %v1894, %v1958
    %v2023 = vmul.f32 %v1895, %v1959
    %v2024 = vmul.f32 %v1896, %v1960
    %v2025 = vmul.f32 %v1897, %v1961
    %v2026 = vmul.f32 %v1898, %v1962
    %v2027 = vmul.f32 %v1899, %v1963
    %v2028 = vmul.f32 %v1900, %v1964
    %v2029 = vmul.f32 %v1901, %v1965
    %v2030 = vmul.f32 %v1902, %v1966
    %v2031 = vmul.f32 %v1903, %v1967
    %v2032 = vmul.f32 %v1904, %v1968
    %v2033 = vmul.f32 %v1905, %v1969
    %v2034 = vmul.f32 %v1906, %v1970
    %v2035 = vmul.f32 %v1907, %v1971
    %v2036 = vmul.f32 %v1908, %v1972
    %v2037 = vmul.f32 %v1909, %v1973
    %v2038 = vmul.f32 %v1910, %v1974
    %v2039 = vmul.f32 %v1911, %v1975
    %v2040 = vmul.f32 %v1912, %v1976
    %v2041 = vmul.f32 %v1913, %v1977
    %v2042 = vmul.f32 %v1914, %v1978
    %v2043 = vmul.f32 %v1915, %v1979
    %v2044 = vmul.f32 %v1916, %v1980
    %v2045 = vmul.f32 %v1917, %v1981
    %v2046 = vmul.f32 %v1918, %v1982
    %v2047 = vmul.f32 %v1919, %v1983
    %v2048 = vmul.f32 %v1920, %v1984
    %v2049 = vmul.f32 %v1921, %v1985
    %v2050 = vmul.f32 %v1922, %v1986
    %v2051 = vmul.f32 %v1923, %v1987
    %v2052 = vmul.f32 %v1924, %v1988
    %v2053 = vmul.f32 %v1925, %v1989
    %v2054 = vmul.f32 %v1926, %v1990
    %v2055 = vmul.f32 %v1927, %v1991
    %v2056 = vmul.f32 %v1928, %v1992
    %v2057 = vmul.f32 %v1929, %v1993
    %v2058 = vmul.f32 %v1930, %v1994
    %v2059 = vmul.f32 %v1931, %v1995
    %v2060 = vmul.f32 %v1932, %v1996
    %v2061 = vmul.f32 %v1933, %v1997
    %v2062 = vmul.f32 %v1934, %v1998
    %v2063 = vmul.f32 %v1935, %v1999
    %v2064 = vmul.f32 %v1936, %v2000
    %v2065 = vmul.f32 %v1937, %v2001
    %v2067 = vsel %vm1169, %v2002, 0
    %v2070 = vsel %vm1169, %v2003, 0
    %v2073 = vsel %vm1169, %v2004, 0
    %v2076 = vsel %vm1169, %v2005, 0
    %v2079 = vsel %vm1169, %v2006, 0
    %v2082 = vsel %vm1169, %v2007, 0
    %v2085 = vsel %vm1169, %v2008, 0
    %v2088 = vsel %vm1169, %v2009, 0
    %2090 = vmatprep.subr.mxu0 0.0
    %2091 = vmatpush1.msra.mxu0 %v265
    %2092 = vmatprep.subr.mxu0 0.0
    %2093 = vmatpush1.msra.mxu0 %v266
    %2094 = vmatprep.subr.mxu0 0.0
    %2095 = vmatpush1.msra.mxu0 %v267
    %2096 = vmatprep.subr.mxu0 0.0
    %2097 = vmatpush1.msra.mxu0 %v268
    %2098 = vmatprep.subr.mxu0 0.0
    %2099 = vmatpush1.msra.mxu0 %v269
    %2100 = vmatprep.subr.mxu0 0.0
    %2101 = vmatpush1.msra.mxu0 %v270
    %2102 = vmatprep.subr.mxu0 0.0
    %2103 = vmatpush1.msra.mxu0 %v271
    %2104 = vmatprep.subr.mxu0 0.0
    %2105 = vmatpush1.msra.mxu0 %v272
    %2106 = vmatprep.subr.mxu0 0.0
    %2107 = vmatpush1.msra.mxu0 0.0
    %2108 = vmatprep.subr.mxu0 0.0
    %2109 = vmatpush1.msra.mxu0 0.0
    %2110 = vmatprep.subr.mxu0 0.0
    %2111 = vmatpush1.msra.mxu0 0.0
    %2112 = vmatprep.subr.mxu0 0.0
    %2113 = vmatpush1.msra.mxu0 0.0
    %2114 = vmatprep.subr.mxu0 0.0
    %2115 = vmatpush1.msra.mxu0 0.0
    %2116 = vmatprep.subr.mxu0 0.0
    %2117 = vmatpush1.msra.mxu0 0.0
    %2118 = vmatprep.subr.mxu0 0.0
    %2119 = vmatpush1.msra.mxu0 0.0
    %2120 = vmatprep.subr.mxu0 0.0
    %2121 = vmatpush1.msra.mxu0 0.0
    %2122 = vmatprep.subr.mxu0 0.0
    %2123 = vmatpush1.msra.mxu0 0.0
    %2124 = vmatprep.subr.mxu0 0.0
    %2125 = vmatpush1.msra.mxu0 0.0
    %2126 = vmatprep.subr.mxu0 0.0
    %2127 = vmatpush1.msra.mxu0 0.0
    %2128 = vmatprep.subr.mxu0 0.0
    %2129 = vmatpush1.msra.mxu0 0.0
    %2130 = vmatprep.subr.mxu0 0.0
    %2131 = vmatpush1.msra.mxu0 0.0
    %2132 = vmatprep.subr.mxu0 0.0
    %2133 = vmatpush1.msra.mxu0 0.0
    %2134 = vmatprep.subr.mxu0 0.0
    %2135 = vmatpush1.msra.mxu0 0.0
    %2136 = vmatprep.subr.mxu0 0.0
    %2137 = vmatpush1.msra.mxu0 0.0
    %2138 = vmatprep.subr.mxu0 0.0
    %2139 = vmatpush1.msra.mxu0 0.0
    %2140 = vmatprep.subr.mxu0 0.0
    %2141 = vmatpush1.msra.mxu0 0.0
    %2142 = vmatprep.subr.mxu0 0.0
    %2143 = vmatpush1.msra.mxu0 0.0
    %2144 = vmatprep.subr.mxu0 0.0
    %2145 = vmatpush1.msra.mxu0 0.0
    %2146 = vmatprep.subr.mxu0 0.0
    %2147 = vmatpush1.msra.mxu0 0.0
    %2148 = vmatprep.subr.mxu0 0.0
    %2149 = vmatpush1.msra.mxu0 0.0
    %2150 = vmatprep.subr.mxu0 0.0
    %2151 = vmatpush1.msra.mxu0 0.0
    %2152 = vmatprep.subr.mxu0 0.0
    %2153 = vmatpush1.msra.mxu0 0.0
    %2154 = vmatprep.mubr.f32.mxu0 0.0
    %2155 = vmatmul.mubr.f32.gmra.mrb[0].mxu0 %v2067
    %v2156 = vpop.f32.mrb[0].mxu0
    %v2157 = vadd.f32 0.0, %v2156
    %v2158 = vpop.f32.mrb[0].mxu0
    %2159 = vmatprep.mubr.f32.mxu0 0.0
    %2160 = vmatmul.mubr.f32.gmra.mrb[0].mxu0 %v2070
    %v2161 = vpop.f32.mrb[0].mxu0
    %v2162 = vadd.f32 0.0, %v2161
    %v2163 = vpop.f32.mrb[0].mxu0
    %2164 = vmatprep.mubr.f32.mxu0 0.0
    %2165 = vmatmul.mubr.f32.gmra.mrb[0].mxu0 %v2073
    %v2166 = vpop.f32.mrb[0].mxu0
    %v2167 = vadd.f32 0.0, %v2166
    %v2168 = vpop.f32.mrb[0].mxu0
    %2169 = vmatprep.mubr.f32.mxu0 0.0
    %2170 = vmatmul.mubr.f32.gmra.mrb[0].mxu0 %v2076
    %v2171 = vpop.f32.mrb[0].mxu0
    %v2172 = vadd.f32 0.0, %v2171
    %v2173 = vpop.f32.mrb[0].mxu0
    %2174 = vmatprep.mubr.f32.mxu0 0.0
    %2175 = vmatmul.mubr.f32.gmra.mrb[0].mxu0 %v2079
    %v2176 = vpop.f32.mrb[0].mxu0
    %v2177 = vadd.f32 0.0, %v2176
    %v2178 = vpop.f32.mrb[0].mxu0
    %2179 = vmatprep.mubr.f32.mxu0 0.0
    %2180 = vmatmul.mubr.f32.gmra.mrb[0].mxu0 %v2082
    %v2181 = vpop.f32.mrb[0].mxu0
    %v2182 = vadd.f32 0.0, %v2181
    %v2183 = vpop.f32.mrb[0].mxu0
    %2184 = vmatprep.mubr.f32.mxu0 0.0
    %2185 = vmatmul.mubr.f32.gmra.mrb[0].mxu0 %v2085
    %v2186 = vpop.f32.mrb[0].mxu0
    %v2187 = vadd.f32 0.0, %v2186
    %v2188 = vpop.f32.mrb[0].mxu0
    %2189 = vmatprep.mubr.f32.mxu0 0.0
    %2190 = vmatmul.mubr.f32.gmra.mrb[0].mxu0 %v2088
    %v2191 = vpop.f32.mrb[0].mxu0
    %v2192 = vadd.f32 0.0, %v2191
    %v2193 = vpop.f32.mrb[0].mxu0
    %2194 = vdwg.mxu0
    %v2196 = vsel %vm1169, %v2010, 0
    %v2199 = vsel %vm1169, %v2011, 0
    %v2202 = vsel %vm1169, %v2012, 0
    %v2205 = vsel %vm1169, %v2013, 0
    %v2208 = vsel %vm1169, %v2014, 0
    %v2211 = vsel %vm1169, %v2015, 0
    %v2214 = vsel %vm1169, %v2016, 0
    %v2217 = vsel %vm1169, %v2017, 0
    %2219 = vmatprep.subr.mxu0 0.0
    %2220 = vmatpush1.msra.mxu0 %v273
    %2221 = vmatprep.subr.mxu0 0.0
    %2222 = vmatpush1.msra.mxu0 %v274
    %2223 = vmatprep.subr.mxu0 0.0
    %2224 = vmatpush1.msra.mxu0 %v275
    %2225 = vmatprep.subr.mxu0 0.0
    %2226 = vmatpush1.msra.mxu0 %v276
    %2227 = vmatprep.subr.mxu0 0.0
    %2228 = vmatpush1.msra.mxu0 %v277
    %2229 = vmatprep.subr.mxu0 0.0
    %2230 = vmatpush1.msra.mxu0 %v278
    %2231 = vmatprep.subr.mxu0 0.0
    %2232 = vmatpush1.msra.mxu0 %v279
    %2233 = vmatprep.subr.mxu0 0.0
    %2234 = vmatpush1.msra.mxu0 %v280
    %2235 = vmatprep.subr.mxu0 0.0
    %2236 = vmatpush1.msra.mxu0 0.0
    %2237 = vmatprep.subr.mxu0 0.0
    %2238 = vmatpush1.msra.mxu0 0.0
    %2239 = vmatprep.subr.mxu0 0.0
    %2240 = vmatpush1.msra.mxu0 0.0
    %2241 = vmatprep.subr.mxu0 0.0
    %2242 = vmatpush1.msra.mxu0 0.0
    %2243 = vmatprep.subr.mxu0 0.0
    %2244 = vmatpush1.msra.mxu0 0.0
    %2245 = vmatprep.subr.mxu0 0.0
    %2246 = vmatpush1.msra.mxu0 0.0
    %2247 = vmatprep.subr.mxu0 0.0
    %2248 = vmatpush1.msra.mxu0 0.0
    %2249 = vmatprep.subr.mxu0 0.0
    %2250 = vmatpush1.msra.mxu0 0.0
    %2251 = vmatprep.subr.mxu0 0.0
    %2252 = vmatpush1.msra.mxu0 0.0
    %2253 = vmatprep.subr.mxu0 0.0
    %2254 = vmatpush1.msra.mxu0 0.0
    %2255 = vmatprep.subr.mxu0 0.0
    %2256 = vmatpush1.msra.mxu0 0.0
    %2257 = vmatprep.subr.mxu0 0.0
    %2258 = vmatpush1.msra.mxu0 0.0
    %2259 = vmatprep.subr.mxu0 0.0
    %2260 = vmatpush1.msra.mxu0 0.0
    %2261 = vmatprep.subr.mxu0 0.0
    %2262 = vmatpush1.msra.mxu0 0.0
    %2263 = vmatprep.subr.mxu0 0.0
    %2264 = vmatpush1.msra.mxu0 0.0
    %2265 = vmatprep.subr.mxu0 0.0
    %2266 = vmatpush1.msra.mxu0 0.0
    %2267 = vmatprep.subr.mxu0 0.0
    %2268 = vmatpush1.msra.mxu0 0.0
    %2269 = vmatprep.subr.mxu0 0.0
    %2270 = vmatpush1.msra.mxu0 0.0
    %2271 = vmatprep.subr.mxu0 0.0
    %2272 = vmatpush1.msra.mxu0 0.0
    %2273 = vmatprep.subr.mxu0 0.0
    %2274 = vmatpush1.msra.mxu0 0.0
    %2275 = vmatprep.subr.mxu0 0.0
    %2276 = vmatpush1.msra.mxu0 0.0
    %2277 = vmatprep.subr.mxu0 0.0
    %2278 = vmatpush1.msra.mxu0 0.0
    %2279 = vmatprep.subr.mxu0 0.0
    %2280 = vmatpush1.msra.mxu0 0.0
    %2281 = vmatprep.subr.mxu0 0.0
    %2282 = vmatpush1.msra.mxu0 0.0
    %2283 = vmatprep.mubr.f32.mxu0 0.0
    %2284 = vmatmul.mubr.f32.gmra.mrb[0].mxu0 %v2196
    %v2285 = vpop.f32.mrb[0].mxu0
    %v2286 = vadd.f32 0.0, %v2285
    %v2287 = vpop.f32.mrb[0].mxu0
    %2288 = vmatprep.mubr.f32.mxu0 0.0
    %2289 = vmatmul.mubr.f32.gmra.mrb[0].mxu0 %v2199
    %v2290 = vpop.f32.mrb[0].mxu0
    %v2291 = vadd.f32 0.0, %v2290
    %v2292 = vpop.f32.mrb[0].mxu0
    %2293 = vmatprep.mubr.f32.mxu0 0.0
    %2294 = vmatmul.mubr.f32.gmra.mrb[0].mxu0 %v2202
    %v2295 = vpop.f32.mrb[0].mxu0
    %v2296 = vadd.f32 0.0, %v2295
    %v2297 = vpop.f32.mrb[0].mxu0
    %2298 = vmatprep.mubr.f32.mxu0 0.0
    %2299 = vmatmul.mubr.f32.gmra.mrb[0].mxu0 %v2205
    %v2300 = vpop.f32.mrb[0].mxu0
    %v2301 = vadd.f32 0.0, %v2300
    %v2302 = vpop.f32.mrb[0].mxu0
    %2303 = vmatprep.mubr.f32.mxu0 0.0
    %2304 = vmatmul.mubr.f32.gmra.mrb[0].mxu0 %v2208
    %v2305 = vpop.f32.mrb[0].mxu0
    %v2306 = vadd.f32 0.0, %v2305
    %v2307 = vpop.f32.mrb[0].mxu0
    %2308 = vmatprep.mubr.f32.mxu0 0.0
    %2309 = vmatmul.mubr.f32.gmra.mrb[0].mxu0 %v2211
    %v2310 = vpop.f32.mrb[0].mxu0
    %v2311 = vadd.f32 0.0, %v2310
    %v2312 = vpop.f32.mrb[0].mxu0
    %2313 = vmatprep.mubr.f32.mxu0 0.0
    %2314 = vmatmul.mubr.f32.gmra.mrb[0].mxu0 %v2214
    %v2315 = vpop.f32.mrb[0].mxu0
    %v2316 = vadd.f32 0.0, %v2315
    %v2317 = vpop.f32.mrb[0].mxu0
    %2318 = vmatprep.mubr.f32.mxu0 0.0
    %2319 = vmatmul.mubr.f32.gmra.mrb[0].mxu0 %v2217
    %v2320 = vpop.f32.mrb[0].mxu0
    %v2321 = vadd.f32 0.0, %v2320
    %v2322 = vpop.f32.mrb[0].mxu0
    %2323 = vdwg.mxu0
    %v2325 = vsel %vm1169, %v2018, 0
    %v2328 = vsel %vm1169, %v2019, 0
    %v2331 = vsel %vm1169, %v2020, 0
    %v2334 = vsel %vm1169, %v2021, 0
    %v2337 = vsel %vm1169, %v2022, 0
    %v2340 = vsel %vm1169, %v2023, 0
    %v2343 = vsel %vm1169, %v2024, 0
    %v2346 = vsel %vm1169, %v2025, 0
    %2348 = vmatprep.subr.mxu0 0.0
    %2349 = vmatpush1.msra.mxu0 %v281
    %2350 = vmatprep.subr.mxu0 0.0
    %2351 = vmatpush1.msra.mxu0 %v282
    %2352 = vmatprep.subr.mxu0 0.0
    %2353 = vmatpush1.msra.mxu0 %v283
    %2354 = vmatprep.subr.mxu0 0.0
    %2355 = vmatpush1.msra.mxu0 %v284
    %2356 = vmatprep.subr.mxu0 0.0
    %2357 = vmatpush1.msra.mxu0 %v285
    %2358 = vmatprep.subr.mxu0 0.0
    %2359 = vmatpush1.msra.mxu0 %v286
    %2360 = vmatprep.subr.mxu0 0.0
    %2361 = vmatpush1.msra.mxu0 %v287
    %2362 = vmatprep.subr.mxu0 0.0
    %2363 = vmatpush1.msra.mxu0 %v288
    %2364 = vmatprep.subr.mxu0 0.0
    %2365 = vmatpush1.msra.mxu0 0.0
    %2366 = vmatprep.subr.mxu0 0.0
    %2367 = vmatpush1.msra.mxu0 0.0
    %2368 = vmatprep.subr.mxu0 0.0
    %2369 = vmatpush1.msra.mxu0 0.0
    %2370 = vmatprep.subr.mxu0 0.0
    %2371 = vmatpush1.msra.mxu0 0.0
    %2372 = vmatprep.subr.mxu0 0.0
    %2373 = vmatpush1.msra.mxu0 0.0
    %2374 = vmatprep.subr.mxu0 0.0
    %2375 = vmatpush1.msra.mxu0 0.0
    %2376 = vmatprep.subr.mxu0 0.0
    %2377 = vmatpush1.msra.mxu0 0.0
    %2378 = vmatprep.subr.mxu0 0.0
    %2379 = vmatpush1.msra.mxu0 0.0
    %2380 = vmatprep.subr.mxu0 0.0
    %2381 = vmatpush1.msra.mxu0 0.0
    %2382 = vmatprep.subr.mxu0 0.0
    %2383 = vmatpush1.msra.mxu0 0.0
    %2384 = vmatprep.subr.mxu0 0.0
    %2385 = vmatpush1.msra.mxu0 0.0
    %2386 = vmatprep.subr.mxu0 0.0
    %2387 = vmatpush1.msra.mxu0 0.0
    %2388 = vmatprep.subr.mxu0 0.0
    %2389 = vmatpush1.msra.mxu0 0.0
    %2390 = vmatprep.subr.mxu0 0.0
    %2391 = vmatpush1.msra.mxu0 0.0
    %2392 = vmatprep.subr.mxu0 0.0
    %2393 = vmatpush1.msra.mxu0 0.0
    %2394 = vmatprep.subr.mxu0 0.0
    %2395 = vmatpush1.msra.mxu0 0.0
    %2396 = vmatprep.subr.mxu0 0.0
    %2397 = vmatpush1.msra.mxu0 0.0
    %2398 = vmatprep.subr.mxu0 0.0
    %2399 = vmatpush1.msra.mxu0 0.0
    %2400 = vmatprep.subr.mxu0 0.0
    %2401 = vmatpush1.msra.mxu0 0.0
    %2402 = vmatprep.subr.mxu0 0.0
    %2403 = vmatpush1.msra.mxu0 0.0
    %2404 = vmatprep.subr.mxu0 0.0
    %2405 = vmatpush1.msra.mxu0 0.0
    %2406 = vmatprep.subr.mxu0 0.0
    %2407 = vmatpush1.msra.mxu0 0.0
    %2408 = vmatprep.subr.mxu0 0.0
    %2409 = vmatpush1.msra.mxu0 0.0
    %2410 = vmatprep.subr.mxu0 0.0
    %2411 = vmatpush1.msra.mxu0 0.0
    %2412 = vmatprep.mubr.f32.mxu0 0.0
    %2413 = vmatmul.mubr.f32.gmra.mrb[0].mxu0 %v2325
    %v2414 = vpop.f32.mrb[0].mxu0
    %v2415 = vadd.f32 0.0, %v2414
    %v2416 = vpop.f32.mrb[0].mxu0
    %2417 = vmatprep.mubr.f32.mxu0 0.0
    %2418 = vmatmul.mubr.f32.gmra.mrb[0].mxu0 %v2328
    %v2419 = vpop.f32.mrb[0].mxu0
    %v2420 = vadd.f32 0.0, %v2419
    %v2421 = vpop.f32.mrb[0].mxu0
    %2422 = vmatprep.mubr.f32.mxu0 0.0
    %2423 = vmatmul.mubr.f32.gmra.mrb[0].mxu0 %v2331
    %v2424 = vpop.f32.mrb[0].mxu0
    %v2425 = vadd.f32 0.0, %v2424
    %v2426 = vpop.f32.mrb[0].mxu0
    %2427 = vmatprep.mubr.f32.mxu0 0.0
    %2428 = vmatmul.mubr.f32.gmra.mrb[0].mxu0 %v2334
    %v2429 = vpop.f32.mrb[0].mxu0
    %v2430 = vadd.f32 0.0, %v2429
    %v2431 = vpop.f32.mrb[0].mxu0
    %2432 = vmatprep.mubr.f32.mxu0 0.0
    %2433 = vmatmul.mubr.f32.gmra.mrb[0].mxu0 %v2337
    %v2434 = vpop.f32.mrb[0].mxu0
    %v2435 = vadd.f32 0.0, %v2434
    %v2436 = vpop.f32.mrb[0].mxu0
    %2437 = vmatprep.mubr.f32.mxu0 0.0
    %2438 = vmatmul.mubr.f32.gmra.mrb[0].mxu0 %v2340
    %v2439 = vpop.f32.mrb[0].mxu0
    %v2440 = vadd.f32 0.0, %v2439
    %v2441 = vpop.f32.mrb[0].mxu0
    %2442 = vmatprep.mubr.f32.mxu0 0.0
    %2443 = vmatmul.mubr.f32.gmra.mrb[0].mxu0 %v2343
    %v2444 = vpop.f32.mrb[0].mxu0
    %v2445 = vadd.f32 0.0, %v2444
    %v2446 = vpop.f32.mrb[0].mxu0
    %2447 = vmatprep.mubr.f32.mxu0 0.0
    %2448 = vmatmul.mubr.f32.gmra.mrb[0].mxu0 %v2346
    %v2449 = vpop.f32.mrb[0].mxu0
    %v2450 = vadd.f32 0.0, %v2449
    %v2451 = vpop.f32.mrb[0].mxu0
    %2452 = vdwg.mxu0
    %v2454 = vsel %vm1169, %v2026, 0
    %v2457 = vsel %vm1169, %v2027, 0
    %v2460 = vsel %vm1169, %v2028, 0
    %v2463 = vsel %vm1169, %v2029, 0
    %v2466 = vsel %vm1169, %v2030, 0
    %v2469 = vsel %vm1169, %v2031, 0
    %v2472 = vsel %vm1169, %v2032, 0
    %v2475 = vsel %vm1169, %v2033, 0
    %2477 = vmatprep.subr.mxu0 0.0
    %2478 = vmatpush1.msra.mxu0 %v289
    %2479 = vmatprep.subr.mxu0 0.0
    %2480 = vmatpush1.msra.mxu0 %v290
    %2481 = vmatprep.subr.mxu0 0.0
    %2482 = vmatpush1.msra.mxu0 %v291
    %2483 = vmatprep.subr.mxu0 0.0
    %2484 = vmatpush1.msra.mxu0 %v292
    %2485 = vmatprep.subr.mxu0 0.0
    %2486 = vmatpush1.msra.mxu0 %v293
    %2487 = vmatprep.subr.mxu0 0.0
    %2488 = vmatpush1.msra.mxu0 %v294
    %2489 = vmatprep.subr.mxu0 0.0
    %2490 = vmatpush1.msra.mxu0 %v295
    %2491 = vmatprep.subr.mxu0 0.0
    %2492 = vmatpush1.msra.mxu0 %v296
    %2493 = vmatprep.subr.mxu0 0.0
    %2494 = vmatpush1.msra.mxu0 0.0
    %2495 = vmatprep.subr.mxu0 0.0
    %2496 = vmatpush1.msra.mxu0 0.0
    %2497 = vmatprep.subr.mxu0 0.0
    %2498 = vmatpush1.msra.mxu0 0.0
    %2499 = vmatprep.subr.mxu0 0.0
    %2500 = vmatpush1.msra.mxu0 0.0
    %2501 = vmatprep.subr.mxu0 0.0
    %2502 = vmatpush1.msra.mxu0 0.0
    %2503 = vmatprep.subr.mxu0 0.0
    %2504 = vmatpush1.msra.mxu0 0.0
    %2505 = vmatprep.subr.mxu0 0.0
    %2506 = vmatpush1.msra.mxu0 0.0
    %2507 = vmatprep.subr.mxu0 0.0
    %2508 = vmatpush1.msra.mxu0 0.0
    %2509 = vmatprep.subr.mxu0 0.0
    %2510 = vmatpush1.msra.mxu0 0.0
    %2511 = vmatprep.subr.mxu0 0.0
    %2512 = vmatpush1.msra.mxu0 0.0
    %2513 = vmatprep.subr.mxu0 0.0
    %2514 = vmatpush1.msra.mxu0 0.0
    %2515 = vmatprep.subr.mxu0 0.0
    %2516 = vmatpush1.msra.mxu0 0.0
    %2517 = vmatprep.subr.mxu0 0.0
    %2518 = vmatpush1.msra.mxu0 0.0
    %2519 = vmatprep.subr.mxu0 0.0
    %2520 = vmatpush1.msra.mxu0 0.0
    %2521 = vmatprep.subr.mxu0 0.0
    %2522 = vmatpush1.msra.mxu0 0.0
    %2523 = vmatprep.subr.mxu0 0.0
    %2524 = vmatpush1.msra.mxu0 0.0
    %2525 = vmatprep.subr.mxu0 0.0
    %2526 = vmatpush1.msra.mxu0 0.0
    %2527 = vmatprep.subr.mxu0 0.0
    %2528 = vmatpush1.msra.mxu0 0.0
    %2529 = vmatprep.subr.mxu0 0.0
    %2530 = vmatpush1.msra.mxu0 0.0
    %2531 = vmatprep.subr.mxu0 0.0
    %2532 = vmatpush1.msra.mxu0 0.0
    %2533 = vmatprep.subr.mxu0 0.0
    %2534 = vmatpush1.msra.mxu0 0.0
    %2535 = vmatprep.subr.mxu0 0.0
    %2536 = vmatpush1.msra.mxu0 0.0
    %2537 = vmatprep.subr.mxu0 0.0
    %2538 = vmatpush1.msra.mxu0 0.0
    %2539 = vmatprep.subr.mxu0 0.0
    %2540 = vmatpush1.msra.mxu0 0.0
    %2541 = vmatprep.mubr.f32.mxu0 0.0
    %2542 = vmatmul.mubr.f32.gmra.mrb[0].mxu0 %v2454
    %v2543 = vpop.f32.mrb[0].mxu0
    %v2544 = vadd.f32 0.0, %v2543
    %v2545 = vpop.f32.mrb[0].mxu0
    %2546 = vmatprep.mubr.f32.mxu0 0.0
    %2547 = vmatmul.mubr.f32.gmra.mrb[0].mxu0 %v2457
    %v2548 = vpop.f32.mrb[0].mxu0
    %v2549 = vadd.f32 0.0, %v2548
    %v2550 = vpop.f32.mrb[0].mxu0
    %2551 = vmatprep.mubr.f32.mxu0 0.0
    %2552 = vmatmul.mubr.f32.gmra.mrb[0].mxu0 %v2460
    %v2553 = vpop.f32.mrb[0].mxu0
    %v2554 = vadd.f32 0.0, %v2553
    %v2555 = vpop.f32.mrb[0].mxu0
    %2556 = vmatprep.mubr.f32.mxu0 0.0
    %2557 = vmatmul.mubr.f32.gmra.mrb[0].mxu0 %v2463
    %v2558 = vpop.f32.mrb[0].mxu0
    %v2559 = vadd.f32 0.0, %v2558
    %v2560 = vpop.f32.mrb[0].mxu0
    %2561 = vmatprep.mubr.f32.mxu0 0.0
    %2562 = vmatmul.mubr.f32.gmra.mrb[0].mxu0 %v2466
    %v2563 = vpop.f32.mrb[0].mxu0
    %v2564 = vadd.f32 0.0, %v2563
    %v2565 = vpop.f32.mrb[0].mxu0
    %2566 = vmatprep.mubr.f32.mxu0 0.0
    %2567 = vmatmul.mubr.f32.gmra.mrb[0].mxu0 %v2469
    %v2568 = vpop.f32.mrb[0].mxu0
    %v2569 = vadd.f32 0.0, %v2568
    %v2570 = vpop.f32.mrb[0].mxu0
    %2571 = vmatprep.mubr.f32.mxu0 0.0
    %2572 = vmatmul.mubr.f32.gmra.mrb[0].mxu0 %v2472
    %v2573 = vpop.f32.mrb[0].mxu0
    %v2574 = vadd.f32 0.0, %v2573
    %v2575 = vpop.f32.mrb[0].mxu0
    %2576 = vmatprep.mubr.f32.mxu0 0.0
    %2577 = vmatmul.mubr.f32.gmra.mrb[0].mxu0 %v2475
    %v2578 = vpop.f32.mrb[0].mxu0
    %v2579 = vadd.f32 0.0, %v2578
    %v2580 = vpop.f32.mrb[0].mxu0
    %2581 = vdwg.mxu0
    %v2583 = vsel %vm1169, %v2034, 0
    %v2586 = vsel %vm1169, %v2035, 0
    %v2589 = vsel %vm1169, %v2036, 0
    %v2592 = vsel %vm1169, %v2037, 0
    %v2595 = vsel %vm1169, %v2038, 0
    %v2598 = vsel %vm1169, %v2039, 0
    %v2601 = vsel %vm1169, %v2040, 0
    %v2604 = vsel %vm1169, %v2041, 0
    %2606 = vmatprep.subr.mxu0 0.0
    %2607 = vmatpush1.msra.mxu0 %v297
    %2608 = vmatprep.subr.mxu0 0.0
    %2609 = vmatpush1.msra.mxu0 %v298
    %2610 = vmatprep.subr.mxu0 0.0
    %2611 = vmatpush1.msra.mxu0 %v299
    %2612 = vmatprep.subr.mxu0 0.0
    %2613 = vmatpush1.msra.mxu0 %v300
    %2614 = vmatprep.subr.mxu0 0.0
    %2615 = vmatpush1.msra.mxu0 %v301
    %2616 = vmatprep.subr.mxu0 0.0
    %2617 = vmatpush1.msra.mxu0 %v302
    %2618 = vmatprep.subr.mxu0 0.0
    %2619 = vmatpush1.msra.mxu0 %v303
    %2620 = vmatprep.subr.mxu0 0.0
    %2621 = vmatpush1.msra.mxu0 %v304
    %2622 = vmatprep.subr.mxu0 0.0
    %2623 = vmatpush1.msra.mxu0 0.0
    %2624 = vmatprep.subr.mxu0 0.0
    %2625 = vmatpush1.msra.mxu0 0.0
    %2626 = vmatprep.subr.mxu0 0.0
    %2627 = vmatpush1.msra.mxu0 0.0
    %2628 = vmatprep.subr.mxu0 0.0
    %2629 = vmatpush1.msra.mxu0 0.0
    %2630 = vmatprep.subr.mxu0 0.0
    %2631 = vmatpush1.msra.mxu0 0.0
    %2632 = vmatprep.subr.mxu0 0.0
    %2633 = vmatpush1.msra.mxu0 0.0
    %2634 = vmatprep.subr.mxu0 0.0
    %2635 = vmatpush1.msra.mxu0 0.0
    %2636 = vmatprep.subr.mxu0 0.0
    %2637 = vmatpush1.msra.mxu0 0.0
    %2638 = vmatprep.subr.mxu0 0.0
    %2639 = vmatpush1.msra.mxu0 0.0
    %2640 = vmatprep.subr.mxu0 0.0
    %2641 = vmatpush1.msra.mxu0 0.0
    %2642 = vmatprep.subr.mxu0 0.0
    %2643 = vmatpush1.msra.mxu0 0.0
    %2644 = vmatprep.subr.mxu0 0.0
    %2645 = vmatpush1.msra.mxu0 0.0
    %2646 = vmatprep.subr.mxu0 0.0
    %2647 = vmatpush1.msra.mxu0 0.0
    %2648 = vmatprep.subr.mxu0 0.0
    %2649 = vmatpush1.msra.mxu0 0.0
    %2650 = vmatprep.subr.mxu0 0.0
    %2651 = vmatpush1.msra.mxu0 0.0
    %2652 = vmatprep.subr.mxu0 0.0
    %2653 = vmatpush1.msra.mxu0 0.0
    %2654 = vmatprep.subr.mxu0 0.0
    %2655 = vmatpush1.msra.mxu0 0.0
    %2656 = vmatprep.subr.mxu0 0.0
    %2657 = vmatpush1.msra.mxu0 0.0
    %2658 = vmatprep.subr.mxu0 0.0
    %2659 = vmatpush1.msra.mxu0 0.0
    %2660 = vmatprep.subr.mxu0 0.0
    %2661 = vmatpush1.msra.mxu0 0.0
    %2662 = vmatprep.subr.mxu0 0.0
    %2663 = vmatpush1.msra.mxu0 0.0
    %2664 = vmatprep.subr.mxu0 0.0
    %2665 = vmatpush1.msra.mxu0 0.0
    %2666 = vmatprep.subr.mxu0 0.0
    %2667 = vmatpush1.msra.mxu0 0.0
    %2668 = vmatprep.subr.mxu0 0.0
    %2669 = vmatpush1.msra.mxu0 0.0
    %2670 = vmatprep.mubr.f32.mxu0 0.0
    %2671 = vmatmul.mubr.f32.gmra.mrb[0].mxu0 %v2583
    %v2672 = vpop.f32.mrb[0].mxu0
    %v2673 = vadd.f32 0.0, %v2672
    %v2674 = vpop.f32.mrb[0].mxu0
    %2675 = vmatprep.mubr.f32.mxu0 0.0
    %2676 = vmatmul.mubr.f32.gmra.mrb[0].mxu0 %v2586
    %v2677 = vpop.f32.mrb[0].mxu0
    %v2678 = vadd.f32 0.0, %v2677
    %v2679 = vpop.f32.mrb[0].mxu0
    %2680 = vmatprep.mubr.f32.mxu0 0.0
    %2681 = vmatmul.mubr.f32.gmra.mrb[0].mxu0 %v2589
    %v2682 = vpop.f32.mrb[0].mxu0
    %v2683 = vadd.f32 0.0, %v2682
    %v2684 = vpop.f32.mrb[0].mxu0
    %2685 = vmatprep.mubr.f32.mxu0 0.0
    %2686 = vmatmul.mubr.f32.gmra.mrb[0].mxu0 %v2592
    %v2687 = vpop.f32.mrb[0].mxu0
    %v2688 = vadd.f32 0.0, %v2687
    %v2689 = vpop.f32.mrb[0].mxu0
    %2690 = vmatprep.mubr.f32.mxu0 0.0
    %2691 = vmatmul.mubr.f32.gmra.mrb[0].mxu0 %v2595
    %v2692 = vpop.f32.mrb[0].mxu0
    %v2693 = vadd.f32 0.0, %v2692
    %v2694 = vpop.f32.mrb[0].mxu0
    %2695 = vmatprep.mubr.f32.mxu0 0.0
    %2696 = vmatmul.mubr.f32.gmra.mrb[0].mxu0 %v2598
    %v2697 = vpop.f32.mrb[0].mxu0
    %v2698 = vadd.f32 0.0, %v2697
    %v2699 = vpop.f32.mrb[0].mxu0
    %2700 = vmatprep.mubr.f32.mxu0 0.0
    %2701 = vmatmul.mubr.f32.gmra.mrb[0].mxu0 %v2601
    %v2702 = vpop.f32.mrb[0].mxu0
    %v2703 = vadd.f32 0.0, %v2702
    %v2704 = vpop.f32.mrb[0].mxu0
    %2705 = vmatprep.mubr.f32.mxu0 0.0
    %2706 = vmatmul.mubr.f32.gmra.mrb[0].mxu0 %v2604
    %v2707 = vpop.f32.mrb[0].mxu0
    %v2708 = vadd.f32 0.0, %v2707
    %v2709 = vpop.f32.mrb[0].mxu0
    %2710 = vdwg.mxu0
    %v2712 = vsel %vm1169, %v2042, 0
    %v2715 = vsel %vm1169, %v2043, 0
    %v2718 = vsel %vm1169, %v2044, 0
    %v2721 = vsel %vm1169, %v2045, 0
    %v2724 = vsel %vm1169, %v2046, 0
    %v2727 = vsel %vm1169, %v2047, 0
    %v2730 = vsel %vm1169, %v2048, 0
    %v2733 = vsel %vm1169, %v2049, 0
    %2735 = vmatprep.subr.mxu0 0.0
    %2736 = vmatpush1.msra.mxu0 %v305
    %2737 = vmatprep.subr.mxu0 0.0
    %2738 = vmatpush1.msra.mxu0 %v306
    %2739 = vmatprep.subr.mxu0 0.0
    %2740 = vmatpush1.msra.mxu0 %v307
    %2741 = vmatprep.subr.mxu0 0.0
    %2742 = vmatpush1.msra.mxu0 %v308
    %2743 = vmatprep.subr.mxu0 0.0
    %2744 = vmatpush1.msra.mxu0 %v309
    %2745 = vmatprep.subr.mxu0 0.0
    %2746 = vmatpush1.msra.mxu0 %v310
    %2747 = vmatprep.subr.mxu0 0.0
    %2748 = vmatpush1.msra.mxu0 %v311
    %2749 = vmatprep.subr.mxu0 0.0
    %2750 = vmatpush1.msra.mxu0 %v312
    %2751 = vmatprep.subr.mxu0 0.0
    %2752 = vmatpush1.msra.mxu0 0.0
    %2753 = vmatprep.subr.mxu0 0.0
    %2754 = vmatpush1.msra.mxu0 0.0
    %2755 = vmatprep.subr.mxu0 0.0
    %2756 = vmatpush1.msra.mxu0 0.0
    %2757 = vmatprep.subr.mxu0 0.0
    %2758 = vmatpush1.msra.mxu0 0.0
    %2759 = vmatprep.subr.mxu0 0.0
    %2760 = vmatpush1.msra.mxu0 0.0
    %2761 = vmatprep.subr.mxu0 0.0
    %2762 = vmatpush1.msra.mxu0 0.0
    %2763 = vmatprep.subr.mxu0 0.0
    %2764 = vmatpush1.msra.mxu0 0.0
    %2765 = vmatprep.subr.mxu0 0.0
    %2766 = vmatpush1.msra.mxu0 0.0
    %2767 = vmatprep.subr.mxu0 0.0
    %2768 = vmatpush1.msra.mxu0 0.0
    %2769 = vmatprep.subr.mxu0 0.0
    %2770 = vmatpush1.msra.mxu0 0.0
    %2771 = vmatprep.subr.mxu0 0.0
    %2772 = vmatpush1.msra.mxu0 0.0
    %2773 = vmatprep.subr.mxu0 0.0
    %2774 = vmatpush1.msra.mxu0 0.0
    %2775 = vmatprep.subr.mxu0 0.0
    %2776 = vmatpush1.msra.mxu0 0.0
    %2777 = vmatprep.subr.mxu0 0.0
    %2778 = vmatpush1.msra.mxu0 0.0
    %2779 = vmatprep.subr.mxu0 0.0
    %2780 = vmatpush1.msra.mxu0 0.0
    %2781 = vmatprep.subr.mxu0 0.0
    %2782 = vmatpush1.msra.mxu0 0.0
    %2783 = vmatprep.subr.mxu0 0.0
    %2784 = vmatpush1.msra.mxu0 0.0
    %2785 = vmatprep.subr.mxu0 0.0
    %2786 = vmatpush1.msra.mxu0 0.0
    %2787 = vmatprep.subr.mxu0 0.0
    %2788 = vmatpush1.msra.mxu0 0.0
    %2789 = vmatprep.subr.mxu0 0.0
    %2790 = vmatpush1.msra.mxu0 0.0
    %2791 = vmatprep.subr.mxu0 0.0
    %2792 = vmatpush1.msra.mxu0 0.0
    %2793 = vmatprep.subr.mxu0 0.0
    %2794 = vmatpush1.msra.mxu0 0.0
    %2795 = vmatprep.subr.mxu0 0.0
    %2796 = vmatpush1.msra.mxu0 0.0
    %2797 = vmatprep.subr.mxu0 0.0
    %2798 = vmatpush1.msra.mxu0 0.0
    %2799 = vmatprep.mubr.f32.mxu0 0.0
    %2800 = vmatmul.mubr.f32.gmra.mrb[0].mxu0 %v2712
    %v2801 = vpop.f32.mrb[0].mxu0
    %v2802 = vadd.f32 0.0, %v2801
    %v2803 = vpop.f32.mrb[0].mxu0
    %2804 = vmatprep.mubr.f32.mxu0 0.0
    %2805 = vmatmul.mubr.f32.gmra.mrb[0].mxu0 %v2715
    %v2806 = vpop.f32.mrb[0].mxu0
    %v2807 = vadd.f32 0.0, %v2806
    %v2808 = vpop.f32.mrb[0].mxu0
    %2809 = vmatprep.mubr.f32.mxu0 0.0
    %2810 = vmatmul.mubr.f32.gmra.mrb[0].mxu0 %v2718
    %v2811 = vpop.f32.mrb[0].mxu0
    %v2812 = vadd.f32 0.0, %v2811
    %v2813 = vpop.f32.mrb[0].mxu0
    %2814 = vmatprep.mubr.f32.mxu0 0.0
    %2815 = vmatmul.mubr.f32.gmra.mrb[0].mxu0 %v2721
    %v2816 = vpop.f32.mrb[0].mxu0
    %v2817 = vadd.f32 0.0, %v2816
    %v2818 = vpop.f32.mrb[0].mxu0
    %2819 = vmatprep.mubr.f32.mxu0 0.0
    %2820 = vmatmul.mubr.f32.gmra.mrb[0].mxu0 %v2724
    %v2821 = vpop.f32.mrb[0].mxu0
    %v2822 = vadd.f32 0.0, %v2821
    %v2823 = vpop.f32.mrb[0].mxu0
    %2824 = vmatprep.mubr.f32.mxu0 0.0
    %2825 = vmatmul.mubr.f32.gmra.mrb[0].mxu0 %v2727
    %v2826 = vpop.f32.mrb[0].mxu0
    %v2827 = vadd.f32 0.0, %v2826
    %v2828 = vpop.f32.mrb[0].mxu0
    %2829 = vmatprep.mubr.f32.mxu0 0.0
    %2830 = vmatmul.mubr.f32.gmra.mrb[0].mxu0 %v2730
    %v2831 = vpop.f32.mrb[0].mxu0
    %v2832 = vadd.f32 0.0, %v2831
    %v2833 = vpop.f32.mrb[0].mxu0
    %2834 = vmatprep.mubr.f32.mxu0 0.0
    %2835 = vmatmul.mubr.f32.gmra.mrb[0].mxu0 %v2733
    %v2836 = vpop.f32.mrb[0].mxu0
    %v2837 = vadd.f32 0.0, %v2836
    %v2838 = vpop.f32.mrb[0].mxu0
    %2839 = vdwg.mxu0
    %v2841 = vsel %vm1169, %v2050, 0
    %v2844 = vsel %vm1169, %v2051, 0
    %v2847 = vsel %vm1169, %v2052, 0
    %v2850 = vsel %vm1169, %v2053, 0
    %v2853 = vsel %vm1169, %v2054, 0
    %v2856 = vsel %vm1169, %v2055, 0
    %v2859 = vsel %vm1169, %v2056, 0
    %v2862 = vsel %vm1169, %v2057, 0
    %2864 = vmatprep.subr.mxu0 0.0
    %2865 = vmatpush1.msra.mxu0 %v313
    %2866 = vmatprep.subr.mxu0 0.0
    %2867 = vmatpush1.msra.mxu0 %v314
    %2868 = vmatprep.subr.mxu0 0.0
    %2869 = vmatpush1.msra.mxu0 %v315
    %2870 = vmatprep.subr.mxu0 0.0
    %2871 = vmatpush1.msra.mxu0 %v316
    %2872 = vmatprep.subr.mxu0 0.0
    %2873 = vmatpush1.msra.mxu0 %v317
    %2874 = vmatprep.subr.mxu0 0.0
    %2875 = vmatpush1.msra.mxu0 %v318
    %2876 = vmatprep.subr.mxu0 0.0
    %2877 = vmatpush1.msra.mxu0 %v319
    %2878 = vmatprep.subr.mxu0 0.0
    %2879 = vmatpush1.msra.mxu0 %v320
    %2880 = vmatprep.subr.mxu0 0.0
    %2881 = vmatpush1.msra.mxu0 0.0
    %2882 = vmatprep.subr.mxu0 0.0
    %2883 = vmatpush1.msra.mxu0 0.0
    %2884 = vmatprep.subr.mxu0 0.0
    %2885 = vmatpush1.msra.mxu0 0.0
    %2886 = vmatprep.subr.mxu0 0.0
    %2887 = vmatpush1.msra.mxu0 0.0
    %2888 = vmatprep.subr.mxu0 0.0
    %2889 = vmatpush1.msra.mxu0 0.0
    %2890 = vmatprep.subr.mxu0 0.0
    %2891 = vmatpush1.msra.mxu0 0.0
    %2892 = vmatprep.subr.mxu0 0.0
    %2893 = vmatpush1.msra.mxu0 0.0
    %2894 = vmatprep.subr.mxu0 0.0
    %2895 = vmatpush1.msra.mxu0 0.0
    %2896 = vmatprep.subr.mxu0 0.0
    %2897 = vmatpush1.msra.mxu0 0.0
    %2898 = vmatprep.subr.mxu0 0.0
    %2899 = vmatpush1.msra.mxu0 0.0
    %2900 = vmatprep.subr.mxu0 0.0
    %2901 = vmatpush1.msra.mxu0 0.0
    %2902 = vmatprep.subr.mxu0 0.0
    %2903 = vmatpush1.msra.mxu0 0.0
    %2904 = vmatprep.subr.mxu0 0.0
    %2905 = vmatpush1.msra.mxu0 0.0
    %2906 = vmatprep.subr.mxu0 0.0
    %2907 = vmatpush1.msra.mxu0 0.0
    %2908 = vmatprep.subr.mxu0 0.0
    %2909 = vmatpush1.msra.mxu0 0.0
    %2910 = vmatprep.subr.mxu0 0.0
    %2911 = vmatpush1.msra.mxu0 0.0
    %2912 = vmatprep.subr.mxu0 0.0
    %2913 = vmatpush1.msra.mxu0 0.0
    %2914 = vmatprep.subr.mxu0 0.0
    %2915 = vmatpush1.msra.mxu0 0.0
    %2916 = vmatprep.subr.mxu0 0.0
    %2917 = vmatpush1.msra.mxu0 0.0
    %2918 = vmatprep.subr.mxu0 0.0
    %2919 = vmatpush1.msra.mxu0 0.0
    %2920 = vmatprep.subr.mxu0 0.0
    %2921 = vmatpush1.msra.mxu0 0.0
    %2922 = vmatprep.subr.mxu0 0.0
    %2923 = vmatpush1.msra.mxu0 0.0
    %2924 = vmatprep.subr.mxu0 0.0
    %2925 = vmatpush1.msra.mxu0 0.0
    %2926 = vmatprep.subr.mxu0 0.0
    %2927 = vmatpush1.msra.mxu0 0.0
    %2928 = vmatprep.mubr.f32.mxu0 0.0
    %2929 = vmatmul.mubr.f32.gmra.mrb[0].mxu0 %v2841
    %v2930 = vpop.f32.mrb[0].mxu0
    %v2931 = vadd.f32 0.0, %v2930
    %v2932 = vpop.f32.mrb[0].mxu0
    %2933 = vmatprep.mubr.f32.mxu0 0.0
    %2934 = vmatmul.mubr.f32.gmra.mrb[0].mxu0 %v2844
    %v2935 = vpop.f32.mrb[0].mxu0
    %v2936 = vadd.f32 0.0, %v2935
    %v2937 = vpop.f32.mrb[0].mxu0
    %2938 = vmatprep.mubr.f32.mxu0 0.0
    %2939 = vmatmul.mubr.f32.gmra.mrb[0].mxu0 %v2847
    %v2940 = vpop.f32.mrb[0].mxu0
    %v2941 = vadd.f32 0.0, %v2940
    %v2942 = vpop.f32.mrb[0].mxu0
    %2943 = vmatprep.mubr.f32.mxu0 0.0
    %2944 = vmatmul.mubr.f32.gmra.mrb[0].mxu0 %v2850
    %v2945 = vpop.f32.mrb[0].mxu0
    %v2946 = vadd.f32 0.0, %v2945
    %v2947 = vpop.f32.mrb[0].mxu0
    %2948 = vmatprep.mubr.f32.mxu0 0.0
    %2949 = vmatmul.mubr.f32.gmra.mrb[0].mxu0 %v2853
    %v2950 = vpop.f32.mrb[0].mxu0
    %v2951 = vadd.f32 0.0, %v2950
    %v2952 = vpop.f32.mrb[0].mxu0
    %2953 = vmatprep.mubr.f32.mxu0 0.0
    %2954 = vmatmul.mubr.f32.gmra.mrb[0].mxu0 %v2856
    %v2955 = vpop.f32.mrb[0].mxu0
    %v2956 = vadd.f32 0.0, %v2955
    %v2957 = vpop.f32.mrb[0].mxu0
    %2958 = vmatprep.mubr.f32.mxu0 0.0
    %2959 = vmatmul.mubr.f32.gmra.mrb[0].mxu0 %v2859
    %v2960 = vpop.f32.mrb[0].mxu0
    %v2961 = vadd.f32 0.0, %v2960
    %v2962 = vpop.f32.mrb[0].mxu0
    %2963 = vmatprep.mubr.f32.mxu0 0.0
    %2964 = vmatmul.mubr.f32.gmra.mrb[0].mxu0 %v2862
    %v2965 = vpop.f32.mrb[0].mxu0
    %v2966 = vadd.f32 0.0, %v2965
    %v2967 = vpop.f32.mrb[0].mxu0
    %2968 = vdwg.mxu0
    %v2970 = vsel %vm1169, %v2058, 0
    %v2973 = vsel %vm1169, %v2059, 0
    %v2976 = vsel %vm1169, %v2060, 0
    %v2979 = vsel %vm1169, %v2061, 0
    %v2982 = vsel %vm1169, %v2062, 0
    %v2985 = vsel %vm1169, %v2063, 0
    %v2988 = vsel %vm1169, %v2064, 0
    %v2991 = vsel %vm1169, %v2065, 0
    %2993 = vmatprep.subr.mxu0 0.0
    %2994 = vmatpush1.msra.mxu0 %v321
    %2995 = vmatprep.subr.mxu0 0.0
    %2996 = vmatpush1.msra.mxu0 %v322
    %2997 = vmatprep.subr.mxu0 0.0
    %2998 = vmatpush1.msra.mxu0 %v323
    %2999 = vmatprep.subr.mxu0 0.0
    %3000 = vmatpush1.msra.mxu0 %v324
    %3001 = vmatprep.subr.mxu0 0.0
    %3002 = vmatpush1.msra.mxu0 %v325
    %3003 = vmatprep.subr.mxu0 0.0
    %3004 = vmatpush1.msra.mxu0 %v326
    %3005 = vmatprep.subr.mxu0 0.0
    %3006 = vmatpush1.msra.mxu0 %v327
    %3007 = vmatprep.subr.mxu0 0.0
    %3008 = vmatpush1.msra.mxu0 %v328
    %3009 = vmatprep.subr.mxu0 0.0
    %3010 = vmatpush1.msra.mxu0 0.0
    %3011 = vmatprep.subr.mxu0 0.0
    %3012 = vmatpush1.msra.mxu0 0.0
    %3013 = vmatprep.subr.mxu0 0.0
    %3014 = vmatpush1.msra.mxu0 0.0
    %3015 = vmatprep.subr.mxu0 0.0
    %3016 = vmatpush1.msra.mxu0 0.0
    %3017 = vmatprep.subr.mxu0 0.0
    %3018 = vmatpush1.msra.mxu0 0.0
    %3019 = vmatprep.subr.mxu0 0.0
    %3020 = vmatpush1.msra.mxu0 0.0
    %3021 = vmatprep.subr.mxu0 0.0
    %3022 = vmatpush1.msra.mxu0 0.0
    %3023 = vmatprep.subr.mxu0 0.0
    %3024 = vmatpush1.msra.mxu0 0.0
    %3025 = vmatprep.subr.mxu0 0.0
    %3026 = vmatpush1.msra.mxu0 0.0
    %3027 = vmatprep.subr.mxu0 0.0
    %3028 = vmatpush1.msra.mxu0 0.0
    %3029 = vmatprep.subr.mxu0 0.0
    %3030 = vmatpush1.msra.mxu0 0.0
    %3031 = vmatprep.subr.mxu0 0.0
    %3032 = vmatpush1.msra.mxu0 0.0
    %3033 = vmatprep.subr.mxu0 0.0
    %3034 = vmatpush1.msra.mxu0 0.0
    %3035 = vmatprep.subr.mxu0 0.0
    %3036 = vmatpush1.msra.mxu0 0.0
    %3037 = vmatprep.subr.mxu0 0.0
    %3038 = vmatpush1.msra.mxu0 0.0
    %3039 = vmatprep.subr.mxu0 0.0
    %3040 = vmatpush1.msra.mxu0 0.0
    %3041 = vmatprep.subr.mxu0 0.0
    %3042 = vmatpush1.msra.mxu0 0.0
    %3043 = vmatprep.subr.mxu0 0.0
    %3044 = vmatpush1.msra.mxu0 0.0
    %3045 = vmatprep.subr.mxu0 0.0
    %3046 = vmatpush1.msra.mxu0 0.0
    %3047 = vmatprep.subr.mxu0 0.0
    %3048 = vmatpush1.msra.mxu0 0.0
    %3049 = vmatprep.subr.mxu0 0.0
    %3050 = vmatpush1.msra.mxu0 0.0
    %3051 = vmatprep.subr.mxu0 0.0
    %3052 = vmatpush1.msra.mxu0 0.0
    %3053 = vmatprep.subr.mxu0 0.0
    %3054 = vmatpush1.msra.mxu0 0.0
    %3055 = vmatprep.subr.mxu0 0.0
    %3056 = vmatpush1.msra.mxu0 0.0
    %3057 = vmatprep.mubr.f32.mxu0 0.0
    %3058 = vmatmul.mubr.f32.gmra.mrb[0].mxu0 %v2970
    %v3059 = vpop.f32.mrb[0].mxu0
    %v3060 = vadd.f32 0.0, %v3059
    %v3061 = vpop.f32.mrb[0].mxu0
    %3062 = vmatprep.mubr.f32.mxu0 0.0
    %3063 = vmatmul.mubr.f32.gmra.mrb[0].mxu0 %v2973
    %v3064 = vpop.f32.mrb[0].mxu0
    %v3065 = vadd.f32 0.0, %v3064
    %v3066 = vpop.f32.mrb[0].mxu0
    %3067 = vmatprep.mubr.f32.mxu0 0.0
    %3068 = vmatmul.mubr.f32.gmra.mrb[0].mxu0 %v2976
    %v3069 = vpop.f32.mrb[0].mxu0
    %v3070 = vadd.f32 0.0, %v3069
    %v3071 = vpop.f32.mrb[0].mxu0
    %3072 = vmatprep.mubr.f32.mxu0 0.0
    %3073 = vmatmul.mubr.f32.gmra.mrb[0].mxu0 %v2979
    %v3074 = vpop.f32.mrb[0].mxu0
    %v3075 = vadd.f32 0.0, %v3074
    %v3076 = vpop.f32.mrb[0].mxu0
    %3077 = vmatprep.mubr.f32.mxu0 0.0
    %3078 = vmatmul.mubr.f32.gmra.mrb[0].mxu0 %v2982
    %v3079 = vpop.f32.mrb[0].mxu0
    %v3080 = vadd.f32 0.0, %v3079
    %v3081 = vpop.f32.mrb[0].mxu0
    %3082 = vmatprep.mubr.f32.mxu0 0.0
    %3083 = vmatmul.mubr.f32.gmra.mrb[0].mxu0 %v2985
    %v3084 = vpop.f32.mrb[0].mxu0
    %v3085 = vadd.f32 0.0, %v3084
    %v3086 = vpop.f32.mrb[0].mxu0
    %3087 = vmatprep.mubr.f32.mxu0 0.0
    %3088 = vmatmul.mubr.f32.gmra.mrb[0].mxu0 %v2988
    %v3089 = vpop.f32.mrb[0].mxu0
    %v3090 = vadd.f32 0.0, %v3089
    %v3091 = vpop.f32.mrb[0].mxu0
    %3092 = vmatprep.mubr.f32.mxu0 0.0
    %3093 = vmatmul.mubr.f32.gmra.mrb[0].mxu0 %v2991
    %v3094 = vpop.f32.mrb[0].mxu0
    %v3095 = vadd.f32 0.0, %v3094
    %v3096 = vpop.f32.mrb[0].mxu0
    %3097 = vdwg.mxu0
    %3098 = vst [vmem:[#allocation10] sm:$0xff] %v2157
    %3099 = vst [vmem:[#allocation10 + $0x8] sm:$0xff] %v2162
    %3100 = vst [vmem:[#allocation10 + $0x10] sm:$0xff] %v2167
    %3101 = vst [vmem:[#allocation10 + $0x18] sm:$0xff] %v2172
    %3102 = vst [vmem:[#allocation10 + $0x20] sm:$0xff] %v2177
    %3103 = vst [vmem:[#allocation10 + $0x28] sm:$0xff] %v2182
    %3104 = vst [vmem:[#allocation10 + $0x30] sm:$0xff] %v2187
    %3105 = vst [vmem:[#allocation10 + $0x38] sm:$0xff] %v2192
    %3106 = vst [vmem:[#allocation10 + $0x40] sm:$0xff] %v2286
    %3107 = vst [vmem:[#allocation10 + $0x48] sm:$0xff] %v2291
    %3108 = vst [vmem:[#allocation10 + $0x50] sm:$0xff] %v2296
    %3109 = vst [vmem:[#allocation10 + $0x58] sm:$0xff] %v2301
    %3110 = vst [vmem:[#allocation10 + $0x60] sm:$0xff] %v2306
    %3111 = vst [vmem:[#allocation10 + $0x68] sm:$0xff] %v2311
    %3112 = vst [vmem:[#allocation10 + $0x70] sm:$0xff] %v2316
    %3113 = vst [vmem:[#allocation10 + $0x78] sm:$0xff] %v2321
    %3114 = vst [vmem:[#allocation10 + $0x80] sm:$0xff] %v2415
    %3115 = vst [vmem:[#allocation10 + $0x88] sm:$0xff] %v2420
    %3116 = vst [vmem:[#allocation10 + $0x90] sm:$0xff] %v2425
    %3117 = vst [vmem:[#allocation10 + $0x98] sm:$0xff] %v2430
    %3118 = vst [vmem:[#allocation10 + $0xa0] sm:$0xff] %v2435
    %3119 = vst [vmem:[#allocation10 + $0xa8] sm:$0xff] %v2440
    %3120 = vst [vmem:[#allocation10 + $0xb0] sm:$0xff] %v2445
    %3121 = vst [vmem:[#allocation10 + $0xb8] sm:$0xff] %v2450
    %3122 = vst [vmem:[#allocation10 + $0xc0] sm:$0xff] %v2544
    %3123 = vst [vmem:[#allocation10 + $0xc8] sm:$0xff] %v2549
    %3124 = vst [vmem:[#allocation10 + $0xd0] sm:$0xff] %v2554
    %3125 = vst [vmem:[#allocation10 + $0xd8] sm:$0xff] %v2559
    %3126 = vst [vmem:[#allocation10 + $0xe0] sm:$0xff] %v2564
    %3127 = vst [vmem:[#allocation10 + $0xe8] sm:$0xff] %v2569
    %3128 = vst [vmem:[#allocation10 + $0xf0] sm:$0xff] %v2574
    %3129 = vst [vmem:[#allocation10 + $0xf8] sm:$0xff] %v2579
    %3130 = vst [vmem:[#allocation10 + $0x100] sm:$0xff] %v2673
    %3131 = vst [vmem:[#allocation10 + $0x108] sm:$0xff] %v2678
    %3132 = vst [vmem:[#allocation10 + $0x110] sm:$0xff] %v2683
    %3133 = vst [vmem:[#allocation10 + $0x118] sm:$0xff] %v2688
    %3134 = vst [vmem:[#allocation10 + $0x120] sm:$0xff] %v2693
    %3135 = vst [vmem:[#allocation10 + $0x128] sm:$0xff] %v2698
    %3136 = vst [vmem:[#allocation10 + $0x130] sm:$0xff] %v2703
    %3137 = vst [vmem:[#allocation10 + $0x138] sm:$0xff] %v2708
    %3138 = vst [vmem:[#allocation10 + $0x140] sm:$0xff] %v2802
    %3139 = vst [vmem:[#allocation10 + $0x148] sm:$0xff] %v2807
    %3140 = vst [vmem:[#allocation10 + $0x150] sm:$0xff] %v2812
    %3141 = vst [vmem:[#allocation10 + $0x158] sm:$0xff] %v2817
    %3142 = vst [vmem:[#allocation10 + $0x160] sm:$0xff] %v2822
    %3143 = vst [vmem:[#allocation10 + $0x168] sm:$0xff] %v2827
    %3144 = vst [vmem:[#allocation10 + $0x170] sm:$0xff] %v2832
    %3145 = vst [vmem:[#allocation10 + $0x178] sm:$0xff] %v2837
    %3146 = vst [vmem:[#allocation10 + $0x180] sm:$0xff] %v2931
    %3147 = vst [vmem:[#allocation10 + $0x188] sm:$0xff] %v2936
    %3148 = vst [vmem:[#allocation10 + $0x190] sm:$0xff] %v2941
    %3149 = vst [vmem:[#allocation10 + $0x198] sm:$0xff] %v2946
    %3150 = vst [vmem:[#allocation10 + $0x1a0] sm:$0xff] %v2951
    %3151 = vst [vmem:[#allocation10 + $0x1a8] sm:$0xff] %v2956
    %3152 = vst [vmem:[#allocation10 + $0x1b0] sm:$0xff] %v2961
    %3153 = vst [vmem:[#allocation10 + $0x1b8] sm:$0xff] %v2966
    %3154 = vst [vmem:[#allocation10 + $0x1c0] sm:$0xff] %v3060
    %3155 = vst [vmem:[#allocation10 + $0x1c8] sm:$0xff] %v3065
    %3156 = vst [vmem:[#allocation10 + $0x1d0] sm:$0xff] %v3070
    %3157 = vst [vmem:[#allocation10 + $0x1d8] sm:$0xff] %v3075
    %3158 = vst [vmem:[#allocation10 + $0x1e0] sm:$0xff] %v3080
    %3159 = vst [vmem:[#allocation10 + $0x1e8] sm:$0xff] %v3085
    %3160 = vst [vmem:[#allocation10 + $0x1f0] sm:$0xff] %v3090
    %3161 = vst [vmem:[#allocation10 + $0x1f8] sm:$0xff] %v3095
    // Predicated region
    $region34: #{tpu_custom_call.1} parent=1 // pred_check
      _
    $region35: #{tpu_custom_call.1} parent=1 // pred_check_branch
      %3163 = sbr.rel (0) target = $region37
    $region36: #{tpu_custom_call.1} parent=1 // pred_region
      %s3165 = ssub.s32 8192, 8192
      %3166 = vsyncadd [#allocation4], %s3165
      %s3167 = sshll.u32 [#allocation10], 4
      %s3168 = int_to_ptr.vmem [resolvable:$true] %s3167
      %3173 = dma.vmem_to_hbm [thread:$0]  %s3168, 8192, %s4, [#allocation4], 128, 128, 8
    $region37: #{tpu_custom_call.1} parent=1 // pred_fallthru
      _
    // Predicated region
    $region38: #{tpu_custom_call.1} parent=1 // pred_check
      _
    $region39: #{tpu_custom_call.1} parent=1 // pred_check_branch
      %3175 = sbr.rel (0) target = $region41
    $region40: #{tpu_custom_call.1} parent=1 // pred_region
      %3176 = dma.done [#allocation4], 8192
    $region41: #{tpu_custom_call.1} parent=1 // pred_fallthru
      _
    %3177 = vsyncpa [#allocation3], 1
    %3178 = vsyncpa [#allocation6], 1
    %3179 = vsyncpa [#allocation9], 1
    %3180 = vsyncpa [#allocation4], 1

</llo_original>
